<compile_context>
chip_gen: v6e
topology: v6e:2x2x1
jax: 0.10.0
libtpu: 0.0.40
codegen_flags: <defaults>
</compile_context>

<pallas_src>
import functools

import jax
import jax.numpy as jnp
import numpy as np
from jax import lax
from jax.experimental import pallas as pl
from jax.experimental.pallas import tpu as pltpu

_LANE = 128
_SUBLANE = 8


def _round_up(x, m):
    return (x + m - 1) // m * m


# ----------------------------------------------------------------------------
# Fused encoder kernel: all layers, whole sequence, batch = 1
# ----------------------------------------------------------------------------
def _encoder_kernel(x_ref, wih_ref, whh_ref, b_ref, out_ref, seq_ref, xw_ref,
                    *, num_layers, seq_len, unroll):
    """x_ref:   (Tp, Dp)        padded input sequence (Tp = T rounded to 8)
       wih_ref: (L, Dp, 4*Dp)   stacked, padded, pre-transposed W_ih
       whh_ref: (L, Dp, 4*Dp)   stacked, padded, pre-transposed W_hh
       b_ref:   (L, 1, 4*Dp)    stacked, padded b_ih + b_hh
       out_ref: (1, Dp)         tanh(h_n) of the last layer (padded)
       seq_ref: (Tp, Dp)        VMEM scratch: inter-layer activations
       xw_ref:  (Tp, 4*Dp)      VMEM scratch: hoisted input projection
    """
    Dp = x_ref.shape[1]
    T = seq_len

    # Zero the inter-layer scratch once so padded / never-written rows hold
    # deterministic zeros (they feed the hoisted projection matmul for
    # layers > 0, even though their results are never read back).
    seq_ref[...] = jnp.zeros_like(seq_ref)

    for layer in range(num_layers):
        is_last = layer == num_layers - 1

        # --- Hoisted input projection for the whole sequence --------------
        # One (Tp, Dp) x (Dp, 4*Dp) MXU matmul instead of T matmuls with M=1,
        # plus a single broadcast bias add.
        src = x_ref[...] if layer == 0 else seq_ref[...]
        xw_ref[...] = (
            jnp.dot(src, wih_ref[layer], preferred_element_type=jnp.float32)
            + b_ref[layer]
        )

        # --- Serial recurrence: only h @ W_hh^T remains in the loop -------
        def step(t, carry, _is_last=is_last, _layer=layer):
            h, c = carry                                       # (1, Dp) each
            gates = (
                jnp.dot(h, whh_ref[_layer],
                        preferred_element_type=jnp.float32)
                + xw_ref[pl.ds(t, 1), :]
            )                                                  # (1, 4*Dp)
            # Lane-aligned gate slices (Dp is a multiple of 128).
            i_g = jax.nn.sigmoid(gates[:, 0 * Dp:1 * Dp])
            f_g = jax.nn.sigmoid(gates[:, 1 * Dp:2 * Dp])
            g_g = jnp.tanh(gates[:, 2 * Dp:3 * Dp])
            o_g = jax.nn.sigmoid(gates[:, 3 * Dp:4 * Dp])
            c_new = f_g * c + i_g * g_g
            h_new = o_g * jnp.tanh(c_new)
            if not _is_last:
                # Inter-layer h_activ (sigmoid) fused into the seq write.
                seq_ref[pl.ds(t, 1), :] = jax.nn.sigmoid(h_new)
            return (h_new, c_new)

        h0 = jnp.zeros((1, Dp), jnp.float32)
        c0 = jnp.zeros((1, Dp), jnp.float32)

        if unroll is True:
            # Small static T: fully unroll at trace time.
            carry = (h0, c0)
            for t in range(T):
                carry = step(t, carry)
            h_final = carry[0]
        else:
            h_final, _ = lax.fori_loop(0, T, step, (h0, c0), unroll=unroll)

        if is_last:
            # out_activ (tanh) fused into the final (lane-dense, 128-wide)
            # output write.
            out_ref[...] = jnp.tanh(h_final)


# ----------------------------------------------------------------------------
# Parameter prep: done ONCE (pre-transpose, pre-pad, pre-sum bias, stack layers)
# Gate order follows PyTorch: [i, f, g, o]; each gate gets a lane-aligned
# Dp-wide column band, zero-padded beyond its true hidden size.
# ----------------------------------------------------------------------------
def prepare_encoder_params(params):
    dims = [params[0][0].shape[1]] + [p[1].shape[1] for p in params]
    Dp = _round_up(max(dims), _LANE)
    L = len(params)
    wih = np.zeros((L, Dp, 4 * Dp), np.float32)
    whh = np.zeros((L, Dp, 4 * Dp), np.float32)
    bias = np.zeros((L, 1, 4 * Dp), np.float32)
    for l, (w_ih, w_hh, b_ih, b_hh) in enumerate(params):
        w_ih = np.asarray(w_ih)
        w_hh = np.asarray(w_hh)
        b = np.asarray(b_ih) + np.asarray(b_hh)
        in_d, H = w_ih.shape[1], w_hh.shape[1]
        for g in range(4):
            wih[l, :in_d, g * Dp:g * Dp + H] = w_ih[g * H:(g + 1) * H, :].T
            whh[l, :H, g * Dp:g * Dp + H] = w_hh[g * H:(g + 1) * H, :].T
            bias[l, 0, g * Dp:g * Dp + H] = b[g * H:(g + 1) * H]
    packed = {
        "wih": jnp.asarray(wih),
        "whh": jnp.asarray(whh),
        "bias": jnp.asarray(bias),
        "Dp": Dp,
        "out_dim": dims[-1],
    }
    return packed


# ----------------------------------------------------------------------------
# Encoder forward: mirrors the PyTorch module with h_activ=sigmoid,
# out_activ=tanh.  Input x: (T, input_dim); returns (out_dim,).
# ----------------------------------------------------------------------------
def encoder_forward(x, packed):
    wih, whh, bias = packed["wih"], packed["whh"], packed["bias"]
    Dp, out_dim = packed["Dp"], packed["out_dim"]
    L = wih.shape[0]
    T, in_dim = x.shape
    Tp = _round_up(T, _SUBLANE)   # sublane-aligned time axis for (8,128) tiles

    x_pad = jnp.zeros((Tp, Dp), jnp.float32).at[:T, :in_dim].set(
        x.astype(jnp.float32))

    unroll = True if T <= 64 else 8
    kernel = functools.partial(_encoder_kernel, num_layers=L, seq_len=T,
                               unroll=unroll)

    vmem = pl.BlockSpec(memory_space=pltpu.MemorySpace.VMEM)
    out = pl.pallas_call(
        kernel,
        out_shape=jax.ShapeDtypeStruct((1, Dp), jnp.float32),
        in_specs=[vmem, vmem, vmem, vmem],
        out_specs=vmem,
        scratch_shapes=[
            pltpu.VMEM((Tp, Dp), jnp.float32),       # inter-layer activations
            pltpu.VMEM((Tp, 4 * Dp), jnp.float32),   # hoisted input projection
        ],
        compiler_params=pltpu.CompilerParams(
            vmem_limit_bytes=64 * 1024 * 1024),
    )(x_pad, wih, whh, bias)

    return out[0, :out_dim]


# ----------------------------------------------------------------------------
# Deterministic parameter init (PyTorch LSTM default: U(-1/sqrt(H), 1/sqrt(H)))
# ----------------------------------------------------------------------------
def init_encoder_params(key, input_dim, out_dim, h_dims):
    layer_dims = [input_dim] + list(h_dims) + [out_dim]
    params = []
    for idx in range(len(layer_dims) - 1):
        in_d, H = layer_dims[idx], layer_dims[idx + 1]
        bound = 1.0 / np.sqrt(H)
        key, k1, k2, k3, k4 = jax.random.split(key, 5)
        w_ih = jax.random.uniform(k1, (4 * H, in_d), jnp.float32, -bound, bound)
        w_hh = jax.random.uniform(k2, (4 * H, H), jnp.float32, -bound, bound)
        b_ih = jax.random.uniform(k3, (4 * H,), jnp.float32, -bound, bound)
        b_hh = jax.random.uniform(k4, (4 * H,), jnp.float32, -bound, bound)
        params.append((w_ih, w_hh, b_ih, b_hh))
    return params


# ----------------------------------------------------------------------------
# Pure-JAX reference (lax.scan) for correctness check
# ----------------------------------------------------------------------------
def _ref_lstm_layer(x, w_ih, w_hh, b_ih, b_hh):
    H = w_hh.shape[1]
    b = b_ih + b_hh

    def step(carry, x_t):
        h, c = carry
        gates = x_t @ w_ih.T + h @ w_hh.T + b
        i_g = jax.nn.sigmoid(gates[0 * H:1 * H])
        f_g = jax.nn.sigmoid(gates[1 * H:2 * H])
        g_g = jnp.tanh(gates[2 * H:3 * H])
        o_g = jax.nn.sigmoid(gates[3 * H:4 * H])
        c_new = f_g * c + i_g * g_g
        h_new = o_g * jnp.tanh(c_new)
        return (h_new, c_new), h_new

    (h_f, _), seq = lax.scan(step, (jnp.zeros(H), jnp.zeros(H)), x)
    return seq, h_f[None, :]


def _ref_encoder(x, params):
    n = len(params)
    for idx, (w_ih, w_hh, b_ih, b_hh) in enumerate(params):
        x, h_n = _ref_lstm_layer(x, w_ih, w_hh, b_ih, b_hh)
        if idx < n - 1:
            x = jax.nn.sigmoid(x)
        else:
            return jnp.squeeze(jnp.tanh(h_n))
    return jnp.squeeze(h_n)


if __name__ == "__main__":
    # Small shapes: seq_len=8, input_dim=16, h_dims=[32], out_dim=8
    seq_len, input_dim, h_dims, out_dim = 8, 16, [32], 8

    key = jax.random.PRNGKey(0)
    key, xkey = jax.random.split(key)
    x = jax.random.normal(xkey, (seq_len, input_dim), jnp.float32)

    params = init_encoder_params(key, input_dim, out_dim, h_dims)
    packed = prepare_encoder_params(params)

    out = encoder_forward(x, packed)
    out = jax.block_until_ready(out)
    assert out.shape == (out_dim,), out.shape

    ref = jax.block_until_ready(_ref_encoder(x, params))
    np.testing.assert_allclose(np.asarray(out), np.asarray(ref),
                               rtol=1e-4, atol=1e-5)

    print("KERNEL_OK")
</pallas_src>

<mosaic_0001>
module attributes {stable_mosaic.version = 11 : i64} {
  func.func @_encoder_kernel(%arg0: memref<8x128xf32, #tpu.memory_space<vmem>>, %arg1: memref<2x128x512xf32, #tpu.memory_space<vmem>>, %arg2: memref<2x128x512xf32, #tpu.memory_space<vmem>>, %arg3: memref<2x1x512xf32, #tpu.memory_space<vmem>>, %arg4: memref<1x128xf32, #tpu.memory_space<vmem>>, %arg5: memref<8x128xf32, #tpu.memory_space<vmem>>, %arg6: memref<8x512xf32, #tpu.memory_space<vmem>>) attributes {dimension_semantics = [], scalar_prefetch = 0 : i64, scratch_operands = 2 : i64, tpu.core_type = #tpu.core_type<tc>} {
    %cst = arith.constant 0.000000e+00 : f32
    %0 = vector.broadcast %cst : f32 to vector<8x128xf32>
    %c0 = arith.constant 0 : index
    %c0_0 = arith.constant 0 : index
    %1 = vector.load %arg5[%c0, %c0_0] : memref<8x128xf32, #tpu.memory_space<vmem>>, vector<8x128xf32>
    tpu.vector_store %arg5[%c0, %c0_0], %0 {strides = array<i32>} : memref<8x128xf32, #tpu.memory_space<vmem>>, vector<8x128xf32>,
    %c0_1 = arith.constant 0 : index
    %c0_2 = arith.constant 0 : index
    %2 = vector.load %arg0[%c0_1, %c0_2] : memref<8x128xf32, #tpu.memory_space<vmem>>, vector<8x128xf32>
    %c0_3 = arith.constant 0 : index
    %c0_4 = arith.constant 0 : index
    %c0_5 = arith.constant 0 : index
    %3 = vector.load %arg1[%c0_3, %c0_4, %c0_5] : memref<2x128x512xf32, #tpu.memory_space<vmem>>, vector<1x128x512xf32>
    %4 = vector.shape_cast %3 : vector<1x128x512xf32> to vector<128x512xf32>
    %cst_6 = arith.constant dense<0.000000e+00> : vector<8x512xf32>
    %5 = tpu.matmul %2, %4, %cst_6 {dimension_numbers = #tpu.dot_dimension_numbers<[1], [0], [0], [1], [0, 0, 1, 1], [], []>} : vector<8x128xf32>, vector<128x512xf32>, vector<8x512xf32> -> vector<8x512xf32>
    %c0_7 = arith.constant 0 : index
    %c0_8 = arith.constant 0 : index
    %c0_9 = arith.constant 0 : index
    %6 = vector.load %arg3[%c0_7, %c0_8, %c0_9] : memref<2x1x512xf32, #tpu.memory_space<vmem>>, vector<1x1x512xf32>
    %7 = vector.shape_cast %6 : vector<1x1x512xf32> to vector<1x512xf32>
    %8 = vector.broadcast %7 : vector<1x512xf32> to vector<8x512xf32>
    %9 = arith.addf %5, %8 : vector<8x512xf32>
    %c0_10 = arith.constant 0 : index
    %c0_11 = arith.constant 0 : index
    %10 = vector.load %arg6[%c0_10, %c0_11] : memref<8x512xf32, #tpu.memory_space<vmem>>, vector<8x512xf32>
    tpu.vector_store %arg6[%c0_10, %c0_11], %9 {strides = array<i32>} : memref<8x512xf32, #tpu.memory_space<vmem>>, vector<8x512xf32>,
    %cst_12 = arith.constant 0.000000e+00 : f32
    %11 = vector.broadcast %cst_12 : f32 to vector<1x128xf32>
    %cst_13 = arith.constant 0.000000e+00 : f32
    %12 = vector.broadcast %cst_13 : f32 to vector<1x128xf32>
    %c0_14 = arith.constant 0 : index
    %c0_15 = arith.constant 0 : index
    %c0_16 = arith.constant 0 : index
    %13 = vector.load %arg2[%c0_14, %c0_15, %c0_16] : memref<2x128x512xf32, #tpu.memory_space<vmem>>, vector<1x128x512xf32>
    %14 = vector.shape_cast %13 : vector<1x128x512xf32> to vector<128x512xf32>
    %cst_17 = arith.constant dense<0.000000e+00> : vector<1x512xf32>
    %15 = tpu.matmul %11, %14, %cst_17 {dimension_numbers = #tpu.dot_dimension_numbers<[1], [0], [0], [1], [0, 0, 1, 1], [], []>} : vector<1x128xf32>, vector<128x512xf32>, vector<1x512xf32> -> vector<1x512xf32>
    %c0_18 = arith.constant 0 : index
    %c0_19 = arith.constant 0 : index
    %16 = vector.load %arg6[%c0_18, %c0_19] : memref<8x512xf32, #tpu.memory_space<vmem>>, vector<1x512xf32>
    %17 = arith.addf %15, %16 : vector<1x512xf32>
    %18 = vector.extract_strided_slice %17 {offsets = [0, 0], sizes = [1, 128], strides = [1, 1]} : vector<1x512xf32> to vector<1x128xf32>
    %19 = arith.negf %18 : vector<1x128xf32>
    %20 = math.exp %19 : vector<1x128xf32>
    %cst_20 = arith.constant 1.000000e+00 : f32
    %21 = vector.broadcast %cst_20 : f32 to vector<1x128xf32>
    %22 = arith.addf %21, %20 : vector<1x128xf32>
    %23 = arith.divf %21, %22 : vector<1x128xf32>
    %24 = vector.extract_strided_slice %17 {offsets = [0, 128], sizes = [1, 128], strides = [1, 1]} : vector<1x512xf32> to vector<1x128xf32>
    %25 = arith.negf %24 : vector<1x128xf32>
    %26 = math.exp %25 : vector<1x128xf32>
    %cst_21 = arith.constant 1.000000e+00 : f32
    %27 = vector.broadcast %cst_21 : f32 to vector<1x128xf32>
    %28 = arith.addf %27, %26 : vector<1x128xf32>
    %29 = arith.divf %27, %28 : vector<1x128xf32>
    %30 = vector.extract_strided_slice %17 {offsets = [0, 256], sizes = [1, 128], strides = [1, 1]} : vector<1x512xf32> to vector<1x128xf32>
    %31 = math.tanh %30 : vector<1x128xf32>
    %32 = vector.extract_strided_slice %17 {offsets = [0, 384], sizes = [1, 128], strides = [1, 1]} : vector<1x512xf32> to vector<1x128xf32>
    %33 = arith.negf %32 : vector<1x128xf32>
    %34 = math.exp %33 : vector<1x128xf32>
    %cst_22 = arith.constant 1.000000e+00 : f32
    %35 = vector.broadcast %cst_22 : f32 to vector<1x128xf32>
    %36 = arith.addf %35, %34 : vector<1x128xf32>
    %37 = arith.divf %35, %36 : vector<1x128xf32>
    %38 = arith.mulf %29, %12 : vector<1x128xf32>
    %39 = arith.mulf %23, %31 : vector<1x128xf32>
    %40 = arith.addf %38, %39 : vector<1x128xf32>
    %41 = math.tanh %40 : vector<1x128xf32>
    %42 = arith.mulf %37, %41 : vector<1x128xf32>
    %43 = arith.negf %42 : vector<1x128xf32>
    %44 = math.exp %43 : vector<1x128xf32>
    %cst_23 = arith.constant 1.000000e+00 : f32
    %45 = vector.broadcast %cst_23 : f32 to vector<1x128xf32>
    %46 = arith.addf %45, %44 : vector<1x128xf32>
    %47 = arith.divf %45, %46 : vector<1x128xf32>
    %c0_24 = arith.constant 0 : index
    %c0_25 = arith.constant 0 : index
    %48 = vector.load %arg5[%c0_24, %c0_25] : memref<8x128xf32, #tpu.memory_space<vmem>>, vector<1x128xf32>
    tpu.vector_store %arg5[%c0_24, %c0_25], %47 {strides = array<i32>} : memref<8x128xf32, #tpu.memory_space<vmem>>, vector<1x128xf32>,
    %c0_26 = arith.constant 0 : index
    %c0_27 = arith.constant 0 : index
    %c0_28 = arith.constant 0 : index
    %49 = vector.load %arg2[%c0_26, %c0_27, %c0_28] : memref<2x128x512xf32, #tpu.memory_space<vmem>>, vector<1x128x512xf32>
    %50 = vector.shape_cast %49 : vector<1x128x512xf32> to vector<128x512xf32>
    %cst_29 = arith.constant dense<0.000000e+00> : vector<1x512xf32>
    %51 = tpu.matmul %42, %50, %cst_29 {dimension_numbers = #tpu.dot_dimension_numbers<[1], [0], [0], [1], [0, 0, 1, 1], [], []>} : vector<1x128xf32>, vector<128x512xf32>, vector<1x512xf32> -> vector<1x512xf32>
    %c1 = arith.constant 1 : index
    %c0_30 = arith.constant 0 : index
    %52 = vector.load %arg6[%c1, %c0_30] : memref<8x512xf32, #tpu.memory_space<vmem>>, vector<1x512xf32>
    %53 = arith.addf %51, %52 : vector<1x512xf32>
    %54 = vector.extract_strided_slice %53 {offsets = [0, 0], sizes = [1, 128], strides = [1, 1]} : vector<1x512xf32> to vector<1x128xf32>
    %55 = arith.negf %54 : vector<1x128xf32>
    %56 = math.exp %55 : vector<1x128xf32>
    %cst_31 = arith.constant 1.000000e+00 : f32
    %57 = vector.broadcast %cst_31 : f32 to vector<1x128xf32>
    %58 = arith.addf %57, %56 : vector<1x128xf32>
    %59 = arith.divf %57, %58 : vector<1x128xf32>
    %60 = vector.extract_strided_slice %53 {offsets = [0, 128], sizes = [1, 128], strides = [1, 1]} : vector<1x512xf32> to vector<1x128xf32>
    %61 = arith.negf %60 : vector<1x128xf32>
    %62 = math.exp %61 : vector<1x128xf32>
    %cst_32 = arith.constant 1.000000e+00 : f32
    %63 = vector.broadcast %cst_32 : f32 to vector<1x128xf32>
    %64 = arith.addf %63, %62 : vector<1x128xf32>
    %65 = arith.divf %63, %64 : vector<1x128xf32>
    %66 = vector.extract_strided_slice %53 {offsets = [0, 256], sizes = [1, 128], strides = [1, 1]} : vector<1x512xf32> to vector<1x128xf32>
    %67 = math.tanh %66 : vector<1x128xf32>
    %68 = vector.extract_strided_slice %53 {offsets = [0, 384], sizes = [1, 128], strides = [1, 1]} : vector<1x512xf32> to vector<1x128xf32>
    %69 = arith.negf %68 : vector<1x128xf32>
    %70 = math.exp %69 : vector<1x128xf32>
    %cst_33 = arith.constant 1.000000e+00 : f32
    %71 = vector.broadcast %cst_33 : f32 to vector<1x128xf32>
    %72 = arith.addf %71, %70 : vector<1x128xf32>
    %73 = arith.divf %71, %72 : vector<1x128xf32>
    %74 = arith.mulf %65, %40 : vector<1x128xf32>
    %75 = arith.mulf %59, %67 : vector<1x128xf32>
    %76 = arith.addf %74, %75 : vector<1x128xf32>
    %77 = math.tanh %76 : vector<1x128xf32>
    %78 = arith.mulf %73, %77 : vector<1x128xf32>
    %79 = arith.negf %78 : vector<1x128xf32>
    %80 = math.exp %79 : vector<1x128xf32>
    %cst_34 = arith.constant 1.000000e+00 : f32
    %81 = vector.broadcast %cst_34 : f32 to vector<1x128xf32>
    %82 = arith.addf %81, %80 : vector<1x128xf32>
    %83 = arith.divf %81, %82 : vector<1x128xf32>
    %c1_35 = arith.constant 1 : index
    %c0_36 = arith.constant 0 : index
    %84 = vector.load %arg5[%c1_35, %c0_36] : memref<8x128xf32, #tpu.memory_space<vmem>>, vector<1x128xf32>
    tpu.vector_store %arg5[%c1_35, %c0_36], %83 {strides = array<i32>} : memref<8x128xf32, #tpu.memory_space<vmem>>, vector<1x128xf32>,
    %c0_37 = arith.constant 0 : index
    %c0_38 = arith.constant 0 : index
    %c0_39 = arith.constant 0 : index
    %85 = vector.load %arg2[%c0_37, %c0_38, %c0_39] : memref<2x128x512xf32, #tpu.memory_space<vmem>>, vector<1x128x512xf32>
    %86 = vector.shape_cast %85 : vector<1x128x512xf32> to vector<128x512xf32>
    %cst_40 = arith.constant dense<0.000000e+00> : vector<1x512xf32>
    %87 = tpu.matmul %78, %86, %cst_40 {dimension_numbers = #tpu.dot_dimension_numbers<[1], [0], [0], [1], [0, 0, 1, 1], [], []>} : vector<1x128xf32>, vector<128x512xf32>, vector<1x512xf32> -> vector<1x512xf32>
    %c2 = arith.constant 2 : index
    %c0_41 = arith.constant 0 : index
    %88 = vector.load %arg6[%c2, %c0_41] : memref<8x512xf32, #tpu.memory_space<vmem>>, vector<1x512xf32>
    %89 = arith.addf %87, %88 : vector<1x512xf32>
    %90 = vector.extract_strided_slice %89 {offsets = [0, 0], sizes = [1, 128], strides = [1, 1]} : vector<1x512xf32> to vector<1x128xf32>
    %91 = arith.negf %90 : vector<1x128xf32>
    %92 = math.exp %91 : vector<1x128xf32>
    %cst_42 = arith.constant 1.000000e+00 : f32
    %93 = vector.broadcast %cst_42 : f32 to vector<1x128xf32>
    %94 = arith.addf %93, %92 : vector<1x128xf32>
    %95 = arith.divf %93, %94 : vector<1x128xf32>
    %96 = vector.extract_strided_slice %89 {offsets = [0, 128], sizes = [1, 128], strides = [1, 1]} : vector<1x512xf32> to vector<1x128xf32>
    %97 = arith.negf %96 : vector<1x128xf32>
    %98 = math.exp %97 : vector<1x128xf32>
    %cst_43 = arith.constant 1.000000e+00 : f32
    %99 = vector.broadcast %cst_43 : f32 to vector<1x128xf32>
    %100 = arith.addf %99, %98 : vector<1x128xf32>
    %101 = arith.divf %99, %100 : vector<1x128xf32>
    %102 = vector.extract_strided_slice %89 {offsets = [0, 256], sizes = [1, 128], strides = [1, 1]} : vector<1x512xf32> to vector<1x128xf32>
    %103 = math.tanh %102 : vector<1x128xf32>
    %104 = vector.extract_strided_slice %89 {offsets = [0, 384], sizes = [1, 128], strides = [1, 1]} : vector<1x512xf32> to vector<1x128xf32>
    %105 = arith.negf %104 : vector<1x128xf32>
    %106 = math.exp %105 : vector<1x128xf32>
    %cst_44 = arith.constant 1.000000e+00 : f32
    %107 = vector.broadcast %cst_44 : f32 to vector<1x128xf32>
    %108 = arith.addf %107, %106 : vector<1x128xf32>
    %109 = arith.divf %107, %108 : vector<1x128xf32>
    %110 = arith.mulf %101, %76 : vector<1x128xf32>
    %111 = arith.mulf %95, %103 : vector<1x128xf32>
    %112 = arith.addf %110, %111 : vector<1x128xf32>
    %113 = math.tanh %112 : vector<1x128xf32>
    %114 = arith.mulf %109, %113 : vector<1x128xf32>
    %115 = arith.negf %114 : vector<1x128xf32>
    %116 = math.exp %115 : vector<1x128xf32>
    %cst_45 = arith.constant 1.000000e+00 : f32
    %117 = vector.broadcast %cst_45 : f32 to vector<1x128xf32>
    %118 = arith.addf %117, %116 : vector<1x128xf32>
    %119 = arith.divf %117, %118 : vector<1x128xf32>
    %c2_46 = arith.constant 2 : index
    %c0_47 = arith.constant 0 : index
    %120 = vector.load %arg5[%c2_46, %c0_47] : memref<8x128xf32, #tpu.memory_space<vmem>>, vector<1x128xf32>
    tpu.vector_store %arg5[%c2_46, %c0_47], %119 {strides = array<i32>} : memref<8x128xf32, #tpu.memory_space<vmem>>, vector<1x128xf32>,
    %c0_48 = arith.constant 0 : index
    %c0_49 = arith.constant 0 : index
    %c0_50 = arith.constant 0 : index
    %121 = vector.load %arg2[%c0_48, %c0_49, %c0_50] : memref<2x128x512xf32, #tpu.memory_space<vmem>>, vector<1x128x512xf32>
    %122 = vector.shape_cast %121 : vector<1x128x512xf32> to vector<128x512xf32>
    %cst_51 = arith.constant dense<0.000000e+00> : vector<1x512xf32>
    %123 = tpu.matmul %114, %122, %cst_51 {dimension_numbers = #tpu.dot_dimension_numbers<[1], [0], [0], [1], [0, 0, 1, 1], [], []>} : vector<1x128xf32>, vector<128x512xf32>, vector<1x512xf32> -> vector<1x512xf32>
    %c3 = arith.constant 3 : index
    %c0_52 = arith.constant 0 : index
    %124 = vector.load %arg6[%c3, %c0_52] : memref<8x512xf32, #tpu.memory_space<vmem>>, vector<1x512xf32>
    %125 = arith.addf %123, %124 : vector<1x512xf32>
    %126 = vector.extract_strided_slice %125 {offsets = [0, 0], sizes = [1, 128], strides = [1, 1]} : vector<1x512xf32> to vector<1x128xf32>
    %127 = arith.negf %126 : vector<1x128xf32>
    %128 = math.exp %127 : vector<1x128xf32>
    %cst_53 = arith.constant 1.000000e+00 : f32
    %129 = vector.broadcast %cst_53 : f32 to vector<1x128xf32>
    %130 = arith.addf %129, %128 : vector<1x128xf32>
    %131 = arith.divf %129, %130 : vector<1x128xf32>
    %132 = vector.extract_strided_slice %125 {offsets = [0, 128], sizes = [1, 128], strides = [1, 1]} : vector<1x512xf32> to vector<1x128xf32>
    %133 = arith.negf %132 : vector<1x128xf32>
    %134 = math.exp %133 : vector<1x128xf32>
    %cst_54 = arith.constant 1.000000e+00 : f32
    %135 = vector.broadcast %cst_54 : f32 to vector<1x128xf32>
    %136 = arith.addf %135, %134 : vector<1x128xf32>
    %137 = arith.divf %135, %136 : vector<1x128xf32>
    %138 = vector.extract_strided_slice %125 {offsets = [0, 256], sizes = [1, 128], strides = [1, 1]} : vector<1x512xf32> to vector<1x128xf32>
    %139 = math.tanh %138 : vector<1x128xf32>
    %140 = vector.extract_strided_slice %125 {offsets = [0, 384], sizes = [1, 128], strides = [1, 1]} : vector<1x512xf32> to vector<1x128xf32>
    %141 = arith.negf %140 : vector<1x128xf32>
    %142 = math.exp %141 : vector<1x128xf32>
    %cst_55 = arith.constant 1.000000e+00 : f32
    %143 = vector.broadcast %cst_55 : f32 to vector<1x128xf32>
    %144 = arith.addf %143, %142 : vector<1x128xf32>
    %145 = arith.divf %143, %144 : vector<1x128xf32>
    %146 = arith.mulf %137, %112 : vector<1x128xf32>
    %147 = arith.mulf %131, %139 : vector<1x128xf32>
    %148 = arith.addf %146, %147 : vector<1x128xf32>
    %149 = math.tanh %148 : vector<1x128xf32>
    %150 = arith.mulf %145, %149 : vector<1x128xf32>
    %151 = arith.negf %150 : vector<1x128xf32>
    %152 = math.exp %151 : vector<1x128xf32>
    %cst_56 = arith.constant 1.000000e+00 : f32
    %153 = vector.broadcast %cst_56 : f32 to vector<1x128xf32>
    %154 = arith.addf %153, %152 : vector<1x128xf32>
    %155 = arith.divf %153, %154 : vector<1x128xf32>
    %c3_57 = arith.constant 3 : index
    %c0_58 = arith.constant 0 : index
    %156 = vector.load %arg5[%c3_57, %c0_58] : memref<8x128xf32, #tpu.memory_space<vmem>>, vector<1x128xf32>
    tpu.vector_store %arg5[%c3_57, %c0_58], %155 {strides = array<i32>} : memref<8x128xf32, #tpu.memory_space<vmem>>, vector<1x128xf32>,
    %c0_59 = arith.constant 0 : index
    %c0_60 = arith.constant 0 : index
    %c0_61 = arith.constant 0 : index
    %157 = vector.load %arg2[%c0_59, %c0_60, %c0_61] : memref<2x128x512xf32, #tpu.memory_space<vmem>>, vector<1x128x512xf32>
    %158 = vector.shape_cast %157 : vector<1x128x512xf32> to vector<128x512xf32>
    %cst_62 = arith.constant dense<0.000000e+00> : vector<1x512xf32>
    %159 = tpu.matmul %150, %158, %cst_62 {dimension_numbers = #tpu.dot_dimension_numbers<[1], [0], [0], [1], [0, 0, 1, 1], [], []>} : vector<1x128xf32>, vector<128x512xf32>, vector<1x512xf32> -> vector<1x512xf32>
    %c4 = arith.constant 4 : index
    %c0_63 = arith.constant 0 : index
    %160 = vector.load %arg6[%c4, %c0_63] : memref<8x512xf32, #tpu.memory_space<vmem>>, vector<1x512xf32>
    %161 = arith.addf %159, %160 : vector<1x512xf32>
    %162 = vector.extract_strided_slice %161 {offsets = [0, 0], sizes = [1, 128], strides = [1, 1]} : vector<1x512xf32> to vector<1x128xf32>
    %163 = arith.negf %162 : vector<1x128xf32>
    %164 = math.exp %163 : vector<1x128xf32>
    %cst_64 = arith.constant 1.000000e+00 : f32
    %165 = vector.broadcast %cst_64 : f32 to vector<1x128xf32>
    %166 = arith.addf %165, %164 : vector<1x128xf32>
    %167 = arith.divf %165, %166 : vector<1x128xf32>
    %168 = vector.extract_strided_slice %161 {offsets = [0, 128], sizes = [1, 128], strides = [1, 1]} : vector<1x512xf32> to vector<1x128xf32>
    %169 = arith.negf %168 : vector<1x128xf32>
    %170 = math.exp %169 : vector<1x128xf32>
    %cst_65 = arith.constant 1.000000e+00 : f32
    %171 = vector.broadcast %cst_65 : f32 to vector<1x128xf32>
    %172 = arith.addf %171, %170 : vector<1x128xf32>
    %173 = arith.divf %171, %172 : vector<1x128xf32>
    %174 = vector.extract_strided_slice %161 {offsets = [0, 256], sizes = [1, 128], strides = [1, 1]} : vector<1x512xf32> to vector<1x128xf32>
    %175 = math.tanh %174 : vector<1x128xf32>
    %176 = vector.extract_strided_slice %161 {offsets = [0, 384], sizes = [1, 128], strides = [1, 1]} : vector<1x512xf32> to vector<1x128xf32>
    %177 = arith.negf %176 : vector<1x128xf32>
    %178 = math.exp %177 : vector<1x128xf32>
    %cst_66 = arith.constant 1.000000e+00 : f32
    %179 = vector.broadcast %cst_66 : f32 to vector<1x128xf32>
    %180 = arith.addf %179, %178 : vector<1x128xf32>
    %181 = arith.divf %179, %180 : vector<1x128xf32>
    %182 = arith.mulf %173, %148 : vector<1x128xf32>
    %183 = arith.mulf %167, %175 : vector<1x128xf32>
    %184 = arith.addf %182, %183 : vector<1x128xf32>
    %185 = math.tanh %184 : vector<1x128xf32>
    %186 = arith.mulf %181, %185 : vector<1x128xf32>
    %187 = arith.negf %186 : vector<1x128xf32>
    %188 = math.exp %187 : vector<1x128xf32>
    %cst_67 = arith.constant 1.000000e+00 : f32
    %189 = vector.broadcast %cst_67 : f32 to vector<1x128xf32>
    %190 = arith.addf %189, %188 : vector<1x128xf32>
    %191 = arith.divf %189, %190 : vector<1x128xf32>
    %c4_68 = arith.constant 4 : index
    %c0_69 = arith.constant 0 : index
    %192 = vector.load %arg5[%c4_68, %c0_69] : memref<8x128xf32, #tpu.memory_space<vmem>>, vector<1x128xf32>
    tpu.vector_store %arg5[%c4_68, %c0_69], %191 {strides = array<i32>} : memref<8x128xf32, #tpu.memory_space<vmem>>, vector<1x128xf32>,
    %c0_70 = arith.constant 0 : index
    %c0_71 = arith.constant 0 : index
    %c0_72 = arith.constant 0 : index
    %193 = vector.load %arg2[%c0_70, %c0_71, %c0_72] : memref<2x128x512xf32, #tpu.memory_space<vmem>>, vector<1x128x512xf32>
    %194 = vector.shape_cast %193 : vector<1x128x512xf32> to vector<128x512xf32>
    %cst_73 = arith.constant dense<0.000000e+00> : vector<1x512xf32>
    %195 = tpu.matmul %186, %194, %cst_73 {dimension_numbers = #tpu.dot_dimension_numbers<[1], [0], [0], [1], [0, 0, 1, 1], [], []>} : vector<1x128xf32>, vector<128x512xf32>, vector<1x512xf32> -> vector<1x512xf32>
    %c5 = arith.constant 5 : index
    %c0_74 = arith.constant 0 : index
    %196 = vector.load %arg6[%c5, %c0_74] : memref<8x512xf32, #tpu.memory_space<vmem>>, vector<1x512xf32>
    %197 = arith.addf %195, %196 : vector<1x512xf32>
    %198 = vector.extract_strided_slice %197 {offsets = [0, 0], sizes = [1, 128], strides = [1, 1]} : vector<1x512xf32> to vector<1x128xf32>
    %199 = arith.negf %198 : vector<1x128xf32>
    %200 = math.exp %199 : vector<1x128xf32>
    %cst_75 = arith.constant 1.000000e+00 : f32
    %201 = vector.broadcast %cst_75 : f32 to vector<1x128xf32>
    %202 = arith.addf %201, %200 : vector<1x128xf32>
    %203 = arith.divf %201, %202 : vector<1x128xf32>
    %204 = vector.extract_strided_slice %197 {offsets = [0, 128], sizes = [1, 128], strides = [1, 1]} : vector<1x512xf32> to vector<1x128xf32>
    %205 = arith.negf %204 : vector<1x128xf32>
    %206 = math.exp %205 : vector<1x128xf32>
    %cst_76 = arith.constant 1.000000e+00 : f32
    %207 = vector.broadcast %cst_76 : f32 to vector<1x128xf32>
    %208 = arith.addf %207, %206 : vector<1x128xf32>
    %209 = arith.divf %207, %208 : vector<1x128xf32>
    %210 = vector.extract_strided_slice %197 {offsets = [0, 256], sizes = [1, 128], strides = [1, 1]} : vector<1x512xf32> to vector<1x128xf32>
    %211 = math.tanh %210 : vector<1x128xf32>
    %212 = vector.extract_strided_slice %197 {offsets = [0, 384], sizes = [1, 128], strides = [1, 1]} : vector<1x512xf32> to vector<1x128xf32>
    %213 = arith.negf %212 : vector<1x128xf32>
    %214 = math.exp %213 : vector<1x128xf32>
    %cst_77 = arith.constant 1.000000e+00 : f32
    %215 = vector.broadcast %cst_77 : f32 to vector<1x128xf32>
    %216 = arith.addf %215, %214 : vector<1x128xf32>
    %217 = arith.divf %215, %216 : vector<1x128xf32>
    %218 = arith.mulf %209, %184 : vector<1x128xf32>
    %219 = arith.mulf %203, %211 : vector<1x128xf32>
    %220 = arith.addf %218, %219 : vector<1x128xf32>
    %221 = math.tanh %220 : vector<1x128xf32>
    %222 = arith.mulf %217, %221 : vector<1x128xf32>
    %223 = arith.negf %222 : vector<1x128xf32>
    %224 = math.exp %223 : vector<1x128xf32>
    %cst_78 = arith.constant 1.000000e+00 : f32
    %225 = vector.broadcast %cst_78 : f32 to vector<1x128xf32>
    %226 = arith.addf %225, %224 : vector<1x128xf32>
    %227 = arith.divf %225, %226 : vector<1x128xf32>
    %c5_79 = arith.constant 5 : index
    %c0_80 = arith.constant 0 : index
    %228 = vector.load %arg5[%c5_79, %c0_80] : memref<8x128xf32, #tpu.memory_space<vmem>>, vector<1x128xf32>
    tpu.vector_store %arg5[%c5_79, %c0_80], %227 {strides = array<i32>} : memref<8x128xf32, #tpu.memory_space<vmem>>, vector<1x128xf32>,
    %c0_81 = arith.constant 0 : index
    %c0_82 = arith.constant 0 : index
    %c0_83 = arith.constant 0 : index
    %229 = vector.load %arg2[%c0_81, %c0_82, %c0_83] : memref<2x128x512xf32, #tpu.memory_space<vmem>>, vector<1x128x512xf32>
    %230 = vector.shape_cast %229 : vector<1x128x512xf32> to vector<128x512xf32>
    %cst_84 = arith.constant dense<0.000000e+00> : vector<1x512xf32>
    %231 = tpu.matmul %222, %230, %cst_84 {dimension_numbers = #tpu.dot_dimension_numbers<[1], [0], [0], [1], [0, 0, 1, 1], [], []>} : vector<1x128xf32>, vector<128x512xf32>, vector<1x512xf32> -> vector<1x512xf32>
    %c6 = arith.constant 6 : index
    %c0_85 = arith.constant 0 : index
    %232 = vector.load %arg6[%c6, %c0_85] : memref<8x512xf32, #tpu.memory_space<vmem>>, vector<1x512xf32>
    %233 = arith.addf %231, %232 : vector<1x512xf32>
    %234 = vector.extract_strided_slice %233 {offsets = [0, 0], sizes = [1, 128], strides = [1, 1]} : vector<1x512xf32> to vector<1x128xf32>
    %235 = arith.negf %234 : vector<1x128xf32>
    %236 = math.exp %235 : vector<1x128xf32>
    %cst_86 = arith.constant 1.000000e+00 : f32
    %237 = vector.broadcast %cst_86 : f32 to vector<1x128xf32>
    %238 = arith.addf %237, %236 : vector<1x128xf32>
    %239 = arith.divf %237, %238 : vector<1x128xf32>
    %240 = vector.extract_strided_slice %233 {offsets = [0, 128], sizes = [1, 128], strides = [1, 1]} : vector<1x512xf32> to vector<1x128xf32>
    %241 = arith.negf %240 : vector<1x128xf32>
    %242 = math.exp %241 : vector<1x128xf32>
    %cst_87 = arith.constant 1.000000e+00 : f32
    %243 = vector.broadcast %cst_87 : f32 to vector<1x128xf32>
    %244 = arith.addf %243, %242 : vector<1x128xf32>
    %245 = arith.divf %243, %244 : vector<1x128xf32>
    %246 = vector.extract_strided_slice %233 {offsets = [0, 256], sizes = [1, 128], strides = [1, 1]} : vector<1x512xf32> to vector<1x128xf32>
    %247 = math.tanh %246 : vector<1x128xf32>
    %248 = vector.extract_strided_slice %233 {offsets = [0, 384], sizes = [1, 128], strides = [1, 1]} : vector<1x512xf32> to vector<1x128xf32>
    %249 = arith.negf %248 : vector<1x128xf32>
    %250 = math.exp %249 : vector<1x128xf32>
    %cst_88 = arith.constant 1.000000e+00 : f32
    %251 = vector.broadcast %cst_88 : f32 to vector<1x128xf32>
    %252 = arith.addf %251, %250 : vector<1x128xf32>
    %253 = arith.divf %251, %252 : vector<1x128xf32>
    %254 = arith.mulf %245, %220 : vector<1x128xf32>
    %255 = arith.mulf %239, %247 : vector<1x128xf32>
    %256 = arith.addf %254, %255 : vector<1x128xf32>
    %257 = math.tanh %256 : vector<1x128xf32>
    %258 = arith.mulf %253, %257 : vector<1x128xf32>
    %259 = arith.negf %258 : vector<1x128xf32>
    %260 = math.exp %259 : vector<1x128xf32>
    %cst_89 = arith.constant 1.000000e+00 : f32
    %261 = vector.broadcast %cst_89 : f32 to vector<1x128xf32>
    %262 = arith.addf %261, %260 : vector<1x128xf32>
    %263 = arith.divf %261, %262 : vector<1x128xf32>
    %c6_90 = arith.constant 6 : index
    %c0_91 = arith.constant 0 : index
    %264 = vector.load %arg5[%c6_90, %c0_91] : memref<8x128xf32, #tpu.memory_space<vmem>>, vector<1x128xf32>
    tpu.vector_store %arg5[%c6_90, %c0_91], %263 {strides = array<i32>} : memref<8x128xf32, #tpu.memory_space<vmem>>, vector<1x128xf32>,
    %c0_92 = arith.constant 0 : index
    %c0_93 = arith.constant 0 : index
    %c0_94 = arith.constant 0 : index
    %265 = vector.load %arg2[%c0_92, %c0_93, %c0_94] : memref<2x128x512xf32, #tpu.memory_space<vmem>>, vector<1x128x512xf32>
    %266 = vector.shape_cast %265 : vector<1x128x512xf32> to vector<128x512xf32>
    %cst_95 = arith.constant dense<0.000000e+00> : vector<1x512xf32>
    %267 = tpu.matmul %258, %266, %cst_95 {dimension_numbers = #tpu.dot_dimension_numbers<[1], [0], [0], [1], [0, 0, 1, 1], [], []>} : vector<1x128xf32>, vector<128x512xf32>, vector<1x512xf32> -> vector<1x512xf32>
    %c7 = arith.constant 7 : index
    %c0_96 = arith.constant 0 : index
    %268 = vector.load %arg6[%c7, %c0_96] : memref<8x512xf32, #tpu.memory_space<vmem>>, vector<1x512xf32>
    %269 = arith.addf %267, %268 : vector<1x512xf32>
    %270 = vector.extract_strided_slice %269 {offsets = [0, 0], sizes = [1, 128], strides = [1, 1]} : vector<1x512xf32> to vector<1x128xf32>
    %271 = arith.negf %270 : vector<1x128xf32>
    %272 = math.exp %271 : vector<1x128xf32>
    %cst_97 = arith.constant 1.000000e+00 : f32
    %273 = vector.broadcast %cst_97 : f32 to vector<1x128xf32>
    %274 = arith.addf %273, %272 : vector<1x128xf32>
    %275 = arith.divf %273, %274 : vector<1x128xf32>
    %276 = vector.extract_strided_slice %269 {offsets = [0, 128], sizes = [1, 128], strides = [1, 1]} : vector<1x512xf32> to vector<1x128xf32>
    %277 = arith.negf %276 : vector<1x128xf32>
    %278 = math.exp %277 : vector<1x128xf32>
    %cst_98 = arith.constant 1.000000e+00 : f32
    %279 = vector.broadcast %cst_98 : f32 to vector<1x128xf32>
    %280 = arith.addf %279, %278 : vector<1x128xf32>
    %281 = arith.divf %279, %280 : vector<1x128xf32>
    %282 = vector.extract_strided_slice %269 {offsets = [0, 256], sizes = [1, 128], strides = [1, 1]} : vector<1x512xf32> to vector<1x128xf32>
    %283 = math.tanh %282 : vector<1x128xf32>
    %284 = vector.extract_strided_slice %269 {offsets = [0, 384], sizes = [1, 128], strides = [1, 1]} : vector<1x512xf32> to vector<1x128xf32>
    %285 = arith.negf %284 : vector<1x128xf32>
    %286 = math.exp %285 : vector<1x128xf32>
    %cst_99 = arith.constant 1.000000e+00 : f32
    %287 = vector.broadcast %cst_99 : f32 to vector<1x128xf32>
    %288 = arith.addf %287, %286 : vector<1x128xf32>
    %289 = arith.divf %287, %288 : vector<1x128xf32>
    %290 = arith.mulf %281, %256 : vector<1x128xf32>
    %291 = arith.mulf %275, %283 : vector<1x128xf32>
    %292 = arith.addf %290, %291 : vector<1x128xf32>
    %293 = math.tanh %292 : vector<1x128xf32>
    %294 = arith.mulf %289, %293 : vector<1x128xf32>
    %295 = arith.negf %294 : vector<1x128xf32>
    %296 = math.exp %295 : vector<1x128xf32>
    %cst_100 = arith.constant 1.000000e+00 : f32
    %297 = vector.broadcast %cst_100 : f32 to vector<1x128xf32>
    %298 = arith.addf %297, %296 : vector<1x128xf32>
    %299 = arith.divf %297, %298 : vector<1x128xf32>
    %c7_101 = arith.constant 7 : index
    %c0_102 = arith.constant 0 : index
    %300 = vector.load %arg5[%c7_101, %c0_102] : memref<8x128xf32, #tpu.memory_space<vmem>>, vector<1x128xf32>
    tpu.vector_store %arg5[%c7_101, %c0_102], %299 {strides = array<i32>} : memref<8x128xf32, #tpu.memory_space<vmem>>, vector<1x128xf32>,
    %c0_103 = arith.constant 0 : index
    %c0_104 = arith.constant 0 : index
    %301 = vector.load %arg5[%c0_103, %c0_104] : memref<8x128xf32, #tpu.memory_space<vmem>>, vector<8x128xf32>
    %c1_105 = arith.constant 1 : index
    %c0_106 = arith.constant 0 : index
    %c0_107 = arith.constant 0 : index
    %302 = vector.load %arg1[%c1_105, %c0_106, %c0_107] : memref<2x128x512xf32, #tpu.memory_space<vmem>>, vector<1x128x512xf32>
    %303 = vector.shape_cast %302 : vector<1x128x512xf32> to vector<128x512xf32>
    %cst_108 = arith.constant dense<0.000000e+00> : vector<8x512xf32>
    %304 = tpu.matmul %301, %303, %cst_108 {dimension_numbers = #tpu.dot_dimension_numbers<[1], [0], [0], [1], [0, 0, 1, 1], [], []>} : vector<8x128xf32>, vector<128x512xf32>, vector<8x512xf32> -> vector<8x512xf32>
    %c1_109 = arith.constant 1 : index
    %c0_110 = arith.constant 0 : index
    %c0_111 = arith.constant 0 : index
    %305 = vector.load %arg3[%c1_109, %c0_110, %c0_111] : memref<2x1x512xf32, #tpu.memory_space<vmem>>, vector<1x1x512xf32>
    %306 = vector.shape_cast %305 : vector<1x1x512xf32> to vector<1x512xf32>
    %307 = vector.broadcast %306 : vector<1x512xf32> to vector<8x512xf32>
    %308 = arith.addf %304, %307 : vector<8x512xf32>
    %c0_112 = arith.constant 0 : index
    %c0_113 = arith.constant 0 : index
    %309 = vector.load %arg6[%c0_112, %c0_113] : memref<8x512xf32, #tpu.memory_space<vmem>>, vector<8x512xf32>
    tpu.vector_store %arg6[%c0_112, %c0_113], %308 {strides = array<i32>} : memref<8x512xf32, #tpu.memory_space<vmem>>, vector<8x512xf32>,
    %cst_114 = arith.constant 0.000000e+00 : f32
    %310 = vector.broadcast %cst_114 : f32 to vector<1x128xf32>
    %cst_115 = arith.constant 0.000000e+00 : f32
    %311 = vector.broadcast %cst_115 : f32 to vector<1x128xf32>
    %c1_116 = arith.constant 1 : index
    %c0_117 = arith.constant 0 : index
    %c0_118 = arith.constant 0 : index
    %312 = vector.load %arg2[%c1_116, %c0_117, %c0_118] : memref<2x128x512xf32, #tpu.memory_space<vmem>>, vector<1x128x512xf32>
    %313 = vector.shape_cast %312 : vector<1x128x512xf32> to vector<128x512xf32>
    %cst_119 = arith.constant dense<0.000000e+00> : vector<1x512xf32>
    %314 = tpu.matmul %310, %313, %cst_119 {dimension_numbers = #tpu.dot_dimension_numbers<[1], [0], [0], [1], [0, 0, 1, 1], [], []>} : vector<1x128xf32>, vector<128x512xf32>, vector<1x512xf32> -> vector<1x512xf32>
    %c0_120 = arith.constant 0 : index
    %c0_121 = arith.constant 0 : index
    %315 = vector.load %arg6[%c0_120, %c0_121] : memref<8x512xf32, #tpu.memory_space<vmem>>, vector<1x512xf32>
    %316 = arith.addf %314, %315 : vector<1x512xf32>
    %317 = vector.extract_strided_slice %316 {offsets = [0, 0], sizes = [1, 128], strides = [1, 1]} : vector<1x512xf32> to vector<1x128xf32>
    %318 = arith.negf %317 : vector<1x128xf32>
    %319 = math.exp %318 : vector<1x128xf32>
    %cst_122 = arith.constant 1.000000e+00 : f32
    %320 = vector.broadcast %cst_122 : f32 to vector<1x128xf32>
    %321 = arith.addf %320, %319 : vector<1x128xf32>
    %322 = arith.divf %320, %321 : vector<1x128xf32>
    %323 = vector.extract_strided_slice %316 {offsets = [0, 128], sizes = [1, 128], strides = [1, 1]} : vector<1x512xf32> to vector<1x128xf32>
    %324 = arith.negf %323 : vector<1x128xf32>
    %325 = math.exp %324 : vector<1x128xf32>
    %cst_123 = arith.constant 1.000000e+00 : f32
    %326 = vector.broadcast %cst_123 : f32 to vector<1x128xf32>
    %327 = arith.addf %326, %325 : vector<1x128xf32>
    %328 = arith.divf %326, %327 : vector<1x128xf32>
    %329 = vector.extract_strided_slice %316 {offsets = [0, 256], sizes = [1, 128], strides = [1, 1]} : vector<1x512xf32> to vector<1x128xf32>
    %330 = math.tanh %329 : vector<1x128xf32>
    %331 = vector.extract_strided_slice %316 {offsets = [0, 384], sizes = [1, 128], strides = [1, 1]} : vector<1x512xf32> to vector<1x128xf32>
    %332 = arith.negf %331 : vector<1x128xf32>
    %333 = math.exp %332 : vector<1x128xf32>
    %cst_124 = arith.constant 1.000000e+00 : f32
    %334 = vector.broadcast %cst_124 : f32 to vector<1x128xf32>
    %335 = arith.addf %334, %333 : vector<1x128xf32>
    %336 = arith.divf %334, %335 : vector<1x128xf32>
    %337 = arith.mulf %328, %311 : vector<1x128xf32>
    %338 = arith.mulf %322, %330 : vector<1x128xf32>
    %339 = arith.addf %337, %338 : vector<1x128xf32>
    %340 = math.tanh %339 : vector<1x128xf32>
    %341 = arith.mulf %336, %340 : vector<1x128xf32>
    %c1_125 = arith.constant 1 : index
    %c0_126 = arith.constant 0 : index
    %c0_127 = arith.constant 0 : index
    %342 = vector.load %arg2[%c1_125, %c0_126, %c0_127] : memref<2x128x512xf32, #tpu.memory_space<vmem>>, vector<1x128x512xf32>
    %343 = vector.shape_cast %342 : vector<1x128x512xf32> to vector<128x512xf32>
    %cst_128 = arith.constant dense<0.000000e+00> : vector<1x512xf32>
    %344 = tpu.matmul %341, %343, %cst_128 {dimension_numbers = #tpu.dot_dimension_numbers<[1], [0], [0], [1], [0, 0, 1, 1], [], []>} : vector<1x128xf32>, vector<128x512xf32>, vector<1x512xf32> -> vector<1x512xf32>
    %c1_129 = arith.constant 1 : index
    %c0_130 = arith.constant 0 : index
    %345 = vector.load %arg6[%c1_129, %c0_130] : memref<8x512xf32, #tpu.memory_space<vmem>>, vector<1x512xf32>
    %346 = arith.addf %344, %345 : vector<1x512xf32>
    %347 = vector.extract_strided_slice %346 {offsets = [0, 0], sizes = [1, 128], strides = [1, 1]} : vector<1x512xf32> to vector<1x128xf32>
    %348 = arith.negf %347 : vector<1x128xf32>
    %349 = math.exp %348 : vector<1x128xf32>
    %cst_131 = arith.constant 1.000000e+00 : f32
    %350 = vector.broadcast %cst_131 : f32 to vector<1x128xf32>
    %351 = arith.addf %350, %349 : vector<1x128xf32>
    %352 = arith.divf %350, %351 : vector<1x128xf32>
    %353 = vector.extract_strided_slice %346 {offsets = [0, 128], sizes = [1, 128], strides = [1, 1]} : vector<1x512xf32> to vector<1x128xf32>
    %354 = arith.negf %353 : vector<1x128xf32>
    %355 = math.exp %354 : vector<1x128xf32>
    %cst_132 = arith.constant 1.000000e+00 : f32
    %356 = vector.broadcast %cst_132 : f32 to vector<1x128xf32>
    %357 = arith.addf %356, %355 : vector<1x128xf32>
    %358 = arith.divf %356, %357 : vector<1x128xf32>
    %359 = vector.extract_strided_slice %346 {offsets = [0, 256], sizes = [1, 128], strides = [1, 1]} : vector<1x512xf32> to vector<1x128xf32>
    %360 = math.tanh %359 : vector<1x128xf32>
    %361 = vector.extract_strided_slice %346 {offsets = [0, 384], sizes = [1, 128], strides = [1, 1]} : vector<1x512xf32> to vector<1x128xf32>
    %362 = arith.negf %361 : vector<1x128xf32>
    %363 = math.exp %362 : vector<1x128xf32>
    %cst_133 = arith.constant 1.000000e+00 : f32
    %364 = vector.broadcast %cst_133 : f32 to vector<1x128xf32>
    %365 = arith.addf %364, %363 : vector<1x128xf32>
    %366 = arith.divf %364, %365 : vector<1x128xf32>
    %367 = arith.mulf %358, %339 : vector<1x128xf32>
    %368 = arith.mulf %352, %360 : vector<1x128xf32>
    %369 = arith.addf %367, %368 : vector<1x128xf32>
    %370 = math.tanh %369 : vector<1x128xf32>
    %371 = arith.mulf %366, %370 : vector<1x128xf32>
    %c1_134 = arith.constant 1 : index
    %c0_135 = arith.constant 0 : index
    %c0_136 = arith.constant 0 : index
    %372 = vector.load %arg2[%c1_134, %c0_135, %c0_136] : memref<2x128x512xf32, #tpu.memory_space<vmem>>, vector<1x128x512xf32>
    %373 = vector.shape_cast %372 : vector<1x128x512xf32> to vector<128x512xf32>
    %cst_137 = arith.constant dense<0.000000e+00> : vector<1x512xf32>
    %374 = tpu.matmul %371, %373, %cst_137 {dimension_numbers = #tpu.dot_dimension_numbers<[1], [0], [0], [1], [0, 0, 1, 1], [], []>} : vector<1x128xf32>, vector<128x512xf32>, vector<1x512xf32> -> vector<1x512xf32>
    %c2_138 = arith.constant 2 : index
    %c0_139 = arith.constant 0 : index
    %375 = vector.load %arg6[%c2_138, %c0_139] : memref<8x512xf32, #tpu.memory_space<vmem>>, vector<1x512xf32>
    %376 = arith.addf %374, %375 : vector<1x512xf32>
    %377 = vector.extract_strided_slice %376 {offsets = [0, 0], sizes = [1, 128], strides = [1, 1]} : vector<1x512xf32> to vector<1x128xf32>
    %378 = arith.negf %377 : vector<1x128xf32>
    %379 = math.exp %378 : vector<1x128xf32>
    %cst_140 = arith.constant 1.000000e+00 : f32
    %380 = vector.broadcast %cst_140 : f32 to vector<1x128xf32>
    %381 = arith.addf %380, %379 : vector<1x128xf32>
    %382 = arith.divf %380, %381 : vector<1x128xf32>
    %383 = vector.extract_strided_slice %376 {offsets = [0, 128], sizes = [1, 128], strides = [1, 1]} : vector<1x512xf32> to vector<1x128xf32>
    %384 = arith.negf %383 : vector<1x128xf32>
    %385 = math.exp %384 : vector<1x128xf32>
    %cst_141 = arith.constant 1.000000e+00 : f32
    %386 = vector.broadcast %cst_141 : f32 to vector<1x128xf32>
    %387 = arith.addf %386, %385 : vector<1x128xf32>
    %388 = arith.divf %386, %387 : vector<1x128xf32>
    %389 = vector.extract_strided_slice %376 {offsets = [0, 256], sizes = [1, 128], strides = [1, 1]} : vector<1x512xf32> to vector<1x128xf32>
    %390 = math.tanh %389 : vector<1x128xf32>
    %391 = vector.extract_strided_slice %376 {offsets = [0, 384], sizes = [1, 128], strides = [1, 1]} : vector<1x512xf32> to vector<1x128xf32>
    %392 = arith.negf %391 : vector<1x128xf32>
    %393 = math.exp %392 : vector<1x128xf32>
    %cst_142 = arith.constant 1.000000e+00 : f32
    %394 = vector.broadcast %cst_142 : f32 to vector<1x128xf32>
    %395 = arith.addf %394, %393 : vector<1x128xf32>
    %396 = arith.divf %394, %395 : vector<1x128xf32>
    %397 = arith.mulf %388, %369 : vector<1x128xf32>
    %398 = arith.mulf %382, %390 : vector<1x128xf32>
    %399 = arith.addf %397, %398 : vector<1x128xf32>
    %400 = math.tanh %399 : vector<1x128xf32>
    %401 = arith.mulf %396, %400 : vector<1x128xf32>
    %c1_143 = arith.constant 1 : index
    %c0_144 = arith.constant 0 : index
    %c0_145 = arith.constant 0 : index
    %402 = vector.load %arg2[%c1_143, %c0_144, %c0_145] : memref<2x128x512xf32, #tpu.memory_space<vmem>>, vector<1x128x512xf32>
    %403 = vector.shape_cast %402 : vector<1x128x512xf32> to vector<128x512xf32>
    %cst_146 = arith.constant dense<0.000000e+00> : vector<1x512xf32>
    %404 = tpu.matmul %401, %403, %cst_146 {dimension_numbers = #tpu.dot_dimension_numbers<[1], [0], [0], [1], [0, 0, 1, 1], [], []>} : vector<1x128xf32>, vector<128x512xf32>, vector<1x512xf32> -> vector<1x512xf32>
    %c3_147 = arith.constant 3 : index
    %c0_148 = arith.constant 0 : index
    %405 = vector.load %arg6[%c3_147, %c0_148] : memref<8x512xf32, #tpu.memory_space<vmem>>, vector<1x512xf32>
    %406 = arith.addf %404, %405 : vector<1x512xf32>
    %407 = vector.extract_strided_slice %406 {offsets = [0, 0], sizes = [1, 128], strides = [1, 1]} : vector<1x512xf32> to vector<1x128xf32>
    %408 = arith.negf %407 : vector<1x128xf32>
    %409 = math.exp %408 : vector<1x128xf32>
    %cst_149 = arith.constant 1.000000e+00 : f32
    %410 = vector.broadcast %cst_149 : f32 to vector<1x128xf32>
    %411 = arith.addf %410, %409 : vector<1x128xf32>
    %412 = arith.divf %410, %411 : vector<1x128xf32>
    %413 = vector.extract_strided_slice %406 {offsets = [0, 128], sizes = [1, 128], strides = [1, 1]} : vector<1x512xf32> to vector<1x128xf32>
    %414 = arith.negf %413 : vector<1x128xf32>
    %415 = math.exp %414 : vector<1x128xf32>
    %cst_150 = arith.constant 1.000000e+00 : f32
    %416 = vector.broadcast %cst_150 : f32 to vector<1x128xf32>
    %417 = arith.addf %416, %415 : vector<1x128xf32>
    %418 = arith.divf %416, %417 : vector<1x128xf32>
    %419 = vector.extract_strided_slice %406 {offsets = [0, 256], sizes = [1, 128], strides = [1, 1]} : vector<1x512xf32> to vector<1x128xf32>
    %420 = math.tanh %419 : vector<1x128xf32>
    %421 = vector.extract_strided_slice %406 {offsets = [0, 384], sizes = [1, 128], strides = [1, 1]} : vector<1x512xf32> to vector<1x128xf32>
    %422 = arith.negf %421 : vector<1x128xf32>
    %423 = math.exp %422 : vector<1x128xf32>
    %cst_151 = arith.constant 1.000000e+00 : f32
    %424 = vector.broadcast %cst_151 : f32 to vector<1x128xf32>
    %425 = arith.addf %424, %423 : vector<1x128xf32>
    %426 = arith.divf %424, %425 : vector<1x128xf32>
    %427 = arith.mulf %418, %399 : vector<1x128xf32>
    %428 = arith.mulf %412, %420 : vector<1x128xf32>
    %429 = arith.addf %427, %428 : vector<1x128xf32>
    %430 = math.tanh %429 : vector<1x128xf32>
    %431 = arith.mulf %426, %430 : vector<1x128xf32>
    %c1_152 = arith.constant 1 : index
    %c0_153 = arith.constant 0 : index
    %c0_154 = arith.constant 0 : index
    %432 = vector.load %arg2[%c1_152, %c0_153, %c0_154] : memref<2x128x512xf32, #tpu.memory_space<vmem>>, vector<1x128x512xf32>
    %433 = vector.shape_cast %432 : vector<1x128x512xf32> to vector<128x512xf32>
    %cst_155 = arith.constant dense<0.000000e+00> : vector<1x512xf32>
    %434 = tpu.matmul %431, %433, %cst_155 {dimension_numbers = #tpu.dot_dimension_numbers<[1], [0], [0], [1], [0, 0, 1, 1], [], []>} : vector<1x128xf32>, vector<128x512xf32>, vector<1x512xf32> -> vector<1x512xf32>
    %c4_156 = arith.constant 4 : index
    %c0_157 = arith.constant 0 : index
    %435 = vector.load %arg6[%c4_156, %c0_157] : memref<8x512xf32, #tpu.memory_space<vmem>>, vector<1x512xf32>
    %436 = arith.addf %434, %435 : vector<1x512xf32>
    %437 = vector.extract_strided_slice %436 {offsets = [0, 0], sizes = [1, 128], strides = [1, 1]} : vector<1x512xf32> to vector<1x128xf32>
    %438 = arith.negf %437 : vector<1x128xf32>
    %439 = math.exp %438 : vector<1x128xf32>
    %cst_158 = arith.constant 1.000000e+00 : f32
    %440 = vector.broadcast %cst_158 : f32 to vector<1x128xf32>
    %441 = arith.addf %440, %439 : vector<1x128xf32>
    %442 = arith.divf %440, %441 : vector<1x128xf32>
    %443 = vector.extract_strided_slice %436 {offsets = [0, 128], sizes = [1, 128], strides = [1, 1]} : vector<1x512xf32> to vector<1x128xf32>
    %444 = arith.negf %443 : vector<1x128xf32>
    %445 = math.exp %444 : vector<1x128xf32>
    %cst_159 = arith.constant 1.000000e+00 : f32
    %446 = vector.broadcast %cst_159 : f32 to vector<1x128xf32>
    %447 = arith.addf %446, %445 : vector<1x128xf32>
    %448 = arith.divf %446, %447 : vector<1x128xf32>
    %449 = vector.extract_strided_slice %436 {offsets = [0, 256], sizes = [1, 128], strides = [1, 1]} : vector<1x512xf32> to vector<1x128xf32>
    %450 = math.tanh %449 : vector<1x128xf32>
    %451 = vector.extract_strided_slice %436 {offsets = [0, 384], sizes = [1, 128], strides = [1, 1]} : vector<1x512xf32> to vector<1x128xf32>
    %452 = arith.negf %451 : vector<1x128xf32>
    %453 = math.exp %452 : vector<1x128xf32>
    %cst_160 = arith.constant 1.000000e+00 : f32
    %454 = vector.broadcast %cst_160 : f32 to vector<1x128xf32>
    %455 = arith.addf %454, %453 : vector<1x128xf32>
    %456 = arith.divf %454, %455 : vector<1x128xf32>
    %457 = arith.mulf %448, %429 : vector<1x128xf32>
    %458 = arith.mulf %442, %450 : vector<1x128xf32>
    %459 = arith.addf %457, %458 : vector<1x128xf32>
    %460 = math.tanh %459 : vector<1x128xf32>
    %461 = arith.mulf %456, %460 : vector<1x128xf32>
    %c1_161 = arith.constant 1 : index
    %c0_162 = arith.constant 0 : index
    %c0_163 = arith.constant 0 : index
    %462 = vector.load %arg2[%c1_161, %c0_162, %c0_163] : memref<2x128x512xf32, #tpu.memory_space<vmem>>, vector<1x128x512xf32>
    %463 = vector.shape_cast %462 : vector<1x128x512xf32> to vector<128x512xf32>
    %cst_164 = arith.constant dense<0.000000e+00> : vector<1x512xf32>
    %464 = tpu.matmul %461, %463, %cst_164 {dimension_numbers = #tpu.dot_dimension_numbers<[1], [0], [0], [1], [0, 0, 1, 1], [], []>} : vector<1x128xf32>, vector<128x512xf32>, vector<1x512xf32> -> vector<1x512xf32>
    %c5_165 = arith.constant 5 : index
    %c0_166 = arith.constant 0 : index
    %465 = vector.load %arg6[%c5_165, %c0_166] : memref<8x512xf32, #tpu.memory_space<vmem>>, vector<1x512xf32>
    %466 = arith.addf %464, %465 : vector<1x512xf32>
    %467 = vector.extract_strided_slice %466 {offsets = [0, 0], sizes = [1, 128], strides = [1, 1]} : vector<1x512xf32> to vector<1x128xf32>
    %468 = arith.negf %467 : vector<1x128xf32>
    %469 = math.exp %468 : vector<1x128xf32>
    %cst_167 = arith.constant 1.000000e+00 : f32
    %470 = vector.broadcast %cst_167 : f32 to vector<1x128xf32>
    %471 = arith.addf %470, %469 : vector<1x128xf32>
    %472 = arith.divf %470, %471 : vector<1x128xf32>
    %473 = vector.extract_strided_slice %466 {offsets = [0, 128], sizes = [1, 128], strides = [1, 1]} : vector<1x512xf32> to vector<1x128xf32>
    %474 = arith.negf %473 : vector<1x128xf32>
    %475 = math.exp %474 : vector<1x128xf32>
    %cst_168 = arith.constant 1.000000e+00 : f32
    %476 = vector.broadcast %cst_168 : f32 to vector<1x128xf32>
    %477 = arith.addf %476, %475 : vector<1x128xf32>
    %478 = arith.divf %476, %477 : vector<1x128xf32>
    %479 = vector.extract_strided_slice %466 {offsets = [0, 256], sizes = [1, 128], strides = [1, 1]} : vector<1x512xf32> to vector<1x128xf32>
    %480 = math.tanh %479 : vector<1x128xf32>
    %481 = vector.extract_strided_slice %466 {offsets = [0, 384], sizes = [1, 128], strides = [1, 1]} : vector<1x512xf32> to vector<1x128xf32>
    %482 = arith.negf %481 : vector<1x128xf32>
    %483 = math.exp %482 : vector<1x128xf32>
    %cst_169 = arith.constant 1.000000e+00 : f32
    %484 = vector.broadcast %cst_169 : f32 to vector<1x128xf32>
    %485 = arith.addf %484, %483 : vector<1x128xf32>
    %486 = arith.divf %484, %485 : vector<1x128xf32>
    %487 = arith.mulf %478, %459 : vector<1x128xf32>
    %488 = arith.mulf %472, %480 : vector<1x128xf32>
    %489 = arith.addf %487, %488 : vector<1x128xf32>
    %490 = math.tanh %489 : vector<1x128xf32>
    %491 = arith.mulf %486, %490 : vector<1x128xf32>
    %c1_170 = arith.constant 1 : index
    %c0_171 = arith.constant 0 : index
    %c0_172 = arith.constant 0 : index
    %492 = vector.load %arg2[%c1_170, %c0_171, %c0_172] : memref<2x128x512xf32, #tpu.memory_space<vmem>>, vector<1x128x512xf32>
    %493 = vector.shape_cast %492 : vector<1x128x512xf32> to vector<128x512xf32>
    %cst_173 = arith.constant dense<0.000000e+00> : vector<1x512xf32>
    %494 = tpu.matmul %491, %493, %cst_173 {dimension_numbers = #tpu.dot_dimension_numbers<[1], [0], [0], [1], [0, 0, 1, 1], [], []>} : vector<1x128xf32>, vector<128x512xf32>, vector<1x512xf32> -> vector<1x512xf32>
    %c6_174 = arith.constant 6 : index
    %c0_175 = arith.constant 0 : index
    %495 = vector.load %arg6[%c6_174, %c0_175] : memref<8x512xf32, #tpu.memory_space<vmem>>, vector<1x512xf32>
    %496 = arith.addf %494, %495 : vector<1x512xf32>
    %497 = vector.extract_strided_slice %496 {offsets = [0, 0], sizes = [1, 128], strides = [1, 1]} : vector<1x512xf32> to vector<1x128xf32>
    %498 = arith.negf %497 : vector<1x128xf32>
    %499 = math.exp %498 : vector<1x128xf32>
    %cst_176 = arith.constant 1.000000e+00 : f32
    %500 = vector.broadcast %cst_176 : f32 to vector<1x128xf32>
    %501 = arith.addf %500, %499 : vector<1x128xf32>
    %502 = arith.divf %500, %501 : vector<1x128xf32>
    %503 = vector.extract_strided_slice %496 {offsets = [0, 128], sizes = [1, 128], strides = [1, 1]} : vector<1x512xf32> to vector<1x128xf32>
    %504 = arith.negf %503 : vector<1x128xf32>
    %505 = math.exp %504 : vector<1x128xf32>
    %cst_177 = arith.constant 1.000000e+00 : f32
    %506 = vector.broadcast %cst_177 : f32 to vector<1x128xf32>
    %507 = arith.addf %506, %505 : vector<1x128xf32>
    %508 = arith.divf %506, %507 : vector<1x128xf32>
    %509 = vector.extract_strided_slice %496 {offsets = [0, 256], sizes = [1, 128], strides = [1, 1]} : vector<1x512xf32> to vector<1x128xf32>
    %510 = math.tanh %509 : vector<1x128xf32>
    %511 = vector.extract_strided_slice %496 {offsets = [0, 384], sizes = [1, 128], strides = [1, 1]} : vector<1x512xf32> to vector<1x128xf32>
    %512 = arith.negf %511 : vector<1x128xf32>
    %513 = math.exp %512 : vector<1x128xf32>
    %cst_178 = arith.constant 1.000000e+00 : f32
    %514 = vector.broadcast %cst_178 : f32 to vector<1x128xf32>
    %515 = arith.addf %514, %513 : vector<1x128xf32>
    %516 = arith.divf %514, %515 : vector<1x128xf32>
    %517 = arith.mulf %508, %489 : vector<1x128xf32>
    %518 = arith.mulf %502, %510 : vector<1x128xf32>
    %519 = arith.addf %517, %518 : vector<1x128xf32>
    %520 = math.tanh %519 : vector<1x128xf32>
    %521 = arith.mulf %516, %520 : vector<1x128xf32>
    %c1_179 = arith.constant 1 : index
    %c0_180 = arith.constant 0 : index
    %c0_181 = arith.constant 0 : index
    %522 = vector.load %arg2[%c1_179, %c0_180, %c0_181] : memref<2x128x512xf32, #tpu.memory_space<vmem>>, vector<1x128x512xf32>
    %523 = vector.shape_cast %522 : vector<1x128x512xf32> to vector<128x512xf32>
    %cst_182 = arith.constant dense<0.000000e+00> : vector<1x512xf32>
    %524 = tpu.matmul %521, %523, %cst_182 {dimension_numbers = #tpu.dot_dimension_numbers<[1], [0], [0], [1], [0, 0, 1, 1], [], []>} : vector<1x128xf32>, vector<128x512xf32>, vector<1x512xf32> -> vector<1x512xf32>
    %c7_183 = arith.constant 7 : index
    %c0_184 = arith.constant 0 : index
    %525 = vector.load %arg6[%c7_183, %c0_184] : memref<8x512xf32, #tpu.memory_space<vmem>>, vector<1x512xf32>
    %526 = arith.addf %524, %525 : vector<1x512xf32>
    %527 = vector.extract_strided_slice %526 {offsets = [0, 0], sizes = [1, 128], strides = [1, 1]} : vector<1x512xf32> to vector<1x128xf32>
    %528 = arith.negf %527 : vector<1x128xf32>
    %529 = math.exp %528 : vector<1x128xf32>
    %cst_185 = arith.constant 1.000000e+00 : f32
    %530 = vector.broadcast %cst_185 : f32 to vector<1x128xf32>
    %531 = arith.addf %530, %529 : vector<1x128xf32>
    %532 = arith.divf %530, %531 : vector<1x128xf32>
    %533 = vector.extract_strided_slice %526 {offsets = [0, 128], sizes = [1, 128], strides = [1, 1]} : vector<1x512xf32> to vector<1x128xf32>
    %534 = arith.negf %533 : vector<1x128xf32>
    %535 = math.exp %534 : vector<1x128xf32>
    %cst_186 = arith.constant 1.000000e+00 : f32
    %536 = vector.broadcast %cst_186 : f32 to vector<1x128xf32>
    %537 = arith.addf %536, %535 : vector<1x128xf32>
    %538 = arith.divf %536, %537 : vector<1x128xf32>
    %539 = vector.extract_strided_slice %526 {offsets = [0, 256], sizes = [1, 128], strides = [1, 1]} : vector<1x512xf32> to vector<1x128xf32>
    %540 = math.tanh %539 : vector<1x128xf32>
    %541 = vector.extract_strided_slice %526 {offsets = [0, 384], sizes = [1, 128], strides = [1, 1]} : vector<1x512xf32> to vector<1x128xf32>
    %542 = arith.negf %541 : vector<1x128xf32>
    %543 = math.exp %542 : vector<1x128xf32>
    %cst_187 = arith.constant 1.000000e+00 : f32
    %544 = vector.broadcast %cst_187 : f32 to vector<1x128xf32>
    %545 = arith.addf %544, %543 : vector<1x128xf32>
    %546 = arith.divf %544, %545 : vector<1x128xf32>
    %547 = arith.mulf %538, %519 : vector<1x128xf32>
    %548 = arith.mulf %532, %540 : vector<1x128xf32>
    %549 = arith.addf %547, %548 : vector<1x128xf32>
    %550 = math.tanh %549 : vector<1x128xf32>
    %551 = arith.mulf %546, %550 : vector<1x128xf32>
    %552 = math.tanh %551 : vector<1x128xf32>
    %c0_188 = arith.constant 0 : index
    %c0_189 = arith.constant 0 : index
    %553 = vector.load %arg4[%c0_188, %c0_189] : memref<1x128xf32, #tpu.memory_space<vmem>>, vector<1x128xf32>
    tpu.vector_store %arg4[%c0_188, %c0_189], %552 {strides = array<i32>} : memref<1x128xf32, #tpu.memory_space<vmem>>, vector<1x128xf32>,
    return
  }
}

</mosaic_0001>

<llo_original>
// kernel: tpu_custom_call.1
$region0: #{tpu_custom_call.1}
  #allocation0 [shape = 'u32[]', space=smem, size = 0x4, offset = 0x4, fixed_abs, tag = 'smem constant byte address 0x4 - core index']
  #allocation1 [shape = 'u32[144,128]{1,0:T(1,128)}', space=vmem, size = 0x12000, scoped, tag = 'internal scratch']
  #allocation2 [shape = 'f32[8,128]{1,0:T(8,128)}', space=vmem, size = 0x1000, scoped, tag = 'scratch operand']
  #allocation3 [shape = 'f32[8,512]{1,0:T(8,128)}', space=vmem, size = 0x4000, scoped, tag = 'scratch operand']
  %s0 = inlined_call_operand.hbm [shape: f32[8,128], index: 0, kind: input, shape index: {}]
  %s1 = inlined_call_operand.hbm [shape: f32[2,128,512], index: 1, kind: input, shape index: {}]
  %s2 = inlined_call_operand.hbm [shape: f32[2,128,512], index: 2, kind: input, shape index: {}]
  %s3 = inlined_call_operand.hbm [shape: f32[2,1,512], index: 3, kind: input, shape index: {}]
  %s4 = inlined_call_operand.hbm [shape: f32[1,128], index: 4, kind: output, shape index: {}]
  %s5 = sld [smem:[#allocation0]]
  $region42: #{tpu_custom_call.1} parent=0
    _
  %s7 = ssub.s32 1, %s5
  %s8 = scalar_select 0, %s7, %s5
  $region1: #{tpu_custom_call.1} parent=0
    #allocation4 [shape = 'u8[4096]{0}', space=vmem, size = 0x1000, scoped, tag = 'input window, operand 0, single buffered']
    #allocation5 [shape = 's32[1]{0}', space=sflag, size = 0x4, scoped, tag = 'scoped memory for tpu_custom_call.1']
    #allocation6 [shape = 's32[1]{0}', space=sflag, size = 0x4, scoped, tag = 'scoped memory for tpu_custom_call.1']
    #allocation7 [shape = 'u8[524288]{0}', space=vmem, size = 0x80000, scoped, tag = 'input window, operand 1, single buffered']
    #allocation8 [shape = 's32[1]{0}', space=sflag, size = 0x4, scoped, tag = 'scoped memory for tpu_custom_call.1']
    #allocation9 [shape = 'u8[524288]{0}', space=vmem, size = 0x80000, scoped, tag = 'input window, operand 2, single buffered']
    #allocation10 [shape = 'u8[4096]{0}', space=vmem, size = 0x1000, scoped, tag = 'input window, operand 3, single buffered']
    #allocation11 [shape = 's32[1]{0}', space=sflag, size = 0x4, scoped, tag = 'scoped memory for tpu_custom_call.1']
    #allocation12 [shape = 'u8[512]{0}', space=vmem, size = 0x400, scoped, tag = 'output window, operand 0, single buffered']
    %9 = vsyncpa [#allocation5], 0
    %10 = vsyncpa [#allocation8], 0
    %11 = vsyncpa [#allocation11], 0
    %12 = vsyncpa [#allocation6], 0
    // Predicated region
    $region2: #{tpu_custom_call.1} parent=1 // pred_check
      _
    $region3: #{tpu_custom_call.1} parent=1 // pred_check_branch
      %14 = sbr.rel (0) target = $region5
    $region4: #{tpu_custom_call.1} parent=1 // pred_region
      %s16 = ssub.s32 128, 128
      %17 = vsyncadd [#allocation5], %s16
      %s19 = sshll.u32 [#allocation4], 4
      %s20 = int_to_ptr.vmem [resolvable:$true] %s19
      %22 = dma.hbm_to_vmem [thread:$0]  %s0, 128, %s20, [#allocation5]
    $region5: #{tpu_custom_call.1} parent=1 // pred_fallthru
      _
    // Predicated region
    $region6: #{tpu_custom_call.1} parent=1 // pred_check
      _
    $region7: #{tpu_custom_call.1} parent=1 // pred_check_branch
      %24 = sbr.rel (0) target = $region9
    $region8: #{tpu_custom_call.1} parent=1 // pred_region
      %s26 = ssub.s32 16384, 16384
      %27 = vsyncadd [#allocation8], %s26
      %s28 = sshll.u32 [#allocation7], 4
      %s29 = int_to_ptr.vmem [resolvable:$true] %s28
      %34 = dma.hbm_to_vmem [thread:$0]  %s1, 16384, %s29, [#allocation8], 512, 512, 32
    $region9: #{tpu_custom_call.1} parent=1 // pred_fallthru
      _
    // Predicated region
    $region10: #{tpu_custom_call.1} parent=1 // pred_check
      _
    $region11: #{tpu_custom_call.1} parent=1 // pred_check_branch
      %36 = sbr.rel (0) target = $region13
    $region12: #{tpu_custom_call.1} parent=1 // pred_region
      %s38 = ssub.s32 16384, 16384
      %39 = vsyncadd [#allocation8], %s38
      %s40 = sshll.u32 [#allocation9], 4
      %s41 = int_to_ptr.vmem [resolvable:$true] %s40
      %46 = dma.hbm_to_vmem [thread:$0]  %s2, 16384, %s41, [#allocation8], 512, 512, 32
    $region13: #{tpu_custom_call.1} parent=1 // pred_fallthru
      _
    // Predicated region
    $region14: #{tpu_custom_call.1} parent=1 // pred_check
      _
    $region15: #{tpu_custom_call.1} parent=1 // pred_check_branch
      %48 = sbr.rel (0) target = $region17
    $region16: #{tpu_custom_call.1} parent=1 // pred_region
      %s50 = ssub.s32 128, 128
      %51 = vsyncadd [#allocation11], %s50
      %s52 = sshll.u32 [#allocation10], 4
      %s53 = int_to_ptr.vmem [resolvable:$true] %s52
      %58 = dma.hbm_to_vmem [thread:$0]  %s3, 128, %s53, [#allocation11], 64, 64, 4
    $region17: #{tpu_custom_call.1} parent=1 // pred_fallthru
      _
    // Predicated region
    $region18: #{tpu_custom_call.1} parent=1 // pred_check
      _
    $region19: #{tpu_custom_call.1} parent=1 // pred_check_branch
      %60 = sbr.rel (0) target = $region21
    $region20: #{tpu_custom_call.1} parent=1 // pred_region
      %61 = dma.done [#allocation5], 128
    $region21: #{tpu_custom_call.1} parent=1 // pred_fallthru
      _
    // Predicated region
    $region22: #{tpu_custom_call.1} parent=1 // pred_check
      _
    $region23: #{tpu_custom_call.1} parent=1 // pred_check_branch
      %63 = sbr.rel (0) target = $region25
    $region24: #{tpu_custom_call.1} parent=1 // pred_region
      %64 = dma.done [#allocation8], 16384
    $region25: #{tpu_custom_call.1} parent=1 // pred_fallthru
      _
    // Predicated region
    $region26: #{tpu_custom_call.1} parent=1 // pred_check
      _
    $region27: #{tpu_custom_call.1} parent=1 // pred_check_branch
      %66 = sbr.rel (0) target = $region29
    $region28: #{tpu_custom_call.1} parent=1 // pred_region
      %67 = dma.done [#allocation8], 16384
    $region29: #{tpu_custom_call.1} parent=1 // pred_fallthru
      _
    // Predicated region
    $region30: #{tpu_custom_call.1} parent=1 // pred_check
      _
    $region31: #{tpu_custom_call.1} parent=1 // pred_check_branch
      %69 = sbr.rel (0) target = $region33
    $region32: #{tpu_custom_call.1} parent=1 // pred_region
      %70 = dma.done [#allocation11], 128
    $region33: #{tpu_custom_call.1} parent=1 // pred_fallthru
      _
    %71 = vst [vmem:[#allocation2] sm:$0xff] 0.0
    %v72 = vld [vmem:[#allocation4] sm:$0xff]
    %v73 = vld [vmem:[#allocation7] sm:$0xff]
    %v74 = vld [vmem:[#allocation7 + $0x8] sm:$0xff]
    %v75 = vld [vmem:[#allocation7 + $0x10] sm:$0xff]
    %v76 = vld [vmem:[#allocation7 + $0x18] sm:$0xff]
    %v77 = vld [vmem:[#allocation7 + $0x20] sm:$0xff]
    %v78 = vld [vmem:[#allocation7 + $0x28] sm:$0xff]
    %v79 = vld [vmem:[#allocation7 + $0x30] sm:$0xff]
    %v80 = vld [vmem:[#allocation7 + $0x38] sm:$0xff]
    %v81 = vld [vmem:[#allocation7 + $0x40] sm:$0xff]
    %v82 = vld [vmem:[#allocation7 + $0x48] sm:$0xff]
    %v83 = vld [vmem:[#allocation7 + $0x50] sm:$0xff]
    %v84 = vld [vmem:[#allocation7 + $0x58] sm:$0xff]
    %v85 = vld [vmem:[#allocation7 + $0x60] sm:$0xff]
    %v86 = vld [vmem:[#allocation7 + $0x68] sm:$0xff]
    %v87 = vld [vmem:[#allocation7 + $0x70] sm:$0xff]
    %v88 = vld [vmem:[#allocation7 + $0x78] sm:$0xff]
    %v89 = vld [vmem:[#allocation7 + $0x80] sm:$0xff]
    %v90 = vld [vmem:[#allocation7 + $0x88] sm:$0xff]
    %v91 = vld [vmem:[#allocation7 + $0x90] sm:$0xff]
    %v92 = vld [vmem:[#allocation7 + $0x98] sm:$0xff]
    %v93 = vld [vmem:[#allocation7 + $0xa0] sm:$0xff]
    %v94 = vld [vmem:[#allocation7 + $0xa8] sm:$0xff]
    %v95 = vld [vmem:[#allocation7 + $0xb0] sm:$0xff]
    %v96 = vld [vmem:[#allocation7 + $0xb8] sm:$0xff]
    %v97 = vld [vmem:[#allocation7 + $0xc0] sm:$0xff]
    %v98 = vld [vmem:[#allocation7 + $0xc8] sm:$0xff]
    %v99 = vld [vmem:[#allocation7 + $0xd0] sm:$0xff]
    %v100 = vld [vmem:[#allocation7 + $0xd8] sm:$0xff]
    %v101 = vld [vmem:[#allocation7 + $0xe0] sm:$0xff]
    %v102 = vld [vmem:[#allocation7 + $0xe8] sm:$0xff]
    %v103 = vld [vmem:[#allocation7 + $0xf0] sm:$0xff]
    %v104 = vld [vmem:[#allocation7 + $0xf8] sm:$0xff]
    %v105 = vld [vmem:[#allocation7 + $0x100] sm:$0xff]
    %v106 = vld [vmem:[#allocation7 + $0x108] sm:$0xff]
    %v107 = vld [vmem:[#allocation7 + $0x110] sm:$0xff]
    %v108 = vld [vmem:[#allocation7 + $0x118] sm:$0xff]
    %v109 = vld [vmem:[#allocation7 + $0x120] sm:$0xff]
    %v110 = vld [vmem:[#allocation7 + $0x128] sm:$0xff]
    %v111 = vld [vmem:[#allocation7 + $0x130] sm:$0xff]
    %v112 = vld [vmem:[#allocation7 + $0x138] sm:$0xff]
    %v113 = vld [vmem:[#allocation7 + $0x140] sm:$0xff]
    %v114 = vld [vmem:[#allocation7 + $0x148] sm:$0xff]
    %v115 = vld [vmem:[#allocation7 + $0x150] sm:$0xff]
    %v116 = vld [vmem:[#allocation7 + $0x158] sm:$0xff]
    %v117 = vld [vmem:[#allocation7 + $0x160] sm:$0xff]
    %v118 = vld [vmem:[#allocation7 + $0x168] sm:$0xff]
    %v119 = vld [vmem:[#allocation7 + $0x170] sm:$0xff]
    %v120 = vld [vmem:[#allocation7 + $0x178] sm:$0xff]
    %v121 = vld [vmem:[#allocation7 + $0x180] sm:$0xff]
    %v122 = vld [vmem:[#allocation7 + $0x188] sm:$0xff]
    %v123 = vld [vmem:[#allocation7 + $0x190] sm:$0xff]
    %v124 = vld [vmem:[#allocation7 + $0x198] sm:$0xff]
    %v125 = vld [vmem:[#allocation7 + $0x1a0] sm:$0xff]
    %v126 = vld [vmem:[#allocation7 + $0x1a8] sm:$0xff]
    %v127 = vld [vmem:[#allocation7 + $0x1b0] sm:$0xff]
    %v128 = vld [vmem:[#allocation7 + $0x1b8] sm:$0xff]
    %v129 = vld [vmem:[#allocation7 + $0x1c0] sm:$0xff]
    %v130 = vld [vmem:[#allocation7 + $0x1c8] sm:$0xff]
    %v131 = vld [vmem:[#allocation7 + $0x1d0] sm:$0xff]
    %v132 = vld [vmem:[#allocation7 + $0x1d8] sm:$0xff]
    %v133 = vld [vmem:[#allocation7 + $0x1e0] sm:$0xff]
    %v134 = vld [vmem:[#allocation7 + $0x1e8] sm:$0xff]
    %v135 = vld [vmem:[#allocation7 + $0x1f0] sm:$0xff]
    %v136 = vld [vmem:[#allocation7 + $0x1f8] sm:$0xff]
    %v137 = vld [vmem:[#allocation10] sm:$0xf]
    %v139 = vlaneseq
    %v140 = vshrl.u32 %v139, 7
    %v141 = vsub.s32 0, %v140
    %v142 = vrot.slane %v137, %v141
    %v143 = vlaneseq
    %v144 = vshrl.u32 %v143, 7
    %v145 = vsub.s32 1, %v144
    %v146 = vrot.slane %v137, %v145
    %v147 = vlaneseq
    %v148 = vshrl.u32 %v147, 7
    %v149 = vsub.s32 2, %v148
    %v150 = vrot.slane %v137, %v149
    %v151 = vlaneseq
    %v152 = vshrl.u32 %v151, 7
    %v153 = vsub.s32 3, %v152
    %v154 = vrot.slane %v137, %v153
    %159 = vmatprep.subr.mxu0 %v134
    %160 = vmatpush1.msra.mxu0 %v133
    %161 = vmatprep.subr.mxu0 %v130
    %162 = vmatpush1.msra.mxu0 %v129
    %163 = vmatprep.subr.mxu0 %v126
    %164 = vmatpush1.msra.mxu0 %v125
    %165 = vmatprep.subr.mxu0 %v122
    %166 = vmatpush1.msra.mxu0 %v121
    %167 = vmatprep.subr.mxu0 %v118
    %168 = vmatpush1.msra.mxu0 %v117
    %169 = vmatprep.subr.mxu0 %v114
    %170 = vmatpush1.msra.mxu0 %v113
    %171 = vmatprep.subr.mxu0 %v110
    %172 = vmatpush1.msra.mxu0 %v109
    %173 = vmatprep.subr.mxu0 %v106
    %174 = vmatpush1.msra.mxu0 %v105
    %175 = vmatprep.subr.mxu0 %v102
    %176 = vmatpush1.msra.mxu0 %v101
    %177 = vmatprep.subr.mxu0 %v98
    %178 = vmatpush1.msra.mxu0 %v97
    %179 = vmatprep.subr.mxu0 %v94
    %180 = vmatpush1.msra.mxu0 %v93
    %181 = vmatprep.subr.mxu0 %v90
    %182 = vmatpush1.msra.mxu0 %v89
    %183 = vmatprep.subr.mxu0 %v86
    %184 = vmatpush1.msra.mxu0 %v85
    %185 = vmatprep.subr.mxu0 %v82
    %186 = vmatpush1.msra.mxu0 %v81
    %187 = vmatprep.subr.mxu0 %v78
    %188 = vmatpush1.msra.mxu0 %v77
    %189 = vmatprep.subr.mxu0 %v74
    %190 = vmatpush1.msra.mxu0 %v73
    %191 = vmatprep.subr.mxu0 0.0
    %192 = vmatpush2.msra.mxu0 0.0
    %193 = vmatprep.subr.mxu0 0.0
    %194 = vmatpush2.msra.mxu0 0.0
    %195 = vmatprep.subr.mxu0 0.0
    %196 = vmatpush2.msra.mxu0 0.0
    %197 = vmatprep.subr.mxu0 0.0
    %198 = vmatpush2.msra.mxu0 0.0
    %199 = vmatprep.subr.mxu0 0.0
    %200 = vmatpush2.msra.mxu0 0.0
    %201 = vmatprep.subr.mxu0 0.0
    %202 = vmatpush2.msra.mxu0 0.0
    %203 = vmatprep.subr.mxu0 0.0
    %204 = vmatpush2.msra.mxu0 0.0
    %205 = vmatprep.subr.mxu0 0.0
    %206 = vmatpush2.msra.mxu0 0.0
    %207 = vmatprep.subr.mxu0 0.0
    %208 = vmatpush2.msra.mxu0 0.0
    %209 = vmatprep.subr.mxu0 0.0
    %210 = vmatpush2.msra.mxu0 0.0
    %211 = vmatprep.subr.mxu0 0.0
    %212 = vmatpush2.msra.mxu0 0.0
    %213 = vmatprep.subr.mxu0 0.0
    %214 = vmatpush2.msra.mxu0 0.0
    %215 = vmatprep.subr.mxu0 0.0
    %216 = vmatpush2.msra.mxu0 0.0
    %217 = vmatprep.subr.mxu0 0.0
    %218 = vmatpush2.msra.mxu0 0.0
    %219 = vmatprep.subr.mxu0 0.0
    %220 = vmatpush2.msra.mxu0 0.0
    %221 = vmatprep.subr.mxu0 0.0
    %222 = vmatpush2.msra.mxu0 0.0
    %223 = vmatprep.mubr.f32.mxu0 0.0
    %224 = vmatmul.mubr.f32.gmra.mxu0 %v72
    %v225 = vpop.f32.mrf.mxu0
    %v226 = vadd.f32 %v142, %v225
    %v227 = vpop.f32.mrf.mxu0
    %v228 = vadd.f32 %v146, %v227
    %229 = vdwg.mxu0
    %230 = vmatprep.subr.mxu0 %v136
    %231 = vmatpush1.msra.mxu0 %v135
    %232 = vmatprep.subr.mxu0 %v132
    %233 = vmatpush1.msra.mxu0 %v131
    %234 = vmatprep.subr.mxu0 %v128
    %235 = vmatpush1.msra.mxu0 %v127
    %236 = vmatprep.subr.mxu0 %v124
    %237 = vmatpush1.msra.mxu0 %v123
    %238 = vmatprep.subr.mxu0 %v120
    %239 = vmatpush1.msra.mxu0 %v119
    %240 = vmatprep.subr.mxu0 %v116
    %241 = vmatpush1.msra.mxu0 %v115
    %242 = vmatprep.subr.mxu0 %v112
    %243 = vmatpush1.msra.mxu0 %v111
    %244 = vmatprep.subr.mxu0 %v108
    %245 = vmatpush1.msra.mxu0 %v107
    %246 = vmatprep.subr.mxu0 %v104
    %247 = vmatpush1.msra.mxu0 %v103
    %248 = vmatprep.subr.mxu0 %v100
    %249 = vmatpush1.msra.mxu0 %v99
    %250 = vmatprep.subr.mxu0 %v96
    %251 = vmatpush1.msra.mxu0 %v95
    %252 = vmatprep.subr.mxu0 %v92
    %253 = vmatpush1.msra.mxu0 %v91
    %254 = vmatprep.subr.mxu0 %v88
    %255 = vmatpush1.msra.mxu0 %v87
    %256 = vmatprep.subr.mxu0 %v84
    %257 = vmatpush1.msra.mxu0 %v83
    %258 = vmatprep.subr.mxu0 %v80
    %259 = vmatpush1.msra.mxu0 %v79
    %260 = vmatprep.subr.mxu0 %v76
    %261 = vmatpush1.msra.mxu0 %v75
    %262 = vmatprep.subr.mxu0 0.0
    %263 = vmatpush2.msra.mxu0 0.0
    %264 = vmatprep.subr.mxu0 0.0
    %265 = vmatpush2.msra.mxu0 0.0
    %266 = vmatprep.subr.mxu0 0.0
    %267 = vmatpush2.msra.mxu0 0.0
    %268 = vmatprep.subr.mxu0 0.0
    %269 = vmatpush2.msra.mxu0 0.0
    %270 = vmatprep.subr.mxu0 0.0
    %271 = vmatpush2.msra.mxu0 0.0
    %272 = vmatprep.subr.mxu0 0.0
    %273 = vmatpush2.msra.mxu0 0.0
    %274 = vmatprep.subr.mxu0 0.0
    %275 = vmatpush2.msra.mxu0 0.0
    %276 = vmatprep.subr.mxu0 0.0
    %277 = vmatpush2.msra.mxu0 0.0
    %278 = vmatprep.subr.mxu0 0.0
    %279 = vmatpush2.msra.mxu0 0.0
    %280 = vmatprep.subr.mxu0 0.0
    %281 = vmatpush2.msra.mxu0 0.0
    %282 = vmatprep.subr.mxu0 0.0
    %283 = vmatpush2.msra.mxu0 0.0
    %284 = vmatprep.subr.mxu0 0.0
    %285 = vmatpush2.msra.mxu0 0.0
    %286 = vmatprep.subr.mxu0 0.0
    %287 = vmatpush2.msra.mxu0 0.0
    %288 = vmatprep.subr.mxu0 0.0
    %289 = vmatpush2.msra.mxu0 0.0
    %290 = vmatprep.subr.mxu0 0.0
    %291 = vmatpush2.msra.mxu0 0.0
    %292 = vmatprep.subr.mxu0 0.0
    %293 = vmatpush2.msra.mxu0 0.0
    %294 = vmatprep.mubr.f32.mxu0 0.0
    %295 = vmatmul.mubr.f32.gmra.mxu0 %v72
    %v296 = vpop.f32.mrf.mxu0
    %v297 = vadd.f32 %v150, %v296
    %v298 = vpop.f32.mrf.mxu0
    %v299 = vadd.f32 %v154, %v298
    %300 = vdwg.mxu0
    %301 = vst [vmem:[#allocation3] sm:$0xff] %v226
    %302 = vst [vmem:[#allocation3 + $0x8] sm:$0xff] %v228
    %303 = vst [vmem:[#allocation3 + $0x10] sm:$0xff] %v297
    %304 = vst [vmem:[#allocation3 + $0x18] sm:$0xff] %v299
    %v305 = vld [vmem:[#allocation9] sm:$0xff]
    %v306 = vld [vmem:[#allocation9 + $0x8] sm:$0xff]
    %v307 = vld [vmem:[#allocation9 + $0x10] sm:$0xff]
    %v308 = vld [vmem:[#allocation9 + $0x18] sm:$0xff]
    %v309 = vld [vmem:[#allocation9 + $0x20] sm:$0xff]
    %v310 = vld [vmem:[#allocation9 + $0x28] sm:$0xff]
    %v311 = vld [vmem:[#allocation9 + $0x30] sm:$0xff]
    %v312 = vld [vmem:[#allocation9 + $0x38] sm:$0xff]
    %v313 = vld [vmem:[#allocation9 + $0x40] sm:$0xff]
    %v314 = vld [vmem:[#allocation9 + $0x48] sm:$0xff]
    %v315 = vld [vmem:[#allocation9 + $0x50] sm:$0xff]
    %v316 = vld [vmem:[#allocation9 + $0x58] sm:$0xff]
    %v317 = vld [vmem:[#allocation9 + $0x60] sm:$0xff]
    %v318 = vld [vmem:[#allocation9 + $0x68] sm:$0xff]
    %v319 = vld [vmem:[#allocation9 + $0x70] sm:$0xff]
    %v320 = vld [vmem:[#allocation9 + $0x78] sm:$0xff]
    %v321 = vld [vmem:[#allocation9 + $0x80] sm:$0xff]
    %v322 = vld [vmem:[#allocation9 + $0x88] sm:$0xff]
    %v323 = vld [vmem:[#allocation9 + $0x90] sm:$0xff]
    %v324 = vld [vmem:[#allocation9 + $0x98] sm:$0xff]
    %v325 = vld [vmem:[#allocation9 + $0xa0] sm:$0xff]
    %v326 = vld [vmem:[#allocation9 + $0xa8] sm:$0xff]
    %v327 = vld [vmem:[#allocation9 + $0xb0] sm:$0xff]
    %v328 = vld [vmem:[#allocation9 + $0xb8] sm:$0xff]
    %v329 = vld [vmem:[#allocation9 + $0xc0] sm:$0xff]
    %v330 = vld [vmem:[#allocation9 + $0xc8] sm:$0xff]
    %v331 = vld [vmem:[#allocation9 + $0xd0] sm:$0xff]
    %v332 = vld [vmem:[#allocation9 + $0xd8] sm:$0xff]
    %v333 = vld [vmem:[#allocation9 + $0xe0] sm:$0xff]
    %v334 = vld [vmem:[#allocation9 + $0xe8] sm:$0xff]
    %v335 = vld [vmem:[#allocation9 + $0xf0] sm:$0xff]
    %v336 = vld [vmem:[#allocation9 + $0xf8] sm:$0xff]
    %v337 = vld [vmem:[#allocation9 + $0x100] sm:$0xff]
    %v338 = vld [vmem:[#allocation9 + $0x108] sm:$0xff]
    %v339 = vld [vmem:[#allocation9 + $0x110] sm:$0xff]
    %v340 = vld [vmem:[#allocation9 + $0x118] sm:$0xff]
    %v341 = vld [vmem:[#allocation9 + $0x120] sm:$0xff]
    %v342 = vld [vmem:[#allocation9 + $0x128] sm:$0xff]
    %v343 = vld [vmem:[#allocation9 + $0x130] sm:$0xff]
    %v344 = vld [vmem:[#allocation9 + $0x138] sm:$0xff]
    %v345 = vld [vmem:[#allocation9 + $0x140] sm:$0xff]
    %v346 = vld [vmem:[#allocation9 + $0x148] sm:$0xff]
    %v347 = vld [vmem:[#allocation9 + $0x150] sm:$0xff]
    %v348 = vld [vmem:[#allocation9 + $0x158] sm:$0xff]
    %v349 = vld [vmem:[#allocation9 + $0x160] sm:$0xff]
    %v350 = vld [vmem:[#allocation9 + $0x168] sm:$0xff]
    %v351 = vld [vmem:[#allocation9 + $0x170] sm:$0xff]
    %v352 = vld [vmem:[#allocation9 + $0x178] sm:$0xff]
    %v353 = vld [vmem:[#allocation9 + $0x180] sm:$0xff]
    %v354 = vld [vmem:[#allocation9 + $0x188] sm:$0xff]
    %v355 = vld [vmem:[#allocation9 + $0x190] sm:$0xff]
    %v356 = vld [vmem:[#allocation9 + $0x198] sm:$0xff]
    %v357 = vld [vmem:[#allocation9 + $0x1a0] sm:$0xff]
    %v358 = vld [vmem:[#allocation9 + $0x1a8] sm:$0xff]
    %v359 = vld [vmem:[#allocation9 + $0x1b0] sm:$0xff]
    %v360 = vld [vmem:[#allocation9 + $0x1b8] sm:$0xff]
    %v361 = vld [vmem:[#allocation9 + $0x1c0] sm:$0xff]
    %v362 = vld [vmem:[#allocation9 + $0x1c8] sm:$0xff]
    %v363 = vld [vmem:[#allocation9 + $0x1d0] sm:$0xff]
    %v364 = vld [vmem:[#allocation9 + $0x1d8] sm:$0xff]
    %v365 = vld [vmem:[#allocation9 + $0x1e0] sm:$0xff]
    %v366 = vld [vmem:[#allocation9 + $0x1e8] sm:$0xff]
    %v367 = vld [vmem:[#allocation9 + $0x1f0] sm:$0xff]
    %v368 = vld [vmem:[#allocation9 + $0x1f8] sm:$0xff]
    %v369 = vld [vmem:[#allocation3] ss:$8 sm:$0xf]
    %v371 = vlaneseq
    %v372 = vshrl.u32 %v371, 7
    %v373 = vsub.s32 0, %v372
    %v374 = vrot.slane %v369, %v373
    %v375 = vlaneseq
    %v376 = vshrl.u32 %v375, 7
    %v377 = vsub.s32 1, %v376
    %v378 = vrot.slane %v369, %v377
    %v379 = vlaneseq
    %v380 = vshrl.u32 %v379, 7
    %v381 = vsub.s32 2, %v380
    %v382 = vrot.slane %v369, %v381
    %v383 = vlaneseq
    %v384 = vshrl.u32 %v383, 7
    %v385 = vsub.s32 3, %v384
    %v386 = vrot.slane %v369, %v385
    %391 = vmatprep.subr.mxu0 %v366
    %392 = vmatpush1.msra.mxu0 %v365
    %393 = vmatprep.subr.mxu0 %v362
    %394 = vmatpush1.msra.mxu0 %v361
    %395 = vmatprep.subr.mxu0 %v358
    %396 = vmatpush1.msra.mxu0 %v357
    %397 = vmatprep.subr.mxu0 %v354
    %398 = vmatpush1.msra.mxu0 %v353
    %399 = vmatprep.subr.mxu0 %v350
    %400 = vmatpush1.msra.mxu0 %v349
    %401 = vmatprep.subr.mxu0 %v346
    %402 = vmatpush1.msra.mxu0 %v345
    %403 = vmatprep.subr.mxu0 %v342
    %404 = vmatpush1.msra.mxu0 %v341
    %405 = vmatprep.subr.mxu0 %v338
    %406 = vmatpush1.msra.mxu0 %v337
    %407 = vmatprep.subr.mxu0 %v334
    %408 = vmatpush1.msra.mxu0 %v333
    %409 = vmatprep.subr.mxu0 %v330
    %410 = vmatpush1.msra.mxu0 %v329
    %411 = vmatprep.subr.mxu0 %v326
    %412 = vmatpush1.msra.mxu0 %v325
    %413 = vmatprep.subr.mxu0 %v322
    %414 = vmatpush1.msra.mxu0 %v321
    %415 = vmatprep.subr.mxu0 %v318
    %416 = vmatpush1.msra.mxu0 %v317
    %417 = vmatprep.subr.mxu0 %v314
    %418 = vmatpush1.msra.mxu0 %v313
    %419 = vmatprep.subr.mxu0 %v310
    %420 = vmatpush1.msra.mxu0 %v309
    %421 = vmatprep.subr.mxu0 %v306
    %422 = vmatpush1.msra.mxu0 %v305
    %423 = vmatprep.subr.mxu0 0.0
    %424 = vmatpush2.msra.mxu0 0.0
    %425 = vmatprep.subr.mxu0 0.0
    %426 = vmatpush2.msra.mxu0 0.0
    %427 = vmatprep.subr.mxu0 0.0
    %428 = vmatpush2.msra.mxu0 0.0
    %429 = vmatprep.subr.mxu0 0.0
    %430 = vmatpush2.msra.mxu0 0.0
    %431 = vmatprep.subr.mxu0 0.0
    %432 = vmatpush2.msra.mxu0 0.0
    %433 = vmatprep.subr.mxu0 0.0
    %434 = vmatpush2.msra.mxu0 0.0
    %435 = vmatprep.subr.mxu0 0.0
    %436 = vmatpush2.msra.mxu0 0.0
    %437 = vmatprep.subr.mxu0 0.0
    %438 = vmatpush2.msra.mxu0 0.0
    %439 = vmatprep.subr.mxu0 0.0
    %440 = vmatpush2.msra.mxu0 0.0
    %441 = vmatprep.subr.mxu0 0.0
    %442 = vmatpush2.msra.mxu0 0.0
    %443 = vmatprep.subr.mxu0 0.0
    %444 = vmatpush2.msra.mxu0 0.0
    %445 = vmatprep.subr.mxu0 0.0
    %446 = vmatpush2.msra.mxu0 0.0
    %447 = vmatprep.subr.mxu0 0.0
    %448 = vmatpush2.msra.mxu0 0.0
    %449 = vmatprep.subr.mxu0 0.0
    %450 = vmatpush2.msra.mxu0 0.0
    %451 = vmatprep.subr.mxu0 0.0
    %452 = vmatpush2.msra.mxu0 0.0
    %453 = vmatprep.subr.mxu0 0.0
    %454 = vmatpush2.msra.mxu0 0.0
    %455 = vmatprep.mubr.f32.mxu0 0.0
    %456 = vmatmul.mubr.f32.gmra.mxu0 0.0
    %v457 = vpop.f32.mrf.mxu0
    %v458 = vadd.f32 %v374, %v457
    %v459 = vpop.f32.mrf.mxu0
    %v460 = vadd.f32 %v378, %v459
    %461 = vdwg.mxu0
    %462 = vmatprep.subr.mxu0 %v368
    %463 = vmatpush1.msra.mxu0 %v367
    %464 = vmatprep.subr.mxu0 %v364
    %465 = vmatpush1.msra.mxu0 %v363
    %466 = vmatprep.subr.mxu0 %v360
    %467 = vmatpush1.msra.mxu0 %v359
    %468 = vmatprep.subr.mxu0 %v356
    %469 = vmatpush1.msra.mxu0 %v355
    %470 = vmatprep.subr.mxu0 %v352
    %471 = vmatpush1.msra.mxu0 %v351
    %472 = vmatprep.subr.mxu0 %v348
    %473 = vmatpush1.msra.mxu0 %v347
    %474 = vmatprep.subr.mxu0 %v344
    %475 = vmatpush1.msra.mxu0 %v343
    %476 = vmatprep.subr.mxu0 %v340
    %477 = vmatpush1.msra.mxu0 %v339
    %478 = vmatprep.subr.mxu0 %v336
    %479 = vmatpush1.msra.mxu0 %v335
    %480 = vmatprep.subr.mxu0 %v332
    %481 = vmatpush1.msra.mxu0 %v331
    %482 = vmatprep.subr.mxu0 %v328
    %483 = vmatpush1.msra.mxu0 %v327
    %484 = vmatprep.subr.mxu0 %v324
    %485 = vmatpush1.msra.mxu0 %v323
    %486 = vmatprep.subr.mxu0 %v320
    %487 = vmatpush1.msra.mxu0 %v319
    %488 = vmatprep.subr.mxu0 %v316
    %489 = vmatpush1.msra.mxu0 %v315
    %490 = vmatprep.subr.mxu0 %v312
    %491 = vmatpush1.msra.mxu0 %v311
    %492 = vmatprep.subr.mxu0 %v308
    %493 = vmatpush1.msra.mxu0 %v307
    %494 = vmatprep.subr.mxu0 0.0
    %495 = vmatpush2.msra.mxu0 0.0
    %496 = vmatprep.subr.mxu0 0.0
    %497 = vmatpush2.msra.mxu0 0.0
    %498 = vmatprep.subr.mxu0 0.0
    %499 = vmatpush2.msra.mxu0 0.0
    %500 = vmatprep.subr.mxu0 0.0
    %501 = vmatpush2.msra.mxu0 0.0
    %502 = vmatprep.subr.mxu0 0.0
    %503 = vmatpush2.msra.mxu0 0.0
    %504 = vmatprep.subr.mxu0 0.0
    %505 = vmatpush2.msra.mxu0 0.0
    %506 = vmatprep.subr.mxu0 0.0
    %507 = vmatpush2.msra.mxu0 0.0
    %508 = vmatprep.subr.mxu0 0.0
    %509 = vmatpush2.msra.mxu0 0.0
    %510 = vmatprep.subr.mxu0 0.0
    %511 = vmatpush2.msra.mxu0 0.0
    %512 = vmatprep.subr.mxu0 0.0
    %513 = vmatpush2.msra.mxu0 0.0
    %514 = vmatprep.subr.mxu0 0.0
    %515 = vmatpush2.msra.mxu0 0.0
    %516 = vmatprep.subr.mxu0 0.0
    %517 = vmatpush2.msra.mxu0 0.0
    %518 = vmatprep.subr.mxu0 0.0
    %519 = vmatpush2.msra.mxu0 0.0
    %520 = vmatprep.subr.mxu0 0.0
    %521 = vmatpush2.msra.mxu0 0.0
    %522 = vmatprep.subr.mxu0 0.0
    %523 = vmatpush2.msra.mxu0 0.0
    %524 = vmatprep.subr.mxu0 0.0
    %525 = vmatpush2.msra.mxu0 0.0
    %526 = vmatprep.mubr.f32.mxu0 0.0
    %527 = vmatmul.mubr.f32.gmra.mxu0 0.0
    %v528 = vpop.f32.mrf.mxu0
    %v529 = vadd.f32 %v382, %v528
    %v530 = vpop.f32.mrf.mxu0
    %v531 = vadd.f32 %v386, %v530
    %532 = vdwg.mxu0
    %v533 = vxor.u32 %v458, 2147483648
    %v534 = vmul.f32 %v533, 1.442695
    %v535 = vpow.pop %v534
    %v536 = vadd.f32 %v535, 1.0
    %v537 = vrcp.pop %v536
    %v538 = vmul.f32 1.0, %v537
    %v539 = vxor.u32 %v460, 2147483648
    %v540 = vmul.f32 %v539, 1.442695
    %v541 = vpow.pop %v540
    %v542 = vadd.f32 %v541, 1.0
    %v543 = vrcp.pop %v542
    %v544 = vmul.f32 1.0, %v543
    %v545 = vtanh.pop %v529
    %v546 = vxor.u32 %v531, 2147483648
    %v547 = vmul.f32 %v546, 1.442695
    %v548 = vpow.pop %v547
    %v549 = vadd.f32 %v548, 1.0
    %v550 = vrcp.pop %v549
    %v551 = vmul.f32 1.0, %v550
    %v552 = vmul.f32 %v544, 0.0
    %v553 = vmul.f32 %v538, %v545
    %v554 = vadd.f32 %v552, %v553
    %v555 = vtanh.pop %v554
    %v556 = vmul.f32 %v551, %v555
    %v557 = vxor.u32 %v556, 2147483648
    %v558 = vmul.f32 %v557, 1.442695
    %v559 = vpow.pop %v558
    %v560 = vadd.f32 %v559, 1.0
    %v561 = vrcp.pop %v560
    %v562 = vmul.f32 1.0, %v561
    %563 = vst [vmem:[#allocation2] sm:$0x1] %v562
    %v564 = vld [vmem:[#allocation9] sm:$0xff]
    %v565 = vld [vmem:[#allocation9 + $0x8] sm:$0xff]
    %v566 = vld [vmem:[#allocation9 + $0x10] sm:$0xff]
    %v567 = vld [vmem:[#allocation9 + $0x18] sm:$0xff]
    %v568 = vld [vmem:[#allocation9 + $0x20] sm:$0xff]
    %v569 = vld [vmem:[#allocation9 + $0x28] sm:$0xff]
    %v570 = vld [vmem:[#allocation9 + $0x30] sm:$0xff]
    %v571 = vld [vmem:[#allocation9 + $0x38] sm:$0xff]
    %v572 = vld [vmem:[#allocation9 + $0x40] sm:$0xff]
    %v573 = vld [vmem:[#allocation9 + $0x48] sm:$0xff]
    %v574 = vld [vmem:[#allocation9 + $0x50] sm:$0xff]
    %v575 = vld [vmem:[#allocation9 + $0x58] sm:$0xff]
    %v576 = vld [vmem:[#allocation9 + $0x60] sm:$0xff]
    %v577 = vld [vmem:[#allocation9 + $0x68] sm:$0xff]
    %v578 = vld [vmem:[#allocation9 + $0x70] sm:$0xff]
    %v579 = vld [vmem:[#allocation9 + $0x78] sm:$0xff]
    %v580 = vld [vmem:[#allocation9 + $0x80] sm:$0xff]
    %v581 = vld [vmem:[#allocation9 + $0x88] sm:$0xff]
    %v582 = vld [vmem:[#allocation9 + $0x90] sm:$0xff]
    %v583 = vld [vmem:[#allocation9 + $0x98] sm:$0xff]
    %v584 = vld [vmem:[#allocation9 + $0xa0] sm:$0xff]
    %v585 = vld [vmem:[#allocation9 + $0xa8] sm:$0xff]
    %v586 = vld [vmem:[#allocation9 + $0xb0] sm:$0xff]
    %v587 = vld [vmem:[#allocation9 + $0xb8] sm:$0xff]
    %v588 = vld [vmem:[#allocation9 + $0xc0] sm:$0xff]
    %v589 = vld [vmem:[#allocation9 + $0xc8] sm:$0xff]
    %v590 = vld [vmem:[#allocation9 + $0xd0] sm:$0xff]
    %v591 = vld [vmem:[#allocation9 + $0xd8] sm:$0xff]
    %v592 = vld [vmem:[#allocation9 + $0xe0] sm:$0xff]
    %v593 = vld [vmem:[#allocation9 + $0xe8] sm:$0xff]
    %v594 = vld [vmem:[#allocation9 + $0xf0] sm:$0xff]
    %v595 = vld [vmem:[#allocation9 + $0xf8] sm:$0xff]
    %v596 = vld [vmem:[#allocation9 + $0x100] sm:$0xff]
    %v597 = vld [vmem:[#allocation9 + $0x108] sm:$0xff]
    %v598 = vld [vmem:[#allocation9 + $0x110] sm:$0xff]
    %v599 = vld [vmem:[#allocation9 + $0x118] sm:$0xff]
    %v600 = vld [vmem:[#allocation9 + $0x120] sm:$0xff]
    %v601 = vld [vmem:[#allocation9 + $0x128] sm:$0xff]
    %v602 = vld [vmem:[#allocation9 + $0x130] sm:$0xff]
    %v603 = vld [vmem:[#allocation9 + $0x138] sm:$0xff]
    %v604 = vld [vmem:[#allocation9 + $0x140] sm:$0xff]
    %v605 = vld [vmem:[#allocation9 + $0x148] sm:$0xff]
    %v606 = vld [vmem:[#allocation9 + $0x150] sm:$0xff]
    %v607 = vld [vmem:[#allocation9 + $0x158] sm:$0xff]
    %v608 = vld [vmem:[#allocation9 + $0x160] sm:$0xff]
    %v609 = vld [vmem:[#allocation9 + $0x168] sm:$0xff]
    %v610 = vld [vmem:[#allocation9 + $0x170] sm:$0xff]
    %v611 = vld [vmem:[#allocation9 + $0x178] sm:$0xff]
    %v612 = vld [vmem:[#allocation9 + $0x180] sm:$0xff]
    %v613 = vld [vmem:[#allocation9 + $0x188] sm:$0xff]
    %v614 = vld [vmem:[#allocation9 + $0x190] sm:$0xff]
    %v615 = vld [vmem:[#allocation9 + $0x198] sm:$0xff]
    %v616 = vld [vmem:[#allocation9 + $0x1a0] sm:$0xff]
    %v617 = vld [vmem:[#allocation9 + $0x1a8] sm:$0xff]
    %v618 = vld [vmem:[#allocation9 + $0x1b0] sm:$0xff]
    %v619 = vld [vmem:[#allocation9 + $0x1b8] sm:$0xff]
    %v620 = vld [vmem:[#allocation9 + $0x1c0] sm:$0xff]
    %v621 = vld [vmem:[#allocation9 + $0x1c8] sm:$0xff]
    %v622 = vld [vmem:[#allocation9 + $0x1d0] sm:$0xff]
    %v623 = vld [vmem:[#allocation9 + $0x1d8] sm:$0xff]
    %v624 = vld [vmem:[#allocation9 + $0x1e0] sm:$0xff]
    %v625 = vld [vmem:[#allocation9 + $0x1e8] sm:$0xff]
    %v626 = vld [vmem:[#allocation9 + $0x1f0] sm:$0xff]
    %v627 = vld [vmem:[#allocation9 + $0x1f8] sm:$0xff]
    %s628 = scalar_lea.vmem [#allocation3], 1
    %v629 = vld [vmem:[%s628] ss:$8 sm:$0xf]
    %v631 = vlaneseq
    %v632 = vshrl.u32 %v631, 7
    %v633 = vsub.s32 0, %v632
    %v634 = vrot.slane %v629, %v633
    %v635 = vlaneseq
    %v636 = vshrl.u32 %v635, 7
    %v637 = vsub.s32 1, %v636
    %v638 = vrot.slane %v629, %v637
    %v639 = vlaneseq
    %v640 = vshrl.u32 %v639, 7
    %v641 = vsub.s32 2, %v640
    %v642 = vrot.slane %v629, %v641
    %v643 = vlaneseq
    %v644 = vshrl.u32 %v643, 7
    %v645 = vsub.s32 3, %v644
    %v646 = vrot.slane %v629, %v645
    %651 = vmatprep.subr.mxu0 %v625
    %652 = vmatpush1.msra.mxu0 %v624
    %653 = vmatprep.subr.mxu0 %v621
    %654 = vmatpush1.msra.mxu0 %v620
    %655 = vmatprep.subr.mxu0 %v617
    %656 = vmatpush1.msra.mxu0 %v616
    %657 = vmatprep.subr.mxu0 %v613
    %658 = vmatpush1.msra.mxu0 %v612
    %659 = vmatprep.subr.mxu0 %v609
    %660 = vmatpush1.msra.mxu0 %v608
    %661 = vmatprep.subr.mxu0 %v605
    %662 = vmatpush1.msra.mxu0 %v604
    %663 = vmatprep.subr.mxu0 %v601
    %664 = vmatpush1.msra.mxu0 %v600
    %665 = vmatprep.subr.mxu0 %v597
    %666 = vmatpush1.msra.mxu0 %v596
    %667 = vmatprep.subr.mxu0 %v593
    %668 = vmatpush1.msra.mxu0 %v592
    %669 = vmatprep.subr.mxu0 %v589
    %670 = vmatpush1.msra.mxu0 %v588
    %671 = vmatprep.subr.mxu0 %v585
    %672 = vmatpush1.msra.mxu0 %v584
    %673 = vmatprep.subr.mxu0 %v581
    %674 = vmatpush1.msra.mxu0 %v580
    %675 = vmatprep.subr.mxu0 %v577
    %676 = vmatpush1.msra.mxu0 %v576
    %677 = vmatprep.subr.mxu0 %v573
    %678 = vmatpush1.msra.mxu0 %v572
    %679 = vmatprep.subr.mxu0 %v569
    %680 = vmatpush1.msra.mxu0 %v568
    %681 = vmatprep.subr.mxu0 %v565
    %682 = vmatpush1.msra.mxu0 %v564
    %683 = vmatprep.subr.mxu0 0.0
    %684 = vmatpush2.msra.mxu0 0.0
    %685 = vmatprep.subr.mxu0 0.0
    %686 = vmatpush2.msra.mxu0 0.0
    %687 = vmatprep.subr.mxu0 0.0
    %688 = vmatpush2.msra.mxu0 0.0
    %689 = vmatprep.subr.mxu0 0.0
    %690 = vmatpush2.msra.mxu0 0.0
    %691 = vmatprep.subr.mxu0 0.0
    %692 = vmatpush2.msra.mxu0 0.0
    %693 = vmatprep.subr.mxu0 0.0
    %694 = vmatpush2.msra.mxu0 0.0
    %695 = vmatprep.subr.mxu0 0.0
    %696 = vmatpush2.msra.mxu0 0.0
    %697 = vmatprep.subr.mxu0 0.0
    %698 = vmatpush2.msra.mxu0 0.0
    %699 = vmatprep.subr.mxu0 0.0
    %700 = vmatpush2.msra.mxu0 0.0
    %701 = vmatprep.subr.mxu0 0.0
    %702 = vmatpush2.msra.mxu0 0.0
    %703 = vmatprep.subr.mxu0 0.0
    %704 = vmatpush2.msra.mxu0 0.0
    %705 = vmatprep.subr.mxu0 0.0
    %706 = vmatpush2.msra.mxu0 0.0
    %707 = vmatprep.subr.mxu0 0.0
    %708 = vmatpush2.msra.mxu0 0.0
    %709 = vmatprep.subr.mxu0 0.0
    %710 = vmatpush2.msra.mxu0 0.0
    %711 = vmatprep.subr.mxu0 0.0
    %712 = vmatpush2.msra.mxu0 0.0
    %713 = vmatprep.subr.mxu0 0.0
    %714 = vmatpush2.msra.mxu0 0.0
    %715 = vmatprep.mubr.f32.mxu0 0.0
    %716 = vmatmul.mubr.f32.gmra.mxu0 %v556
    %v717 = vpop.f32.mrf.mxu0
    %v718 = vadd.f32 %v634, %v717
    %v719 = vpop.f32.mrf.mxu0
    %v720 = vadd.f32 %v638, %v719
    %721 = vdwg.mxu0
    %722 = vmatprep.subr.mxu0 %v627
    %723 = vmatpush1.msra.mxu0 %v626
    %724 = vmatprep.subr.mxu0 %v623
    %725 = vmatpush1.msra.mxu0 %v622
    %726 = vmatprep.subr.mxu0 %v619
    %727 = vmatpush1.msra.mxu0 %v618
    %728 = vmatprep.subr.mxu0 %v615
    %729 = vmatpush1.msra.mxu0 %v614
    %730 = vmatprep.subr.mxu0 %v611
    %731 = vmatpush1.msra.mxu0 %v610
    %732 = vmatprep.subr.mxu0 %v607
    %733 = vmatpush1.msra.mxu0 %v606
    %734 = vmatprep.subr.mxu0 %v603
    %735 = vmatpush1.msra.mxu0 %v602
    %736 = vmatprep.subr.mxu0 %v599
    %737 = vmatpush1.msra.mxu0 %v598
    %738 = vmatprep.subr.mxu0 %v595
    %739 = vmatpush1.msra.mxu0 %v594
    %740 = vmatprep.subr.mxu0 %v591
    %741 = vmatpush1.msra.mxu0 %v590
    %742 = vmatprep.subr.mxu0 %v587
    %743 = vmatpush1.msra.mxu0 %v586
    %744 = vmatprep.subr.mxu0 %v583
    %745 = vmatpush1.msra.mxu0 %v582
    %746 = vmatprep.subr.mxu0 %v579
    %747 = vmatpush1.msra.mxu0 %v578
    %748 = vmatprep.subr.mxu0 %v575
    %749 = vmatpush1.msra.mxu0 %v574
    %750 = vmatprep.subr.mxu0 %v571
    %751 = vmatpush1.msra.mxu0 %v570
    %752 = vmatprep.subr.mxu0 %v567
    %753 = vmatpush1.msra.mxu0 %v566
    %754 = vmatprep.subr.mxu0 0.0
    %755 = vmatpush2.msra.mxu0 0.0
    %756 = vmatprep.subr.mxu0 0.0
    %757 = vmatpush2.msra.mxu0 0.0
    %758 = vmatprep.subr.mxu0 0.0
    %759 = vmatpush2.msra.mxu0 0.0
    %760 = vmatprep.subr.mxu0 0.0
    %761 = vmatpush2.msra.mxu0 0.0
    %762 = vmatprep.subr.mxu0 0.0
    %763 = vmatpush2.msra.mxu0 0.0
    %764 = vmatprep.subr.mxu0 0.0
    %765 = vmatpush2.msra.mxu0 0.0
    %766 = vmatprep.subr.mxu0 0.0
    %767 = vmatpush2.msra.mxu0 0.0
    %768 = vmatprep.subr.mxu0 0.0
    %769 = vmatpush2.msra.mxu0 0.0
    %770 = vmatprep.subr.mxu0 0.0
    %771 = vmatpush2.msra.mxu0 0.0
    %772 = vmatprep.subr.mxu0 0.0
    %773 = vmatpush2.msra.mxu0 0.0
    %774 = vmatprep.subr.mxu0 0.0
    %775 = vmatpush2.msra.mxu0 0.0
    %776 = vmatprep.subr.mxu0 0.0
    %777 = vmatpush2.msra.mxu0 0.0
    %778 = vmatprep.subr.mxu0 0.0
    %779 = vmatpush2.msra.mxu0 0.0
    %780 = vmatprep.subr.mxu0 0.0
    %781 = vmatpush2.msra.mxu0 0.0
    %782 = vmatprep.subr.mxu0 0.0
    %783 = vmatpush2.msra.mxu0 0.0
    %784 = vmatprep.subr.mxu0 0.0
    %785 = vmatpush2.msra.mxu0 0.0
    %786 = vmatprep.mubr.f32.mxu0 0.0
    %787 = vmatmul.mubr.f32.gmra.mxu0 %v556
    %v788 = vpop.f32.mrf.mxu0
    %v789 = vadd.f32 %v642, %v788
    %v790 = vpop.f32.mrf.mxu0
    %v791 = vadd.f32 %v646, %v790
    %792 = vdwg.mxu0
    %v793 = vxor.u32 %v718, 2147483648
    %v794 = vmul.f32 %v793, 1.442695
    %v795 = vpow.pop %v794
    %v796 = vadd.f32 %v795, 1.0
    %v797 = vrcp.pop %v796
    %v798 = vmul.f32 1.0, %v797
    %v799 = vxor.u32 %v720, 2147483648
    %v800 = vmul.f32 %v799, 1.442695
    %v801 = vpow.pop %v800
    %v802 = vadd.f32 %v801, 1.0
    %v803 = vrcp.pop %v802
    %v804 = vmul.f32 1.0, %v803
    %v805 = vtanh.pop %v789
    %v806 = vxor.u32 %v791, 2147483648
    %v807 = vmul.f32 %v806, 1.442695
    %v808 = vpow.pop %v807
    %v809 = vadd.f32 %v808, 1.0
    %v810 = vrcp.pop %v809
    %v811 = vmul.f32 1.0, %v810
    %v812 = vmul.f32 %v804, %v554
    %v813 = vmul.f32 %v798, %v805
    %v814 = vadd.f32 %v812, %v813
    %v815 = vtanh.pop %v814
    %v816 = vmul.f32 %v811, %v815
    %v817 = vxor.u32 %v816, 2147483648
    %v818 = vmul.f32 %v817, 1.442695
    %v819 = vpow.pop %v818
    %v820 = vadd.f32 %v819, 1.0
    %v821 = vrcp.pop %v820
    %v822 = vmul.f32 1.0, %v821
    %823 = vst [vmem:[#allocation2 + $0x1] sm:$0x1] %v822
    %v824 = vld [vmem:[#allocation9] sm:$0xff]
    %v825 = vld [vmem:[#allocation9 + $0x8] sm:$0xff]
    %v826 = vld [vmem:[#allocation9 + $0x10] sm:$0xff]
    %v827 = vld [vmem:[#allocation9 + $0x18] sm:$0xff]
    %v828 = vld [vmem:[#allocation9 + $0x20] sm:$0xff]
    %v829 = vld [vmem:[#allocation9 + $0x28] sm:$0xff]
    %v830 = vld [vmem:[#allocation9 + $0x30] sm:$0xff]
    %v831 = vld [vmem:[#allocation9 + $0x38] sm:$0xff]
    %v832 = vld [vmem:[#allocation9 + $0x40] sm:$0xff]
    %v833 = vld [vmem:[#allocation9 + $0x48] sm:$0xff]
    %v834 = vld [vmem:[#allocation9 + $0x50] sm:$0xff]
    %v835 = vld [vmem:[#allocation9 + $0x58] sm:$0xff]
    %v836 = vld [vmem:[#allocation9 + $0x60] sm:$0xff]
    %v837 = vld [vmem:[#allocation9 + $0x68] sm:$0xff]
    %v838 = vld [vmem:[#allocation9 + $0x70] sm:$0xff]
    %v839 = vld [vmem:[#allocation9 + $0x78] sm:$0xff]
    %v840 = vld [vmem:[#allocation9 + $0x80] sm:$0xff]
    %v841 = vld [vmem:[#allocation9 + $0x88] sm:$0xff]
    %v842 = vld [vmem:[#allocation9 + $0x90] sm:$0xff]
    %v843 = vld [vmem:[#allocation9 + $0x98] sm:$0xff]
    %v844 = vld [vmem:[#allocation9 + $0xa0] sm:$0xff]
    %v845 = vld [vmem:[#allocation9 + $0xa8] sm:$0xff]
    %v846 = vld [vmem:[#allocation9 + $0xb0] sm:$0xff]
    %v847 = vld [vmem:[#allocation9 + $0xb8] sm:$0xff]
    %v848 = vld [vmem:[#allocation9 + $0xc0] sm:$0xff]
    %v849 = vld [vmem:[#allocation9 + $0xc8] sm:$0xff]
    %v850 = vld [vmem:[#allocation9 + $0xd0] sm:$0xff]
    %v851 = vld [vmem:[#allocation9 + $0xd8] sm:$0xff]
    %v852 = vld [vmem:[#allocation9 + $0xe0] sm:$0xff]
    %v853 = vld [vmem:[#allocation9 + $0xe8] sm:$0xff]
    %v854 = vld [vmem:[#allocation9 + $0xf0] sm:$0xff]
    %v855 = vld [vmem:[#allocation9 + $0xf8] sm:$0xff]
    %v856 = vld [vmem:[#allocation9 + $0x100] sm:$0xff]
    %v857 = vld [vmem:[#allocation9 + $0x108] sm:$0xff]
    %v858 = vld [vmem:[#allocation9 + $0x110] sm:$0xff]
    %v859 = vld [vmem:[#allocation9 + $0x118] sm:$0xff]
    %v860 = vld [vmem:[#allocation9 + $0x120] sm:$0xff]
    %v861 = vld [vmem:[#allocation9 + $0x128] sm:$0xff]
    %v862 = vld [vmem:[#allocation9 + $0x130] sm:$0xff]
    %v863 = vld [vmem:[#allocation9 + $0x138] sm:$0xff]
    %v864 = vld [vmem:[#allocation9 + $0x140] sm:$0xff]
    %v865 = vld [vmem:[#allocation9 + $0x148] sm:$0xff]
    %v866 = vld [vmem:[#allocation9 + $0x150] sm:$0xff]
    %v867 = vld [vmem:[#allocation9 + $0x158] sm:$0xff]
    %v868 = vld [vmem:[#allocation9 + $0x160] sm:$0xff]
    %v869 = vld [vmem:[#allocation9 + $0x168] sm:$0xff]
    %v870 = vld [vmem:[#allocation9 + $0x170] sm:$0xff]
    %v871 = vld [vmem:[#allocation9 + $0x178] sm:$0xff]
    %v872 = vld [vmem:[#allocation9 + $0x180] sm:$0xff]
    %v873 = vld [vmem:[#allocation9 + $0x188] sm:$0xff]
    %v874 = vld [vmem:[#allocation9 + $0x190] sm:$0xff]
    %v875 = vld [vmem:[#allocation9 + $0x198] sm:$0xff]
    %v876 = vld [vmem:[#allocation9 + $0x1a0] sm:$0xff]
    %v877 = vld [vmem:[#allocation9 + $0x1a8] sm:$0xff]
    %v878 = vld [vmem:[#allocation9 + $0x1b0] sm:$0xff]
    %v879 = vld [vmem:[#allocation9 + $0x1b8] sm:$0xff]
    %v880 = vld [vmem:[#allocation9 + $0x1c0] sm:$0xff]
    %v881 = vld [vmem:[#allocation9 + $0x1c8] sm:$0xff]
    %v882 = vld [vmem:[#allocation9 + $0x1d0] sm:$0xff]
    %v883 = vld [vmem:[#allocation9 + $0x1d8] sm:$0xff]
    %v884 = vld [vmem:[#allocation9 + $0x1e0] sm:$0xff]
    %v885 = vld [vmem:[#allocation9 + $0x1e8] sm:$0xff]
    %v886 = vld [vmem:[#allocation9 + $0x1f0] sm:$0xff]
    %v887 = vld [vmem:[#allocation9 + $0x1f8] sm:$0xff]
    %s888 = scalar_lea.vmem [#allocation3], 2
    %v889 = vld [vmem:[%s888] ss:$8 sm:$0xf]
    %v891 = vlaneseq
    %v892 = vshrl.u32 %v891, 7
    %v893 = vsub.s32 0, %v892
    %v894 = vrot.slane %v889, %v893
    %v895 = vlaneseq
    %v896 = vshrl.u32 %v895, 7
    %v897 = vsub.s32 1, %v896
    %v898 = vrot.slane %v889, %v897
    %v899 = vlaneseq
    %v900 = vshrl.u32 %v899, 7
    %v901 = vsub.s32 2, %v900
    %v902 = vrot.slane %v889, %v901
    %v903 = vlaneseq
    %v904 = vshrl.u32 %v903, 7
    %v905 = vsub.s32 3, %v904
    %v906 = vrot.slane %v889, %v905
    %911 = vmatprep.subr.mxu0 %v885
    %912 = vmatpush1.msra.mxu0 %v884
    %913 = vmatprep.subr.mxu0 %v881
    %914 = vmatpush1.msra.mxu0 %v880
    %915 = vmatprep.subr.mxu0 %v877
    %916 = vmatpush1.msra.mxu0 %v876
    %917 = vmatprep.subr.mxu0 %v873
    %918 = vmatpush1.msra.mxu0 %v872
    %919 = vmatprep.subr.mxu0 %v869
    %920 = vmatpush1.msra.mxu0 %v868
    %921 = vmatprep.subr.mxu0 %v865
    %922 = vmatpush1.msra.mxu0 %v864
    %923 = vmatprep.subr.mxu0 %v861
    %924 = vmatpush1.msra.mxu0 %v860
    %925 = vmatprep.subr.mxu0 %v857
    %926 = vmatpush1.msra.mxu0 %v856
    %927 = vmatprep.subr.mxu0 %v853
    %928 = vmatpush1.msra.mxu0 %v852
    %929 = vmatprep.subr.mxu0 %v849
    %930 = vmatpush1.msra.mxu0 %v848
    %931 = vmatprep.subr.mxu0 %v845
    %932 = vmatpush1.msra.mxu0 %v844
    %933 = vmatprep.subr.mxu0 %v841
    %934 = vmatpush1.msra.mxu0 %v840
    %935 = vmatprep.subr.mxu0 %v837
    %936 = vmatpush1.msra.mxu0 %v836
    %937 = vmatprep.subr.mxu0 %v833
    %938 = vmatpush1.msra.mxu0 %v832
    %939 = vmatprep.subr.mxu0 %v829
    %940 = vmatpush1.msra.mxu0 %v828
    %941 = vmatprep.subr.mxu0 %v825
    %942 = vmatpush1.msra.mxu0 %v824
    %943 = vmatprep.subr.mxu0 0.0
    %944 = vmatpush2.msra.mxu0 0.0
    %945 = vmatprep.subr.mxu0 0.0
    %946 = vmatpush2.msra.mxu0 0.0
    %947 = vmatprep.subr.mxu0 0.0
    %948 = vmatpush2.msra.mxu0 0.0
    %949 = vmatprep.subr.mxu0 0.0
    %950 = vmatpush2.msra.mxu0 0.0
    %951 = vmatprep.subr.mxu0 0.0
    %952 = vmatpush2.msra.mxu0 0.0
    %953 = vmatprep.subr.mxu0 0.0
    %954 = vmatpush2.msra.mxu0 0.0
    %955 = vmatprep.subr.mxu0 0.0
    %956 = vmatpush2.msra.mxu0 0.0
    %957 = vmatprep.subr.mxu0 0.0
    %958 = vmatpush2.msra.mxu0 0.0
    %959 = vmatprep.subr.mxu0 0.0
    %960 = vmatpush2.msra.mxu0 0.0
    %961 = vmatprep.subr.mxu0 0.0
    %962 = vmatpush2.msra.mxu0 0.0
    %963 = vmatprep.subr.mxu0 0.0
    %964 = vmatpush2.msra.mxu0 0.0
    %965 = vmatprep.subr.mxu0 0.0
    %966 = vmatpush2.msra.mxu0 0.0
    %967 = vmatprep.subr.mxu0 0.0
    %968 = vmatpush2.msra.mxu0 0.0
    %969 = vmatprep.subr.mxu0 0.0
    %970 = vmatpush2.msra.mxu0 0.0
    %971 = vmatprep.subr.mxu0 0.0
    %972 = vmatpush2.msra.mxu0 0.0
    %973 = vmatprep.subr.mxu0 0.0
    %974 = vmatpush2.msra.mxu0 0.0
    %975 = vmatprep.mubr.f32.mxu0 0.0
    %976 = vmatmul.mubr.f32.gmra.mxu0 %v816
    %v977 = vpop.f32.mrf.mxu0
    %v978 = vadd.f32 %v894, %v977
    %v979 = vpop.f32.mrf.mxu0
    %v980 = vadd.f32 %v898, %v979
    %981 = vdwg.mxu0
    %982 = vmatprep.subr.mxu0 %v887
    %983 = vmatpush1.msra.mxu0 %v886
    %984 = vmatprep.subr.mxu0 %v883
    %985 = vmatpush1.msra.mxu0 %v882
    %986 = vmatprep.subr.mxu0 %v879
    %987 = vmatpush1.msra.mxu0 %v878
    %988 = vmatprep.subr.mxu0 %v875
    %989 = vmatpush1.msra.mxu0 %v874
    %990 = vmatprep.subr.mxu0 %v871
    %991 = vmatpush1.msra.mxu0 %v870
    %992 = vmatprep.subr.mxu0 %v867
    %993 = vmatpush1.msra.mxu0 %v866
    %994 = vmatprep.subr.mxu0 %v863
    %995 = vmatpush1.msra.mxu0 %v862
    %996 = vmatprep.subr.mxu0 %v859
    %997 = vmatpush1.msra.mxu0 %v858
    %998 = vmatprep.subr.mxu0 %v855
    %999 = vmatpush1.msra.mxu0 %v854
    %1000 = vmatprep.subr.mxu0 %v851
    %1001 = vmatpush1.msra.mxu0 %v850
    %1002 = vmatprep.subr.mxu0 %v847
    %1003 = vmatpush1.msra.mxu0 %v846
    %1004 = vmatprep.subr.mxu0 %v843
    %1005 = vmatpush1.msra.mxu0 %v842
    %1006 = vmatprep.subr.mxu0 %v839
    %1007 = vmatpush1.msra.mxu0 %v838
    %1008 = vmatprep.subr.mxu0 %v835
    %1009 = vmatpush1.msra.mxu0 %v834
    %1010 = vmatprep.subr.mxu0 %v831
    %1011 = vmatpush1.msra.mxu0 %v830
    %1012 = vmatprep.subr.mxu0 %v827
    %1013 = vmatpush1.msra.mxu0 %v826
    %1014 = vmatprep.subr.mxu0 0.0
    %1015 = vmatpush2.msra.mxu0 0.0
    %1016 = vmatprep.subr.mxu0 0.0
    %1017 = vmatpush2.msra.mxu0 0.0
    %1018 = vmatprep.subr.mxu0 0.0
    %1019 = vmatpush2.msra.mxu0 0.0
    %1020 = vmatprep.subr.mxu0 0.0
    %1021 = vmatpush2.msra.mxu0 0.0
    %1022 = vmatprep.subr.mxu0 0.0
    %1023 = vmatpush2.msra.mxu0 0.0
    %1024 = vmatprep.subr.mxu0 0.0
    %1025 = vmatpush2.msra.mxu0 0.0
    %1026 = vmatprep.subr.mxu0 0.0
    %1027 = vmatpush2.msra.mxu0 0.0
    %1028 = vmatprep.subr.mxu0 0.0
    %1029 = vmatpush2.msra.mxu0 0.0
    %1030 = vmatprep.subr.mxu0 0.0
    %1031 = vmatpush2.msra.mxu0 0.0
    %1032 = vmatprep.subr.mxu0 0.0
    %1033 = vmatpush2.msra.mxu0 0.0
    %1034 = vmatprep.subr.mxu0 0.0
    %1035 = vmatpush2.msra.mxu0 0.0
    %1036 = vmatprep.subr.mxu0 0.0
    %1037 = vmatpush2.msra.mxu0 0.0
    %1038 = vmatprep.subr.mxu0 0.0
    %1039 = vmatpush2.msra.mxu0 0.0
    %1040 = vmatprep.subr.mxu0 0.0
    %1041 = vmatpush2.msra.mxu0 0.0
    %1042 = vmatprep.subr.mxu0 0.0
    %1043 = vmatpush2.msra.mxu0 0.0
    %1044 = vmatprep.subr.mxu0 0.0
    %1045 = vmatpush2.msra.mxu0 0.0
    %1046 = vmatprep.mubr.f32.mxu0 0.0
    %1047 = vmatmul.mubr.f32.gmra.mxu0 %v816
    %v1048 = vpop.f32.mrf.mxu0
    %v1049 = vadd.f32 %v902, %v1048
    %v1050 = vpop.f32.mrf.mxu0
    %v1051 = vadd.f32 %v906, %v1050
    %1052 = vdwg.mxu0
    %v1053 = vxor.u32 %v978, 2147483648
    %v1054 = vmul.f32 %v1053, 1.442695
    %v1055 = vpow.pop %v1054
    %v1056 = vadd.f32 %v1055, 1.0
    %v1057 = vrcp.pop %v1056
    %v1058 = vmul.f32 1.0, %v1057
    %v1059 = vxor.u32 %v980, 2147483648
    %v1060 = vmul.f32 %v1059, 1.442695
    %v1061 = vpow.pop %v1060
    %v1062 = vadd.f32 %v1061, 1.0
    %v1063 = vrcp.pop %v1062
    %v1064 = vmul.f32 1.0, %v1063
    %v1065 = vtanh.pop %v1049
    %v1066 = vxor.u32 %v1051, 2147483648
    %v1067 = vmul.f32 %v1066, 1.442695
    %v1068 = vpow.pop %v1067
    %v1069 = vadd.f32 %v1068, 1.0
    %v1070 = vrcp.pop %v1069
    %v1071 = vmul.f32 1.0, %v1070
    %v1072 = vmul.f32 %v1064, %v814
    %v1073 = vmul.f32 %v1058, %v1065
    %v1074 = vadd.f32 %v1072, %v1073
    %v1075 = vtanh.pop %v1074
    %v1076 = vmul.f32 %v1071, %v1075
    %v1077 = vxor.u32 %v1076, 2147483648
    %v1078 = vmul.f32 %v1077, 1.442695
    %v1079 = vpow.pop %v1078
    %v1080 = vadd.f32 %v1079, 1.0
    %v1081 = vrcp.pop %v1080
    %v1082 = vmul.f32 1.0, %v1081
    %1083 = vst [vmem:[#allocation2 + $0x2] sm:$0x1] %v1082
    %v1084 = vld [vmem:[#allocation9] sm:$0xff]
    %v1085 = vld [vmem:[#allocation9 + $0x8] sm:$0xff]
    %v1086 = vld [vmem:[#allocation9 + $0x10] sm:$0xff]
    %v1087 = vld [vmem:[#allocation9 + $0x18] sm:$0xff]
    %v1088 = vld [vmem:[#allocation9 + $0x20] sm:$0xff]
    %v1089 = vld [vmem:[#allocation9 + $0x28] sm:$0xff]
    %v1090 = vld [vmem:[#allocation9 + $0x30] sm:$0xff]
    %v1091 = vld [vmem:[#allocation9 + $0x38] sm:$0xff]
    %v1092 = vld [vmem:[#allocation9 + $0x40] sm:$0xff]
    %v1093 = vld [vmem:[#allocation9 + $0x48] sm:$0xff]
    %v1094 = vld [vmem:[#allocation9 + $0x50] sm:$0xff]
    %v1095 = vld [vmem:[#allocation9 + $0x58] sm:$0xff]
    %v1096 = vld [vmem:[#allocation9 + $0x60] sm:$0xff]
    %v1097 = vld [vmem:[#allocation9 + $0x68] sm:$0xff]
    %v1098 = vld [vmem:[#allocation9 + $0x70] sm:$0xff]
    %v1099 = vld [vmem:[#allocation9 + $0x78] sm:$0xff]
    %v1100 = vld [vmem:[#allocation9 + $0x80] sm:$0xff]
    %v1101 = vld [vmem:[#allocation9 + $0x88] sm:$0xff]
    %v1102 = vld [vmem:[#allocation9 + $0x90] sm:$0xff]
    %v1103 = vld [vmem:[#allocation9 + $0x98] sm:$0xff]
    %v1104 = vld [vmem:[#allocation9 + $0xa0] sm:$0xff]
    %v1105 = vld [vmem:[#allocation9 + $0xa8] sm:$0xff]
    %v1106 = vld [vmem:[#allocation9 + $0xb0] sm:$0xff]
    %v1107 = vld [vmem:[#allocation9 + $0xb8] sm:$0xff]
    %v1108 = vld [vmem:[#allocation9 + $0xc0] sm:$0xff]
    %v1109 = vld [vmem:[#allocation9 + $0xc8] sm:$0xff]
    %v1110 = vld [vmem:[#allocation9 + $0xd0] sm:$0xff]
    %v1111 = vld [vmem:[#allocation9 + $0xd8] sm:$0xff]
    %v1112 = vld [vmem:[#allocation9 + $0xe0] sm:$0xff]
    %v1113 = vld [vmem:[#allocation9 + $0xe8] sm:$0xff]
    %v1114 = vld [vmem:[#allocation9 + $0xf0] sm:$0xff]
    %v1115 = vld [vmem:[#allocation9 + $0xf8] sm:$0xff]
    %v1116 = vld [vmem:[#allocation9 + $0x100] sm:$0xff]
    %v1117 = vld [vmem:[#allocation9 + $0x108] sm:$0xff]
    %v1118 = vld [vmem:[#allocation9 + $0x110] sm:$0xff]
    %v1119 = vld [vmem:[#allocation9 + $0x118] sm:$0xff]
    %v1120 = vld [vmem:[#allocation9 + $0x120] sm:$0xff]
    %v1121 = vld [vmem:[#allocation9 + $0x128] sm:$0xff]
    %v1122 = vld [vmem:[#allocation9 + $0x130] sm:$0xff]
    %v1123 = vld [vmem:[#allocation9 + $0x138] sm:$0xff]
    %v1124 = vld [vmem:[#allocation9 + $0x140] sm:$0xff]
    %v1125 = vld [vmem:[#allocation9 + $0x148] sm:$0xff]
    %v1126 = vld [vmem:[#allocation9 + $0x150] sm:$0xff]
    %v1127 = vld [vmem:[#allocation9 + $0x158] sm:$0xff]
    %v1128 = vld [vmem:[#allocation9 + $0x160] sm:$0xff]
    %v1129 = vld [vmem:[#allocation9 + $0x168] sm:$0xff]
    %v1130 = vld [vmem:[#allocation9 + $0x170] sm:$0xff]
    %v1131 = vld [vmem:[#allocation9 + $0x178] sm:$0xff]
    %v1132 = vld [vmem:[#allocation9 + $0x180] sm:$0xff]
    %v1133 = vld [vmem:[#allocation9 + $0x188] sm:$0xff]
    %v1134 = vld [vmem:[#allocation9 + $0x190] sm:$0xff]
    %v1135 = vld [vmem:[#allocation9 + $0x198] sm:$0xff]
    %v1136 = vld [vmem:[#allocation9 + $0x1a0] sm:$0xff]
    %v1137 = vld [vmem:[#allocation9 + $0x1a8] sm:$0xff]
    %v1138 = vld [vmem:[#allocation9 + $0x1b0] sm:$0xff]
    %v1139 = vld [vmem:[#allocation9 + $0x1b8] sm:$0xff]
    %v1140 = vld [vmem:[#allocation9 + $0x1c0] sm:$0xff]
    %v1141 = vld [vmem:[#allocation9 + $0x1c8] sm:$0xff]
    %v1142 = vld [vmem:[#allocation9 + $0x1d0] sm:$0xff]
    %v1143 = vld [vmem:[#allocation9 + $0x1d8] sm:$0xff]
    %v1144 = vld [vmem:[#allocation9 + $0x1e0] sm:$0xff]
    %v1145 = vld [vmem:[#allocation9 + $0x1e8] sm:$0xff]
    %v1146 = vld [vmem:[#allocation9 + $0x1f0] sm:$0xff]
    %v1147 = vld [vmem:[#allocation9 + $0x1f8] sm:$0xff]
    %s1148 = scalar_lea.vmem [#allocation3], 3
    %v1149 = vld [vmem:[%s1148] ss:$8 sm:$0xf]
    %v1151 = vlaneseq
    %v1152 = vshrl.u32 %v1151, 7
    %v1153 = vsub.s32 0, %v1152
    %v1154 = vrot.slane %v1149, %v1153
    %v1155 = vlaneseq
    %v1156 = vshrl.u32 %v1155, 7
    %v1157 = vsub.s32 1, %v1156
    %v1158 = vrot.slane %v1149, %v1157
    %v1159 = vlaneseq
    %v1160 = vshrl.u32 %v1159, 7
    %v1161 = vsub.s32 2, %v1160
    %v1162 = vrot.slane %v1149, %v1161
    %v1163 = vlaneseq
    %v1164 = vshrl.u32 %v1163, 7
    %v1165 = vsub.s32 3, %v1164
    %v1166 = vrot.slane %v1149, %v1165
    %1171 = vmatprep.subr.mxu0 %v1145
    %1172 = vmatpush1.msra.mxu0 %v1144
    %1173 = vmatprep.subr.mxu0 %v1141
    %1174 = vmatpush1.msra.mxu0 %v1140
    %1175 = vmatprep.subr.mxu0 %v1137
    %1176 = vmatpush1.msra.mxu0 %v1136
    %1177 = vmatprep.subr.mxu0 %v1133
    %1178 = vmatpush1.msra.mxu0 %v1132
    %1179 = vmatprep.subr.mxu0 %v1129
    %1180 = vmatpush1.msra.mxu0 %v1128
    %1181 = vmatprep.subr.mxu0 %v1125
    %1182 = vmatpush1.msra.mxu0 %v1124
    %1183 = vmatprep.subr.mxu0 %v1121
    %1184 = vmatpush1.msra.mxu0 %v1120
    %1185 = vmatprep.subr.mxu0 %v1117
    %1186 = vmatpush1.msra.mxu0 %v1116
    %1187 = vmatprep.subr.mxu0 %v1113
    %1188 = vmatpush1.msra.mxu0 %v1112
    %1189 = vmatprep.subr.mxu0 %v1109
    %1190 = vmatpush1.msra.mxu0 %v1108
    %1191 = vmatprep.subr.mxu0 %v1105
    %1192 = vmatpush1.msra.mxu0 %v1104
    %1193 = vmatprep.subr.mxu0 %v1101
    %1194 = vmatpush1.msra.mxu0 %v1100
    %1195 = vmatprep.subr.mxu0 %v1097
    %1196 = vmatpush1.msra.mxu0 %v1096
    %1197 = vmatprep.subr.mxu0 %v1093
    %1198 = vmatpush1.msra.mxu0 %v1092
    %1199 = vmatprep.subr.mxu0 %v1089
    %1200 = vmatpush1.msra.mxu0 %v1088
    %1201 = vmatprep.subr.mxu0 %v1085
    %1202 = vmatpush1.msra.mxu0 %v1084
    %1203 = vmatprep.subr.mxu0 0.0
    %1204 = vmatpush2.msra.mxu0 0.0
    %1205 = vmatprep.subr.mxu0 0.0
    %1206 = vmatpush2.msra.mxu0 0.0
    %1207 = vmatprep.subr.mxu0 0.0
    %1208 = vmatpush2.msra.mxu0 0.0
    %1209 = vmatprep.subr.mxu0 0.0
    %1210 = vmatpush2.msra.mxu0 0.0
    %1211 = vmatprep.subr.mxu0 0.0
    %1212 = vmatpush2.msra.mxu0 0.0
    %1213 = vmatprep.subr.mxu0 0.0
    %1214 = vmatpush2.msra.mxu0 0.0
    %1215 = vmatprep.subr.mxu0 0.0
    %1216 = vmatpush2.msra.mxu0 0.0
    %1217 = vmatprep.subr.mxu0 0.0
    %1218 = vmatpush2.msra.mxu0 0.0
    %1219 = vmatprep.subr.mxu0 0.0
    %1220 = vmatpush2.msra.mxu0 0.0
    %1221 = vmatprep.subr.mxu0 0.0
    %1222 = vmatpush2.msra.mxu0 0.0
    %1223 = vmatprep.subr.mxu0 0.0
    %1224 = vmatpush2.msra.mxu0 0.0
    %1225 = vmatprep.subr.mxu0 0.0
    %1226 = vmatpush2.msra.mxu0 0.0
    %1227 = vmatprep.subr.mxu0 0.0
    %1228 = vmatpush2.msra.mxu0 0.0
    %1229 = vmatprep.subr.mxu0 0.0
    %1230 = vmatpush2.msra.mxu0 0.0
    %1231 = vmatprep.subr.mxu0 0.0
    %1232 = vmatpush2.msra.mxu0 0.0
    %1233 = vmatprep.subr.mxu0 0.0
    %1234 = vmatpush2.msra.mxu0 0.0
    %1235 = vmatprep.mubr.f32.mxu0 0.0
    %1236 = vmatmul.mubr.f32.gmra.mxu0 %v1076
    %v1237 = vpop.f32.mrf.mxu0
    %v1238 = vadd.f32 %v1154, %v1237
    %v1239 = vpop.f32.mrf.mxu0
    %v1240 = vadd.f32 %v1158, %v1239
    %1241 = vdwg.mxu0
    %1242 = vmatprep.subr.mxu0 %v1147
    %1243 = vmatpush1.msra.mxu0 %v1146
    %1244 = vmatprep.subr.mxu0 %v1143
    %1245 = vmatpush1.msra.mxu0 %v1142
    %1246 = vmatprep.subr.mxu0 %v1139
    %1247 = vmatpush1.msra.mxu0 %v1138
    %1248 = vmatprep.subr.mxu0 %v1135
    %1249 = vmatpush1.msra.mxu0 %v1134
    %1250 = vmatprep.subr.mxu0 %v1131
    %1251 = vmatpush1.msra.mxu0 %v1130
    %1252 = vmatprep.subr.mxu0 %v1127
    %1253 = vmatpush1.msra.mxu0 %v1126
    %1254 = vmatprep.subr.mxu0 %v1123
    %1255 = vmatpush1.msra.mxu0 %v1122
    %1256 = vmatprep.subr.mxu0 %v1119
    %1257 = vmatpush1.msra.mxu0 %v1118
    %1258 = vmatprep.subr.mxu0 %v1115
    %1259 = vmatpush1.msra.mxu0 %v1114
    %1260 = vmatprep.subr.mxu0 %v1111
    %1261 = vmatpush1.msra.mxu0 %v1110
    %1262 = vmatprep.subr.mxu0 %v1107
    %1263 = vmatpush1.msra.mxu0 %v1106
    %1264 = vmatprep.subr.mxu0 %v1103
    %1265 = vmatpush1.msra.mxu0 %v1102
    %1266 = vmatprep.subr.mxu0 %v1099
    %1267 = vmatpush1.msra.mxu0 %v1098
    %1268 = vmatprep.subr.mxu0 %v1095
    %1269 = vmatpush1.msra.mxu0 %v1094
    %1270 = vmatprep.subr.mxu0 %v1091
    %1271 = vmatpush1.msra.mxu0 %v1090
    %1272 = vmatprep.subr.mxu0 %v1087
    %1273 = vmatpush1.msra.mxu0 %v1086
    %1274 = vmatprep.subr.mxu0 0.0
    %1275 = vmatpush2.msra.mxu0 0.0
    %1276 = vmatprep.subr.mxu0 0.0
    %1277 = vmatpush2.msra.mxu0 0.0
    %1278 = vmatprep.subr.mxu0 0.0
    %1279 = vmatpush2.msra.mxu0 0.0
    %1280 = vmatprep.subr.mxu0 0.0
    %1281 = vmatpush2.msra.mxu0 0.0
    %1282 = vmatprep.subr.mxu0 0.0
    %1283 = vmatpush2.msra.mxu0 0.0
    %1284 = vmatprep.subr.mxu0 0.0
    %1285 = vmatpush2.msra.mxu0 0.0
    %1286 = vmatprep.subr.mxu0 0.0
    %1287 = vmatpush2.msra.mxu0 0.0
    %1288 = vmatprep.subr.mxu0 0.0
    %1289 = vmatpush2.msra.mxu0 0.0
    %1290 = vmatprep.subr.mxu0 0.0
    %1291 = vmatpush2.msra.mxu0 0.0
    %1292 = vmatprep.subr.mxu0 0.0
    %1293 = vmatpush2.msra.mxu0 0.0
    %1294 = vmatprep.subr.mxu0 0.0
    %1295 = vmatpush2.msra.mxu0 0.0
    %1296 = vmatprep.subr.mxu0 0.0
    %1297 = vmatpush2.msra.mxu0 0.0
    %1298 = vmatprep.subr.mxu0 0.0
    %1299 = vmatpush2.msra.mxu0 0.0
    %1300 = vmatprep.subr.mxu0 0.0
    %1301 = vmatpush2.msra.mxu0 0.0
    %1302 = vmatprep.subr.mxu0 0.0
    %1303 = vmatpush2.msra.mxu0 0.0
    %1304 = vmatprep.subr.mxu0 0.0
    %1305 = vmatpush2.msra.mxu0 0.0
    %1306 = vmatprep.mubr.f32.mxu0 0.0
    %1307 = vmatmul.mubr.f32.gmra.mxu0 %v1076
    %v1308 = vpop.f32.mrf.mxu0
    %v1309 = vadd.f32 %v1162, %v1308
    %v1310 = vpop.f32.mrf.mxu0
    %v1311 = vadd.f32 %v1166, %v1310
    %1312 = vdwg.mxu0
    %v1313 = vxor.u32 %v1238, 2147483648
    %v1314 = vmul.f32 %v1313, 1.442695
    %v1315 = vpow.pop %v1314
    %v1316 = vadd.f32 %v1315, 1.0
    %v1317 = vrcp.pop %v1316
    %v1318 = vmul.f32 1.0, %v1317
    %v1319 = vxor.u32 %v1240, 2147483648
    %v1320 = vmul.f32 %v1319, 1.442695
    %v1321 = vpow.pop %v1320
    %v1322 = vadd.f32 %v1321, 1.0
    %v1323 = vrcp.pop %v1322
    %v1324 = vmul.f32 1.0, %v1323
    %v1325 = vtanh.pop %v1309
    %v1326 = vxor.u32 %v1311, 2147483648
    %v1327 = vmul.f32 %v1326, 1.442695
    %v1328 = vpow.pop %v1327
    %v1329 = vadd.f32 %v1328, 1.0
    %v1330 = vrcp.pop %v1329
    %v1331 = vmul.f32 1.0, %v1330
    %v1332 = vmul.f32 %v1324, %v1074
    %v1333 = vmul.f32 %v1318, %v1325
    %v1334 = vadd.f32 %v1332, %v1333
    %v1335 = vtanh.pop %v1334
    %v1336 = vmul.f32 %v1331, %v1335
    %v1337 = vxor.u32 %v1336, 2147483648
    %v1338 = vmul.f32 %v1337, 1.442695
    %v1339 = vpow.pop %v1338
    %v1340 = vadd.f32 %v1339, 1.0
    %v1341 = vrcp.pop %v1340
    %v1342 = vmul.f32 1.0, %v1341
    %1343 = vst [vmem:[#allocation2 + $0x3] sm:$0x1] %v1342
    %v1344 = vld [vmem:[#allocation9] sm:$0xff]
    %v1345 = vld [vmem:[#allocation9 + $0x8] sm:$0xff]
    %v1346 = vld [vmem:[#allocation9 + $0x10] sm:$0xff]
    %v1347 = vld [vmem:[#allocation9 + $0x18] sm:$0xff]
    %v1348 = vld [vmem:[#allocation9 + $0x20] sm:$0xff]
    %v1349 = vld [vmem:[#allocation9 + $0x28] sm:$0xff]
    %v1350 = vld [vmem:[#allocation9 + $0x30] sm:$0xff]
    %v1351 = vld [vmem:[#allocation9 + $0x38] sm:$0xff]
    %v1352 = vld [vmem:[#allocation9 + $0x40] sm:$0xff]
    %v1353 = vld [vmem:[#allocation9 + $0x48] sm:$0xff]
    %v1354 = vld [vmem:[#allocation9 + $0x50] sm:$0xff]
    %v1355 = vld [vmem:[#allocation9 + $0x58] sm:$0xff]
    %v1356 = vld [vmem:[#allocation9 + $0x60] sm:$0xff]
    %v1357 = vld [vmem:[#allocation9 + $0x68] sm:$0xff]
    %v1358 = vld [vmem:[#allocation9 + $0x70] sm:$0xff]
    %v1359 = vld [vmem:[#allocation9 + $0x78] sm:$0xff]
    %v1360 = vld [vmem:[#allocation9 + $0x80] sm:$0xff]
    %v1361 = vld [vmem:[#allocation9 + $0x88] sm:$0xff]
    %v1362 = vld [vmem:[#allocation9 + $0x90] sm:$0xff]
    %v1363 = vld [vmem:[#allocation9 + $0x98] sm:$0xff]
    %v1364 = vld [vmem:[#allocation9 + $0xa0] sm:$0xff]
    %v1365 = vld [vmem:[#allocation9 + $0xa8] sm:$0xff]
    %v1366 = vld [vmem:[#allocation9 + $0xb0] sm:$0xff]
    %v1367 = vld [vmem:[#allocation9 + $0xb8] sm:$0xff]
    %v1368 = vld [vmem:[#allocation9 + $0xc0] sm:$0xff]
    %v1369 = vld [vmem:[#allocation9 + $0xc8] sm:$0xff]
    %v1370 = vld [vmem:[#allocation9 + $0xd0] sm:$0xff]
    %v1371 = vld [vmem:[#allocation9 + $0xd8] sm:$0xff]
    %v1372 = vld [vmem:[#allocation9 + $0xe0] sm:$0xff]
    %v1373 = vld [vmem:[#allocation9 + $0xe8] sm:$0xff]
    %v1374 = vld [vmem:[#allocation9 + $0xf0] sm:$0xff]
    %v1375 = vld [vmem:[#allocation9 + $0xf8] sm:$0xff]
    %v1376 = vld [vmem:[#allocation9 + $0x100] sm:$0xff]
    %v1377 = vld [vmem:[#allocation9 + $0x108] sm:$0xff]
    %v1378 = vld [vmem:[#allocation9 + $0x110] sm:$0xff]
    %v1379 = vld [vmem:[#allocation9 + $0x118] sm:$0xff]
    %v1380 = vld [vmem:[#allocation9 + $0x120] sm:$0xff]
    %v1381 = vld [vmem:[#allocation9 + $0x128] sm:$0xff]
    %v1382 = vld [vmem:[#allocation9 + $0x130] sm:$0xff]
    %v1383 = vld [vmem:[#allocation9 + $0x138] sm:$0xff]
    %v1384 = vld [vmem:[#allocation9 + $0x140] sm:$0xff]
    %v1385 = vld [vmem:[#allocation9 + $0x148] sm:$0xff]
    %v1386 = vld [vmem:[#allocation9 + $0x150] sm:$0xff]
    %v1387 = vld [vmem:[#allocation9 + $0x158] sm:$0xff]
    %v1388 = vld [vmem:[#allocation9 + $0x160] sm:$0xff]
    %v1389 = vld [vmem:[#allocation9 + $0x168] sm:$0xff]
    %v1390 = vld [vmem:[#allocation9 + $0x170] sm:$0xff]
    %v1391 = vld [vmem:[#allocation9 + $0x178] sm:$0xff]
    %v1392 = vld [vmem:[#allocation9 + $0x180] sm:$0xff]
    %v1393 = vld [vmem:[#allocation9 + $0x188] sm:$0xff]
    %v1394 = vld [vmem:[#allocation9 + $0x190] sm:$0xff]
    %v1395 = vld [vmem:[#allocation9 + $0x198] sm:$0xff]
    %v1396 = vld [vmem:[#allocation9 + $0x1a0] sm:$0xff]
    %v1397 = vld [vmem:[#allocation9 + $0x1a8] sm:$0xff]
    %v1398 = vld [vmem:[#allocation9 + $0x1b0] sm:$0xff]
    %v1399 = vld [vmem:[#allocation9 + $0x1b8] sm:$0xff]
    %v1400 = vld [vmem:[#allocation9 + $0x1c0] sm:$0xff]
    %v1401 = vld [vmem:[#allocation9 + $0x1c8] sm:$0xff]
    %v1402 = vld [vmem:[#allocation9 + $0x1d0] sm:$0xff]
    %v1403 = vld [vmem:[#allocation9 + $0x1d8] sm:$0xff]
    %v1404 = vld [vmem:[#allocation9 + $0x1e0] sm:$0xff]
    %v1405 = vld [vmem:[#allocation9 + $0x1e8] sm:$0xff]
    %v1406 = vld [vmem:[#allocation9 + $0x1f0] sm:$0xff]
    %v1407 = vld [vmem:[#allocation9 + $0x1f8] sm:$0xff]
    %s1408 = scalar_lea.vmem [#allocation3], 4
    %v1409 = vld [vmem:[%s1408] ss:$8 sm:$0xf]
    %v1411 = vlaneseq
    %v1412 = vshrl.u32 %v1411, 7
    %v1413 = vsub.s32 0, %v1412
    %v1414 = vrot.slane %v1409, %v1413
    %v1415 = vlaneseq
    %v1416 = vshrl.u32 %v1415, 7
    %v1417 = vsub.s32 1, %v1416
    %v1418 = vrot.slane %v1409, %v1417
    %v1419 = vlaneseq
    %v1420 = vshrl.u32 %v1419, 7
    %v1421 = vsub.s32 2, %v1420
    %v1422 = vrot.slane %v1409, %v1421
    %v1423 = vlaneseq
    %v1424 = vshrl.u32 %v1423, 7
    %v1425 = vsub.s32 3, %v1424
    %v1426 = vrot.slane %v1409, %v1425
    %1431 = vmatprep.subr.mxu0 %v1405
    %1432 = vmatpush1.msra.mxu0 %v1404
    %1433 = vmatprep.subr.mxu0 %v1401
    %1434 = vmatpush1.msra.mxu0 %v1400
    %1435 = vmatprep.subr.mxu0 %v1397
    %1436 = vmatpush1.msra.mxu0 %v1396
    %1437 = vmatprep.subr.mxu0 %v1393
    %1438 = vmatpush1.msra.mxu0 %v1392
    %1439 = vmatprep.subr.mxu0 %v1389
    %1440 = vmatpush1.msra.mxu0 %v1388
    %1441 = vmatprep.subr.mxu0 %v1385
    %1442 = vmatpush1.msra.mxu0 %v1384
    %1443 = vmatprep.subr.mxu0 %v1381
    %1444 = vmatpush1.msra.mxu0 %v1380
    %1445 = vmatprep.subr.mxu0 %v1377
    %1446 = vmatpush1.msra.mxu0 %v1376
    %1447 = vmatprep.subr.mxu0 %v1373
    %1448 = vmatpush1.msra.mxu0 %v1372
    %1449 = vmatprep.subr.mxu0 %v1369
    %1450 = vmatpush1.msra.mxu0 %v1368
    %1451 = vmatprep.subr.mxu0 %v1365
    %1452 = vmatpush1.msra.mxu0 %v1364
    %1453 = vmatprep.subr.mxu0 %v1361
    %1454 = vmatpush1.msra.mxu0 %v1360
    %1455 = vmatprep.subr.mxu0 %v1357
    %1456 = vmatpush1.msra.mxu0 %v1356
    %1457 = vmatprep.subr.mxu0 %v1353
    %1458 = vmatpush1.msra.mxu0 %v1352
    %1459 = vmatprep.subr.mxu0 %v1349
    %1460 = vmatpush1.msra.mxu0 %v1348
    %1461 = vmatprep.subr.mxu0 %v1345
    %1462 = vmatpush1.msra.mxu0 %v1344
    %1463 = vmatprep.subr.mxu0 0.0
    %1464 = vmatpush2.msra.mxu0 0.0
    %1465 = vmatprep.subr.mxu0 0.0
    %1466 = vmatpush2.msra.mxu0 0.0
    %1467 = vmatprep.subr.mxu0 0.0
    %1468 = vmatpush2.msra.mxu0 0.0
    %1469 = vmatprep.subr.mxu0 0.0
    %1470 = vmatpush2.msra.mxu0 0.0
    %1471 = vmatprep.subr.mxu0 0.0
    %1472 = vmatpush2.msra.mxu0 0.0
    %1473 = vmatprep.subr.mxu0 0.0
    %1474 = vmatpush2.msra.mxu0 0.0
    %1475 = vmatprep.subr.mxu0 0.0
    %1476 = vmatpush2.msra.mxu0 0.0
    %1477 = vmatprep.subr.mxu0 0.0
    %1478 = vmatpush2.msra.mxu0 0.0
    %1479 = vmatprep.subr.mxu0 0.0
    %1480 = vmatpush2.msra.mxu0 0.0
    %1481 = vmatprep.subr.mxu0 0.0
    %1482 = vmatpush2.msra.mxu0 0.0
    %1483 = vmatprep.subr.mxu0 0.0
    %1484 = vmatpush2.msra.mxu0 0.0
    %1485 = vmatprep.subr.mxu0 0.0
    %1486 = vmatpush2.msra.mxu0 0.0
    %1487 = vmatprep.subr.mxu0 0.0
    %1488 = vmatpush2.msra.mxu0 0.0
    %1489 = vmatprep.subr.mxu0 0.0
    %1490 = vmatpush2.msra.mxu0 0.0
    %1491 = vmatprep.subr.mxu0 0.0
    %1492 = vmatpush2.msra.mxu0 0.0
    %1493 = vmatprep.subr.mxu0 0.0
    %1494 = vmatpush2.msra.mxu0 0.0
    %1495 = vmatprep.mubr.f32.mxu0 0.0
    %1496 = vmatmul.mubr.f32.gmra.mxu0 %v1336
    %v1497 = vpop.f32.mrf.mxu0
    %v1498 = vadd.f32 %v1414, %v1497
    %v1499 = vpop.f32.mrf.mxu0
    %v1500 = vadd.f32 %v1418, %v1499
    %1501 = vdwg.mxu0
    %1502 = vmatprep.subr.mxu0 %v1407
    %1503 = vmatpush1.msra.mxu0 %v1406
    %1504 = vmatprep.subr.mxu0 %v1403
    %1505 = vmatpush1.msra.mxu0 %v1402
    %1506 = vmatprep.subr.mxu0 %v1399
    %1507 = vmatpush1.msra.mxu0 %v1398
    %1508 = vmatprep.subr.mxu0 %v1395
    %1509 = vmatpush1.msra.mxu0 %v1394
    %1510 = vmatprep.subr.mxu0 %v1391
    %1511 = vmatpush1.msra.mxu0 %v1390
    %1512 = vmatprep.subr.mxu0 %v1387
    %1513 = vmatpush1.msra.mxu0 %v1386
    %1514 = vmatprep.subr.mxu0 %v1383
    %1515 = vmatpush1.msra.mxu0 %v1382
    %1516 = vmatprep.subr.mxu0 %v1379
    %1517 = vmatpush1.msra.mxu0 %v1378
    %1518 = vmatprep.subr.mxu0 %v1375
    %1519 = vmatpush1.msra.mxu0 %v1374
    %1520 = vmatprep.subr.mxu0 %v1371
    %1521 = vmatpush1.msra.mxu0 %v1370
    %1522 = vmatprep.subr.mxu0 %v1367
    %1523 = vmatpush1.msra.mxu0 %v1366
    %1524 = vmatprep.subr.mxu0 %v1363
    %1525 = vmatpush1.msra.mxu0 %v1362
    %1526 = vmatprep.subr.mxu0 %v1359
    %1527 = vmatpush1.msra.mxu0 %v1358
    %1528 = vmatprep.subr.mxu0 %v1355
    %1529 = vmatpush1.msra.mxu0 %v1354
    %1530 = vmatprep.subr.mxu0 %v1351
    %1531 = vmatpush1.msra.mxu0 %v1350
    %1532 = vmatprep.subr.mxu0 %v1347
    %1533 = vmatpush1.msra.mxu0 %v1346
    %1534 = vmatprep.subr.mxu0 0.0
    %1535 = vmatpush2.msra.mxu0 0.0
    %1536 = vmatprep.subr.mxu0 0.0
    %1537 = vmatpush2.msra.mxu0 0.0
    %1538 = vmatprep.subr.mxu0 0.0
    %1539 = vmatpush2.msra.mxu0 0.0
    %1540 = vmatprep.subr.mxu0 0.0
    %1541 = vmatpush2.msra.mxu0 0.0
    %1542 = vmatprep.subr.mxu0 0.0
    %1543 = vmatpush2.msra.mxu0 0.0
    %1544 = vmatprep.subr.mxu0 0.0
    %1545 = vmatpush2.msra.mxu0 0.0
    %1546 = vmatprep.subr.mxu0 0.0
    %1547 = vmatpush2.msra.mxu0 0.0
    %1548 = vmatprep.subr.mxu0 0.0
    %1549 = vmatpush2.msra.mxu0 0.0
    %1550 = vmatprep.subr.mxu0 0.0
    %1551 = vmatpush2.msra.mxu0 0.0
    %1552 = vmatprep.subr.mxu0 0.0
    %1553 = vmatpush2.msra.mxu0 0.0
    %1554 = vmatprep.subr.mxu0 0.0
    %1555 = vmatpush2.msra.mxu0 0.0
    %1556 = vmatprep.subr.mxu0 0.0
    %1557 = vmatpush2.msra.mxu0 0.0
    %1558 = vmatprep.subr.mxu0 0.0
    %1559 = vmatpush2.msra.mxu0 0.0
    %1560 = vmatprep.subr.mxu0 0.0
    %1561 = vmatpush2.msra.mxu0 0.0
    %1562 = vmatprep.subr.mxu0 0.0
    %1563 = vmatpush2.msra.mxu0 0.0
    %1564 = vmatprep.subr.mxu0 0.0
    %1565 = vmatpush2.msra.mxu0 0.0
    %1566 = vmatprep.mubr.f32.mxu0 0.0
    %1567 = vmatmul.mubr.f32.gmra.mxu0 %v1336
    %v1568 = vpop.f32.mrf.mxu0
    %v1569 = vadd.f32 %v1422, %v1568
    %v1570 = vpop.f32.mrf.mxu0
    %v1571 = vadd.f32 %v1426, %v1570
    %1572 = vdwg.mxu0
    %v1573 = vxor.u32 %v1498, 2147483648
    %v1574 = vmul.f32 %v1573, 1.442695
    %v1575 = vpow.pop %v1574
    %v1576 = vadd.f32 %v1575, 1.0
    %v1577 = vrcp.pop %v1576
    %v1578 = vmul.f32 1.0, %v1577
    %v1579 = vxor.u32 %v1500, 2147483648
    %v1580 = vmul.f32 %v1579, 1.442695
    %v1581 = vpow.pop %v1580
    %v1582 = vadd.f32 %v1581, 1.0
    %v1583 = vrcp.pop %v1582
    %v1584 = vmul.f32 1.0, %v1583
    %v1585 = vtanh.pop %v1569
    %v1586 = vxor.u32 %v1571, 2147483648
    %v1587 = vmul.f32 %v1586, 1.442695
    %v1588 = vpow.pop %v1587
    %v1589 = vadd.f32 %v1588, 1.0
    %v1590 = vrcp.pop %v1589
    %v1591 = vmul.f32 1.0, %v1590
    %v1592 = vmul.f32 %v1584, %v1334
    %v1593 = vmul.f32 %v1578, %v1585
    %v1594 = vadd.f32 %v1592, %v1593
    %v1595 = vtanh.pop %v1594
    %v1596 = vmul.f32 %v1591, %v1595
    %v1597 = vxor.u32 %v1596, 2147483648
    %v1598 = vmul.f32 %v1597, 1.442695
    %v1599 = vpow.pop %v1598
    %v1600 = vadd.f32 %v1599, 1.0
    %v1601 = vrcp.pop %v1600
    %v1602 = vmul.f32 1.0, %v1601
    %1603 = vst [vmem:[#allocation2 + $0x4] sm:$0x1] %v1602
    %v1604 = vld [vmem:[#allocation9] sm:$0xff]
    %v1605 = vld [vmem:[#allocation9 + $0x8] sm:$0xff]
    %v1606 = vld [vmem:[#allocation9 + $0x10] sm:$0xff]
    %v1607 = vld [vmem:[#allocation9 + $0x18] sm:$0xff]
    %v1608 = vld [vmem:[#allocation9 + $0x20] sm:$0xff]
    %v1609 = vld [vmem:[#allocation9 + $0x28] sm:$0xff]
    %v1610 = vld [vmem:[#allocation9 + $0x30] sm:$0xff]
    %v1611 = vld [vmem:[#allocation9 + $0x38] sm:$0xff]
    %v1612 = vld [vmem:[#allocation9 + $0x40] sm:$0xff]
    %v1613 = vld [vmem:[#allocation9 + $0x48] sm:$0xff]
    %v1614 = vld [vmem:[#allocation9 + $0x50] sm:$0xff]
    %v1615 = vld [vmem:[#allocation9 + $0x58] sm:$0xff]
    %v1616 = vld [vmem:[#allocation9 + $0x60] sm:$0xff]
    %v1617 = vld [vmem:[#allocation9 + $0x68] sm:$0xff]
    %v1618 = vld [vmem:[#allocation9 + $0x70] sm:$0xff]
    %v1619 = vld [vmem:[#allocation9 + $0x78] sm:$0xff]
    %v1620 = vld [vmem:[#allocation9 + $0x80] sm:$0xff]
    %v1621 = vld [vmem:[#allocation9 + $0x88] sm:$0xff]
    %v1622 = vld [vmem:[#allocation9 + $0x90] sm:$0xff]
    %v1623 = vld [vmem:[#allocation9 + $0x98] sm:$0xff]
    %v1624 = vld [vmem:[#allocation9 + $0xa0] sm:$0xff]
    %v1625 = vld [vmem:[#allocation9 + $0xa8] sm:$0xff]
    %v1626 = vld [vmem:[#allocation9 + $0xb0] sm:$0xff]
    %v1627 = vld [vmem:[#allocation9 + $0xb8] sm:$0xff]
    %v1628 = vld [vmem:[#allocation9 + $0xc0] sm:$0xff]
    %v1629 = vld [vmem:[#allocation9 + $0xc8] sm:$0xff]
    %v1630 = vld [vmem:[#allocation9 + $0xd0] sm:$0xff]
    %v1631 = vld [vmem:[#allocation9 + $0xd8] sm:$0xff]
    %v1632 = vld [vmem:[#allocation9 + $0xe0] sm:$0xff]
    %v1633 = vld [vmem:[#allocation9 + $0xe8] sm:$0xff]
    %v1634 = vld [vmem:[#allocation9 + $0xf0] sm:$0xff]
    %v1635 = vld [vmem:[#allocation9 + $0xf8] sm:$0xff]
    %v1636 = vld [vmem:[#allocation9 + $0x100] sm:$0xff]
    %v1637 = vld [vmem:[#allocation9 + $0x108] sm:$0xff]
    %v1638 = vld [vmem:[#allocation9 + $0x110] sm:$0xff]
    %v1639 = vld [vmem:[#allocation9 + $0x118] sm:$0xff]
    %v1640 = vld [vmem:[#allocation9 + $0x120] sm:$0xff]
    %v1641 = vld [vmem:[#allocation9 + $0x128] sm:$0xff]
    %v1642 = vld [vmem:[#allocation9 + $0x130] sm:$0xff]
    %v1643 = vld [vmem:[#allocation9 + $0x138] sm:$0xff]
    %v1644 = vld [vmem:[#allocation9 + $0x140] sm:$0xff]
    %v1645 = vld [vmem:[#allocation9 + $0x148] sm:$0xff]
    %v1646 = vld [vmem:[#allocation9 + $0x150] sm:$0xff]
    %v1647 = vld [vmem:[#allocation9 + $0x158] sm:$0xff]
    %v1648 = vld [vmem:[#allocation9 + $0x160] sm:$0xff]
    %v1649 = vld [vmem:[#allocation9 + $0x168] sm:$0xff]
    %v1650 = vld [vmem:[#allocation9 + $0x170] sm:$0xff]
    %v1651 = vld [vmem:[#allocation9 + $0x178] sm:$0xff]
    %v1652 = vld [vmem:[#allocation9 + $0x180] sm:$0xff]
    %v1653 = vld [vmem:[#allocation9 + $0x188] sm:$0xff]
    %v1654 = vld [vmem:[#allocation9 + $0x190] sm:$0xff]
    %v1655 = vld [vmem:[#allocation9 + $0x198] sm:$0xff]
    %v1656 = vld [vmem:[#allocation9 + $0x1a0] sm:$0xff]
    %v1657 = vld [vmem:[#allocation9 + $0x1a8] sm:$0xff]
    %v1658 = vld [vmem:[#allocation9 + $0x1b0] sm:$0xff]
    %v1659 = vld [vmem:[#allocation9 + $0x1b8] sm:$0xff]
    %v1660 = vld [vmem:[#allocation9 + $0x1c0] sm:$0xff]
    %v1661 = vld [vmem:[#allocation9 + $0x1c8] sm:$0xff]
    %v1662 = vld [vmem:[#allocation9 + $0x1d0] sm:$0xff]
    %v1663 = vld [vmem:[#allocation9 + $0x1d8] sm:$0xff]
    %v1664 = vld [vmem:[#allocation9 + $0x1e0] sm:$0xff]
    %v1665 = vld [vmem:[#allocation9 + $0x1e8] sm:$0xff]
    %v1666 = vld [vmem:[#allocation9 + $0x1f0] sm:$0xff]
    %v1667 = vld [vmem:[#allocation9 + $0x1f8] sm:$0xff]
    %s1668 = scalar_lea.vmem [#allocation3], 5
    %v1669 = vld [vmem:[%s1668] ss:$8 sm:$0xf]
    %v1671 = vlaneseq
    %v1672 = vshrl.u32 %v1671, 7
    %v1673 = vsub.s32 0, %v1672
    %v1674 = vrot.slane %v1669, %v1673
    %v1675 = vlaneseq
    %v1676 = vshrl.u32 %v1675, 7
    %v1677 = vsub.s32 1, %v1676
    %v1678 = vrot.slane %v1669, %v1677
    %v1679 = vlaneseq
    %v1680 = vshrl.u32 %v1679, 7
    %v1681 = vsub.s32 2, %v1680
    %v1682 = vrot.slane %v1669, %v1681
    %v1683 = vlaneseq
    %v1684 = vshrl.u32 %v1683, 7
    %v1685 = vsub.s32 3, %v1684
    %v1686 = vrot.slane %v1669, %v1685
    %1691 = vmatprep.subr.mxu0 %v1665
    %1692 = vmatpush1.msra.mxu0 %v1664
    %1693 = vmatprep.subr.mxu0 %v1661
    %1694 = vmatpush1.msra.mxu0 %v1660
    %1695 = vmatprep.subr.mxu0 %v1657
    %1696 = vmatpush1.msra.mxu0 %v1656
    %1697 = vmatprep.subr.mxu0 %v1653
    %1698 = vmatpush1.msra.mxu0 %v1652
    %1699 = vmatprep.subr.mxu0 %v1649
    %1700 = vmatpush1.msra.mxu0 %v1648
    %1701 = vmatprep.subr.mxu0 %v1645
    %1702 = vmatpush1.msra.mxu0 %v1644
    %1703 = vmatprep.subr.mxu0 %v1641
    %1704 = vmatpush1.msra.mxu0 %v1640
    %1705 = vmatprep.subr.mxu0 %v1637
    %1706 = vmatpush1.msra.mxu0 %v1636
    %1707 = vmatprep.subr.mxu0 %v1633
    %1708 = vmatpush1.msra.mxu0 %v1632
    %1709 = vmatprep.subr.mxu0 %v1629
    %1710 = vmatpush1.msra.mxu0 %v1628
    %1711 = vmatprep.subr.mxu0 %v1625
    %1712 = vmatpush1.msra.mxu0 %v1624
    %1713 = vmatprep.subr.mxu0 %v1621
    %1714 = vmatpush1.msra.mxu0 %v1620
    %1715 = vmatprep.subr.mxu0 %v1617
    %1716 = vmatpush1.msra.mxu0 %v1616
    %1717 = vmatprep.subr.mxu0 %v1613
    %1718 = vmatpush1.msra.mxu0 %v1612
    %1719 = vmatprep.subr.mxu0 %v1609
    %1720 = vmatpush1.msra.mxu0 %v1608
    %1721 = vmatprep.subr.mxu0 %v1605
    %1722 = vmatpush1.msra.mxu0 %v1604
    %1723 = vmatprep.subr.mxu0 0.0
    %1724 = vmatpush2.msra.mxu0 0.0
    %1725 = vmatprep.subr.mxu0 0.0
    %1726 = vmatpush2.msra.mxu0 0.0
    %1727 = vmatprep.subr.mxu0 0.0
    %1728 = vmatpush2.msra.mxu0 0.0
    %1729 = vmatprep.subr.mxu0 0.0
    %1730 = vmatpush2.msra.mxu0 0.0
    %1731 = vmatprep.subr.mxu0 0.0
    %1732 = vmatpush2.msra.mxu0 0.0
    %1733 = vmatprep.subr.mxu0 0.0
    %1734 = vmatpush2.msra.mxu0 0.0
    %1735 = vmatprep.subr.mxu0 0.0
    %1736 = vmatpush2.msra.mxu0 0.0
    %1737 = vmatprep.subr.mxu0 0.0
    %1738 = vmatpush2.msra.mxu0 0.0
    %1739 = vmatprep.subr.mxu0 0.0
    %1740 = vmatpush2.msra.mxu0 0.0
    %1741 = vmatprep.subr.mxu0 0.0
    %1742 = vmatpush2.msra.mxu0 0.0
    %1743 = vmatprep.subr.mxu0 0.0
    %1744 = vmatpush2.msra.mxu0 0.0
    %1745 = vmatprep.subr.mxu0 0.0
    %1746 = vmatpush2.msra.mxu0 0.0
    %1747 = vmatprep.subr.mxu0 0.0
    %1748 = vmatpush2.msra.mxu0 0.0
    %1749 = vmatprep.subr.mxu0 0.0
    %1750 = vmatpush2.msra.mxu0 0.0
    %1751 = vmatprep.subr.mxu0 0.0
    %1752 = vmatpush2.msra.mxu0 0.0
    %1753 = vmatprep.subr.mxu0 0.0
    %1754 = vmatpush2.msra.mxu0 0.0
    %1755 = vmatprep.mubr.f32.mxu0 0.0
    %1756 = vmatmul.mubr.f32.gmra.mxu0 %v1596
    %v1757 = vpop.f32.mrf.mxu0
    %v1758 = vadd.f32 %v1674, %v1757
    %v1759 = vpop.f32.mrf.mxu0
    %v1760 = vadd.f32 %v1678, %v1759
    %1761 = vdwg.mxu0
    %1762 = vmatprep.subr.mxu0 %v1667
    %1763 = vmatpush1.msra.mxu0 %v1666
    %1764 = vmatprep.subr.mxu0 %v1663
    %1765 = vmatpush1.msra.mxu0 %v1662
    %1766 = vmatprep.subr.mxu0 %v1659
    %1767 = vmatpush1.msra.mxu0 %v1658
    %1768 = vmatprep.subr.mxu0 %v1655
    %1769 = vmatpush1.msra.mxu0 %v1654
    %1770 = vmatprep.subr.mxu0 %v1651
    %1771 = vmatpush1.msra.mxu0 %v1650
    %1772 = vmatprep.subr.mxu0 %v1647
    %1773 = vmatpush1.msra.mxu0 %v1646
    %1774 = vmatprep.subr.mxu0 %v1643
    %1775 = vmatpush1.msra.mxu0 %v1642
    %1776 = vmatprep.subr.mxu0 %v1639
    %1777 = vmatpush1.msra.mxu0 %v1638
    %1778 = vmatprep.subr.mxu0 %v1635
    %1779 = vmatpush1.msra.mxu0 %v1634
    %1780 = vmatprep.subr.mxu0 %v1631
    %1781 = vmatpush1.msra.mxu0 %v1630
    %1782 = vmatprep.subr.mxu0 %v1627
    %1783 = vmatpush1.msra.mxu0 %v1626
    %1784 = vmatprep.subr.mxu0 %v1623
    %1785 = vmatpush1.msra.mxu0 %v1622
    %1786 = vmatprep.subr.mxu0 %v1619
    %1787 = vmatpush1.msra.mxu0 %v1618
    %1788 = vmatprep.subr.mxu0 %v1615
    %1789 = vmatpush1.msra.mxu0 %v1614
    %1790 = vmatprep.subr.mxu0 %v1611
    %1791 = vmatpush1.msra.mxu0 %v1610
    %1792 = vmatprep.subr.mxu0 %v1607
    %1793 = vmatpush1.msra.mxu0 %v1606
    %1794 = vmatprep.subr.mxu0 0.0
    %1795 = vmatpush2.msra.mxu0 0.0
    %1796 = vmatprep.subr.mxu0 0.0
    %1797 = vmatpush2.msra.mxu0 0.0
    %1798 = vmatprep.subr.mxu0 0.0
    %1799 = vmatpush2.msra.mxu0 0.0
    %1800 = vmatprep.subr.mxu0 0.0
    %1801 = vmatpush2.msra.mxu0 0.0
    %1802 = vmatprep.subr.mxu0 0.0
    %1803 = vmatpush2.msra.mxu0 0.0
    %1804 = vmatprep.subr.mxu0 0.0
    %1805 = vmatpush2.msra.mxu0 0.0
    %1806 = vmatprep.subr.mxu0 0.0
    %1807 = vmatpush2.msra.mxu0 0.0
    %1808 = vmatprep.subr.mxu0 0.0
    %1809 = vmatpush2.msra.mxu0 0.0
    %1810 = vmatprep.subr.mxu0 0.0
    %1811 = vmatpush2.msra.mxu0 0.0
    %1812 = vmatprep.subr.mxu0 0.0
    %1813 = vmatpush2.msra.mxu0 0.0
    %1814 = vmatprep.subr.mxu0 0.0
    %1815 = vmatpush2.msra.mxu0 0.0
    %1816 = vmatprep.subr.mxu0 0.0
    %1817 = vmatpush2.msra.mxu0 0.0
    %1818 = vmatprep.subr.mxu0 0.0
    %1819 = vmatpush2.msra.mxu0 0.0
    %1820 = vmatprep.subr.mxu0 0.0
    %1821 = vmatpush2.msra.mxu0 0.0
    %1822 = vmatprep.subr.mxu0 0.0
    %1823 = vmatpush2.msra.mxu0 0.0
    %1824 = vmatprep.subr.mxu0 0.0
    %1825 = vmatpush2.msra.mxu0 0.0
    %1826 = vmatprep.mubr.f32.mxu0 0.0
    %1827 = vmatmul.mubr.f32.gmra.mxu0 %v1596
    %v1828 = vpop.f32.mrf.mxu0
    %v1829 = vadd.f32 %v1682, %v1828
    %v1830 = vpop.f32.mrf.mxu0
    %v1831 = vadd.f32 %v1686, %v1830
    %1832 = vdwg.mxu0
    %v1833 = vxor.u32 %v1758, 2147483648
    %v1834 = vmul.f32 %v1833, 1.442695
    %v1835 = vpow.pop %v1834
    %v1836 = vadd.f32 %v1835, 1.0
    %v1837 = vrcp.pop %v1836
    %v1838 = vmul.f32 1.0, %v1837
    %v1839 = vxor.u32 %v1760, 2147483648
    %v1840 = vmul.f32 %v1839, 1.442695
    %v1841 = vpow.pop %v1840
    %v1842 = vadd.f32 %v1841, 1.0
    %v1843 = vrcp.pop %v1842
    %v1844 = vmul.f32 1.0, %v1843
    %v1845 = vtanh.pop %v1829
    %v1846 = vxor.u32 %v1831, 2147483648
    %v1847 = vmul.f32 %v1846, 1.442695
    %v1848 = vpow.pop %v1847
    %v1849 = vadd.f32 %v1848, 1.0
    %v1850 = vrcp.pop %v1849
    %v1851 = vmul.f32 1.0, %v1850
    %v1852 = vmul.f32 %v1844, %v1594
    %v1853 = vmul.f32 %v1838, %v1845
    %v1854 = vadd.f32 %v1852, %v1853
    %v1855 = vtanh.pop %v1854
    %v1856 = vmul.f32 %v1851, %v1855
    %v1857 = vxor.u32 %v1856, 2147483648
    %v1858 = vmul.f32 %v1857, 1.442695
    %v1859 = vpow.pop %v1858
    %v1860 = vadd.f32 %v1859, 1.0
    %v1861 = vrcp.pop %v1860
    %v1862 = vmul.f32 1.0, %v1861
    %1863 = vst [vmem:[#allocation2 + $0x5] sm:$0x1] %v1862
    %v1864 = vld [vmem:[#allocation9] sm:$0xff]
    %v1865 = vld [vmem:[#allocation9 + $0x8] sm:$0xff]
    %v1866 = vld [vmem:[#allocation9 + $0x10] sm:$0xff]
    %v1867 = vld [vmem:[#allocation9 + $0x18] sm:$0xff]
    %v1868 = vld [vmem:[#allocation9 + $0x20] sm:$0xff]
    %v1869 = vld [vmem:[#allocation9 + $0x28] sm:$0xff]
    %v1870 = vld [vmem:[#allocation9 + $0x30] sm:$0xff]
    %v1871 = vld [vmem:[#allocation9 + $0x38] sm:$0xff]
    %v1872 = vld [vmem:[#allocation9 + $0x40] sm:$0xff]
    %v1873 = vld [vmem:[#allocation9 + $0x48] sm:$0xff]
    %v1874 = vld [vmem:[#allocation9 + $0x50] sm:$0xff]
    %v1875 = vld [vmem:[#allocation9 + $0x58] sm:$0xff]
    %v1876 = vld [vmem:[#allocation9 + $0x60] sm:$0xff]
    %v1877 = vld [vmem:[#allocation9 + $0x68] sm:$0xff]
    %v1878 = vld [vmem:[#allocation9 + $0x70] sm:$0xff]
    %v1879 = vld [vmem:[#allocation9 + $0x78] sm:$0xff]
    %v1880 = vld [vmem:[#allocation9 + $0x80] sm:$0xff]
    %v1881 = vld [vmem:[#allocation9 + $0x88] sm:$0xff]
    %v1882 = vld [vmem:[#allocation9 + $0x90] sm:$0xff]
    %v1883 = vld [vmem:[#allocation9 + $0x98] sm:$0xff]
    %v1884 = vld [vmem:[#allocation9 + $0xa0] sm:$0xff]
    %v1885 = vld [vmem:[#allocation9 + $0xa8] sm:$0xff]
    %v1886 = vld [vmem:[#allocation9 + $0xb0] sm:$0xff]
    %v1887 = vld [vmem:[#allocation9 + $0xb8] sm:$0xff]
    %v1888 = vld [vmem:[#allocation9 + $0xc0] sm:$0xff]
    %v1889 = vld [vmem:[#allocation9 + $0xc8] sm:$0xff]
    %v1890 = vld [vmem:[#allocation9 + $0xd0] sm:$0xff]
    %v1891 = vld [vmem:[#allocation9 + $0xd8] sm:$0xff]
    %v1892 = vld [vmem:[#allocation9 + $0xe0] sm:$0xff]
    %v1893 = vld [vmem:[#allocation9 + $0xe8] sm:$0xff]
    %v1894 = vld [vmem:[#allocation9 + $0xf0] sm:$0xff]
    %v1895 = vld [vmem:[#allocation9 + $0xf8] sm:$0xff]
    %v1896 = vld [vmem:[#allocation9 + $0x100] sm:$0xff]
    %v1897 = vld [vmem:[#allocation9 + $0x108] sm:$0xff]
    %v1898 = vld [vmem:[#allocation9 + $0x110] sm:$0xff]
    %v1899 = vld [vmem:[#allocation9 + $0x118] sm:$0xff]
    %v1900 = vld [vmem:[#allocation9 + $0x120] sm:$0xff]
    %v1901 = vld [vmem:[#allocation9 + $0x128] sm:$0xff]
    %v1902 = vld [vmem:[#allocation9 + $0x130] sm:$0xff]
    %v1903 = vld [vmem:[#allocation9 + $0x138] sm:$0xff]
    %v1904 = vld [vmem:[#allocation9 + $0x140] sm:$0xff]
    %v1905 = vld [vmem:[#allocation9 + $0x148] sm:$0xff]
    %v1906 = vld [vmem:[#allocation9 + $0x150] sm:$0xff]
    %v1907 = vld [vmem:[#allocation9 + $0x158] sm:$0xff]
    %v1908 = vld [vmem:[#allocation9 + $0x160] sm:$0xff]
    %v1909 = vld [vmem:[#allocation9 + $0x168] sm:$0xff]
    %v1910 = vld [vmem:[#allocation9 + $0x170] sm:$0xff]
    %v1911 = vld [vmem:[#allocation9 + $0x178] sm:$0xff]
    %v1912 = vld [vmem:[#allocation9 + $0x180] sm:$0xff]
    %v1913 = vld [vmem:[#allocation9 + $0x188] sm:$0xff]
    %v1914 = vld [vmem:[#allocation9 + $0x190] sm:$0xff]
    %v1915 = vld [vmem:[#allocation9 + $0x198] sm:$0xff]
    %v1916 = vld [vmem:[#allocation9 + $0x1a0] sm:$0xff]
    %v1917 = vld [vmem:[#allocation9 + $0x1a8] sm:$0xff]
    %v1918 = vld [vmem:[#allocation9 + $0x1b0] sm:$0xff]
    %v1919 = vld [vmem:[#allocation9 + $0x1b8] sm:$0xff]
    %v1920 = vld [vmem:[#allocation9 + $0x1c0] sm:$0xff]
    %v1921 = vld [vmem:[#allocation9 + $0x1c8] sm:$0xff]
    %v1922 = vld [vmem:[#allocation9 + $0x1d0] sm:$0xff]
    %v1923 = vld [vmem:[#allocation9 + $0x1d8] sm:$0xff]
    %v1924 = vld [vmem:[#allocation9 + $0x1e0] sm:$0xff]
    %v1925 = vld [vmem:[#allocation9 + $0x1e8] sm:$0xff]
    %v1926 = vld [vmem:[#allocation9 + $0x1f0] sm:$0xff]
    %v1927 = vld [vmem:[#allocation9 + $0x1f8] sm:$0xff]
    %s1928 = scalar_lea.vmem [#allocation3], 6
    %v1929 = vld [vmem:[%s1928] ss:$8 sm:$0xf]
    %v1931 = vlaneseq
    %v1932 = vshrl.u32 %v1931, 7
    %v1933 = vsub.s32 0, %v1932
    %v1934 = vrot.slane %v1929, %v1933
    %v1935 = vlaneseq
    %v1936 = vshrl.u32 %v1935, 7
    %v1937 = vsub.s32 1, %v1936
    %v1938 = vrot.slane %v1929, %v1937
    %v1939 = vlaneseq
    %v1940 = vshrl.u32 %v1939, 7
    %v1941 = vsub.s32 2, %v1940
    %v1942 = vrot.slane %v1929, %v1941
    %v1943 = vlaneseq
    %v1944 = vshrl.u32 %v1943, 7
    %v1945 = vsub.s32 3, %v1944
    %v1946 = vrot.slane %v1929, %v1945
    %1951 = vmatprep.subr.mxu0 %v1925
    %1952 = vmatpush1.msra.mxu0 %v1924
    %1953 = vmatprep.subr.mxu0 %v1921
    %1954 = vmatpush1.msra.mxu0 %v1920
    %1955 = vmatprep.subr.mxu0 %v1917
    %1956 = vmatpush1.msra.mxu0 %v1916
    %1957 = vmatprep.subr.mxu0 %v1913
    %1958 = vmatpush1.msra.mxu0 %v1912
    %1959 = vmatprep.subr.mxu0 %v1909
    %1960 = vmatpush1.msra.mxu0 %v1908
    %1961 = vmatprep.subr.mxu0 %v1905
    %1962 = vmatpush1.msra.mxu0 %v1904
    %1963 = vmatprep.subr.mxu0 %v1901
    %1964 = vmatpush1.msra.mxu0 %v1900
    %1965 = vmatprep.subr.mxu0 %v1897
    %1966 = vmatpush1.msra.mxu0 %v1896
    %1967 = vmatprep.subr.mxu0 %v1893
    %1968 = vmatpush1.msra.mxu0 %v1892
    %1969 = vmatprep.subr.mxu0 %v1889
    %1970 = vmatpush1.msra.mxu0 %v1888
    %1971 = vmatprep.subr.mxu0 %v1885
    %1972 = vmatpush1.msra.mxu0 %v1884
    %1973 = vmatprep.subr.mxu0 %v1881
    %1974 = vmatpush1.msra.mxu0 %v1880
    %1975 = vmatprep.subr.mxu0 %v1877
    %1976 = vmatpush1.msra.mxu0 %v1876
    %1977 = vmatprep.subr.mxu0 %v1873
    %1978 = vmatpush1.msra.mxu0 %v1872
    %1979 = vmatprep.subr.mxu0 %v1869
    %1980 = vmatpush1.msra.mxu0 %v1868
    %1981 = vmatprep.subr.mxu0 %v1865
    %1982 = vmatpush1.msra.mxu0 %v1864
    %1983 = vmatprep.subr.mxu0 0.0
    %1984 = vmatpush2.msra.mxu0 0.0
    %1985 = vmatprep.subr.mxu0 0.0
    %1986 = vmatpush2.msra.mxu0 0.0
    %1987 = vmatprep.subr.mxu0 0.0
    %1988 = vmatpush2.msra.mxu0 0.0
    %1989 = vmatprep.subr.mxu0 0.0
    %1990 = vmatpush2.msra.mxu0 0.0
    %1991 = vmatprep.subr.mxu0 0.0
    %1992 = vmatpush2.msra.mxu0 0.0
    %1993 = vmatprep.subr.mxu0 0.0
    %1994 = vmatpush2.msra.mxu0 0.0
    %1995 = vmatprep.subr.mxu0 0.0
    %1996 = vmatpush2.msra.mxu0 0.0
    %1997 = vmatprep.subr.mxu0 0.0
    %1998 = vmatpush2.msra.mxu0 0.0
    %1999 = vmatprep.subr.mxu0 0.0
    %2000 = vmatpush2.msra.mxu0 0.0
    %2001 = vmatprep.subr.mxu0 0.0
    %2002 = vmatpush2.msra.mxu0 0.0
    %2003 = vmatprep.subr.mxu0 0.0
    %2004 = vmatpush2.msra.mxu0 0.0
    %2005 = vmatprep.subr.mxu0 0.0
    %2006 = vmatpush2.msra.mxu0 0.0
    %2007 = vmatprep.subr.mxu0 0.0
    %2008 = vmatpush2.msra.mxu0 0.0
    %2009 = vmatprep.subr.mxu0 0.0
    %2010 = vmatpush2.msra.mxu0 0.0
    %2011 = vmatprep.subr.mxu0 0.0
    %2012 = vmatpush2.msra.mxu0 0.0
    %2013 = vmatprep.subr.mxu0 0.0
    %2014 = vmatpush2.msra.mxu0 0.0
    %2015 = vmatprep.mubr.f32.mxu0 0.0
    %2016 = vmatmul.mubr.f32.gmra.mxu0 %v1856
    %v2017 = vpop.f32.mrf.mxu0
    %v2018 = vadd.f32 %v1934, %v2017
    %v2019 = vpop.f32.mrf.mxu0
    %v2020 = vadd.f32 %v1938, %v2019
    %2021 = vdwg.mxu0
    %2022 = vmatprep.subr.mxu0 %v1927
    %2023 = vmatpush1.msra.mxu0 %v1926
    %2024 = vmatprep.subr.mxu0 %v1923
    %2025 = vmatpush1.msra.mxu0 %v1922
    %2026 = vmatprep.subr.mxu0 %v1919
    %2027 = vmatpush1.msra.mxu0 %v1918
    %2028 = vmatprep.subr.mxu0 %v1915
    %2029 = vmatpush1.msra.mxu0 %v1914
    %2030 = vmatprep.subr.mxu0 %v1911
    %2031 = vmatpush1.msra.mxu0 %v1910
    %2032 = vmatprep.subr.mxu0 %v1907
    %2033 = vmatpush1.msra.mxu0 %v1906
    %2034 = vmatprep.subr.mxu0 %v1903
    %2035 = vmatpush1.msra.mxu0 %v1902
    %2036 = vmatprep.subr.mxu0 %v1899
    %2037 = vmatpush1.msra.mxu0 %v1898
    %2038 = vmatprep.subr.mxu0 %v1895
    %2039 = vmatpush1.msra.mxu0 %v1894
    %2040 = vmatprep.subr.mxu0 %v1891
    %2041 = vmatpush1.msra.mxu0 %v1890
    %2042 = vmatprep.subr.mxu0 %v1887
    %2043 = vmatpush1.msra.mxu0 %v1886
    %2044 = vmatprep.subr.mxu0 %v1883
    %2045 = vmatpush1.msra.mxu0 %v1882
    %2046 = vmatprep.subr.mxu0 %v1879
    %2047 = vmatpush1.msra.mxu0 %v1878
    %2048 = vmatprep.subr.mxu0 %v1875
    %2049 = vmatpush1.msra.mxu0 %v1874
    %2050 = vmatprep.subr.mxu0 %v1871
    %2051 = vmatpush1.msra.mxu0 %v1870
    %2052 = vmatprep.subr.mxu0 %v1867
    %2053 = vmatpush1.msra.mxu0 %v1866
    %2054 = vmatprep.subr.mxu0 0.0
    %2055 = vmatpush2.msra.mxu0 0.0
    %2056 = vmatprep.subr.mxu0 0.0
    %2057 = vmatpush2.msra.mxu0 0.0
    %2058 = vmatprep.subr.mxu0 0.0
    %2059 = vmatpush2.msra.mxu0 0.0
    %2060 = vmatprep.subr.mxu0 0.0
    %2061 = vmatpush2.msra.mxu0 0.0
    %2062 = vmatprep.subr.mxu0 0.0
    %2063 = vmatpush2.msra.mxu0 0.0
    %2064 = vmatprep.subr.mxu0 0.0
    %2065 = vmatpush2.msra.mxu0 0.0
    %2066 = vmatprep.subr.mxu0 0.0
    %2067 = vmatpush2.msra.mxu0 0.0
    %2068 = vmatprep.subr.mxu0 0.0
    %2069 = vmatpush2.msra.mxu0 0.0
    %2070 = vmatprep.subr.mxu0 0.0
    %2071 = vmatpush2.msra.mxu0 0.0
    %2072 = vmatprep.subr.mxu0 0.0
    %2073 = vmatpush2.msra.mxu0 0.0
    %2074 = vmatprep.subr.mxu0 0.0
    %2075 = vmatpush2.msra.mxu0 0.0
    %2076 = vmatprep.subr.mxu0 0.0
    %2077 = vmatpush2.msra.mxu0 0.0
    %2078 = vmatprep.subr.mxu0 0.0
    %2079 = vmatpush2.msra.mxu0 0.0
    %2080 = vmatprep.subr.mxu0 0.0
    %2081 = vmatpush2.msra.mxu0 0.0
    %2082 = vmatprep.subr.mxu0 0.0
    %2083 = vmatpush2.msra.mxu0 0.0
    %2084 = vmatprep.subr.mxu0 0.0
    %2085 = vmatpush2.msra.mxu0 0.0
    %2086 = vmatprep.mubr.f32.mxu0 0.0
    %2087 = vmatmul.mubr.f32.gmra.mxu0 %v1856
    %v2088 = vpop.f32.mrf.mxu0
    %v2089 = vadd.f32 %v1942, %v2088
    %v2090 = vpop.f32.mrf.mxu0
    %v2091 = vadd.f32 %v1946, %v2090
    %2092 = vdwg.mxu0
    %v2093 = vxor.u32 %v2018, 2147483648
    %v2094 = vmul.f32 %v2093, 1.442695
    %v2095 = vpow.pop %v2094
    %v2096 = vadd.f32 %v2095, 1.0
    %v2097 = vrcp.pop %v2096
    %v2098 = vmul.f32 1.0, %v2097
    %v2099 = vxor.u32 %v2020, 2147483648
    %v2100 = vmul.f32 %v2099, 1.442695
    %v2101 = vpow.pop %v2100
    %v2102 = vadd.f32 %v2101, 1.0
    %v2103 = vrcp.pop %v2102
    %v2104 = vmul.f32 1.0, %v2103
    %v2105 = vtanh.pop %v2089
    %v2106 = vxor.u32 %v2091, 2147483648
    %v2107 = vmul.f32 %v2106, 1.442695
    %v2108 = vpow.pop %v2107
    %v2109 = vadd.f32 %v2108, 1.0
    %v2110 = vrcp.pop %v2109
    %v2111 = vmul.f32 1.0, %v2110
    %v2112 = vmul.f32 %v2104, %v1854
    %v2113 = vmul.f32 %v2098, %v2105
    %v2114 = vadd.f32 %v2112, %v2113
    %v2115 = vtanh.pop %v2114
    %v2116 = vmul.f32 %v2111, %v2115
    %v2117 = vxor.u32 %v2116, 2147483648
    %v2118 = vmul.f32 %v2117, 1.442695
    %v2119 = vpow.pop %v2118
    %v2120 = vadd.f32 %v2119, 1.0
    %v2121 = vrcp.pop %v2120
    %v2122 = vmul.f32 1.0, %v2121
    %2123 = vst [vmem:[#allocation2 + $0x6] sm:$0x1] %v2122
    %v2124 = vld [vmem:[#allocation9] sm:$0xff]
    %v2125 = vld [vmem:[#allocation9 + $0x8] sm:$0xff]
    %v2126 = vld [vmem:[#allocation9 + $0x10] sm:$0xff]
    %v2127 = vld [vmem:[#allocation9 + $0x18] sm:$0xff]
    %v2128 = vld [vmem:[#allocation9 + $0x20] sm:$0xff]
    %v2129 = vld [vmem:[#allocation9 + $0x28] sm:$0xff]
    %v2130 = vld [vmem:[#allocation9 + $0x30] sm:$0xff]
    %v2131 = vld [vmem:[#allocation9 + $0x38] sm:$0xff]
    %v2132 = vld [vmem:[#allocation9 + $0x40] sm:$0xff]
    %v2133 = vld [vmem:[#allocation9 + $0x48] sm:$0xff]
    %v2134 = vld [vmem:[#allocation9 + $0x50] sm:$0xff]
    %v2135 = vld [vmem:[#allocation9 + $0x58] sm:$0xff]
    %v2136 = vld [vmem:[#allocation9 + $0x60] sm:$0xff]
    %v2137 = vld [vmem:[#allocation9 + $0x68] sm:$0xff]
    %v2138 = vld [vmem:[#allocation9 + $0x70] sm:$0xff]
    %v2139 = vld [vmem:[#allocation9 + $0x78] sm:$0xff]
    %v2140 = vld [vmem:[#allocation9 + $0x80] sm:$0xff]
    %v2141 = vld [vmem:[#allocation9 + $0x88] sm:$0xff]
    %v2142 = vld [vmem:[#allocation9 + $0x90] sm:$0xff]
    %v2143 = vld [vmem:[#allocation9 + $0x98] sm:$0xff]
    %v2144 = vld [vmem:[#allocation9 + $0xa0] sm:$0xff]
    %v2145 = vld [vmem:[#allocation9 + $0xa8] sm:$0xff]
    %v2146 = vld [vmem:[#allocation9 + $0xb0] sm:$0xff]
    %v2147 = vld [vmem:[#allocation9 + $0xb8] sm:$0xff]
    %v2148 = vld [vmem:[#allocation9 + $0xc0] sm:$0xff]
    %v2149 = vld [vmem:[#allocation9 + $0xc8] sm:$0xff]
    %v2150 = vld [vmem:[#allocation9 + $0xd0] sm:$0xff]
    %v2151 = vld [vmem:[#allocation9 + $0xd8] sm:$0xff]
    %v2152 = vld [vmem:[#allocation9 + $0xe0] sm:$0xff]
    %v2153 = vld [vmem:[#allocation9 + $0xe8] sm:$0xff]
    %v2154 = vld [vmem:[#allocation9 + $0xf0] sm:$0xff]
    %v2155 = vld [vmem:[#allocation9 + $0xf8] sm:$0xff]
    %v2156 = vld [vmem:[#allocation9 + $0x100] sm:$0xff]
    %v2157 = vld [vmem:[#allocation9 + $0x108] sm:$0xff]
    %v2158 = vld [vmem:[#allocation9 + $0x110] sm:$0xff]
    %v2159 = vld [vmem:[#allocation9 + $0x118] sm:$0xff]
    %v2160 = vld [vmem:[#allocation9 + $0x120] sm:$0xff]
    %v2161 = vld [vmem:[#allocation9 + $0x128] sm:$0xff]
    %v2162 = vld [vmem:[#allocation9 + $0x130] sm:$0xff]
    %v2163 = vld [vmem:[#allocation9 + $0x138] sm:$0xff]
    %v2164 = vld [vmem:[#allocation9 + $0x140] sm:$0xff]
    %v2165 = vld [vmem:[#allocation9 + $0x148] sm:$0xff]
    %v2166 = vld [vmem:[#allocation9 + $0x150] sm:$0xff]
    %v2167 = vld [vmem:[#allocation9 + $0x158] sm:$0xff]
    %v2168 = vld [vmem:[#allocation9 + $0x160] sm:$0xff]
    %v2169 = vld [vmem:[#allocation9 + $0x168] sm:$0xff]
    %v2170 = vld [vmem:[#allocation9 + $0x170] sm:$0xff]
    %v2171 = vld [vmem:[#allocation9 + $0x178] sm:$0xff]
    %v2172 = vld [vmem:[#allocation9 + $0x180] sm:$0xff]
    %v2173 = vld [vmem:[#allocation9 + $0x188] sm:$0xff]
    %v2174 = vld [vmem:[#allocation9 + $0x190] sm:$0xff]
    %v2175 = vld [vmem:[#allocation9 + $0x198] sm:$0xff]
    %v2176 = vld [vmem:[#allocation9 + $0x1a0] sm:$0xff]
    %v2177 = vld [vmem:[#allocation9 + $0x1a8] sm:$0xff]
    %v2178 = vld [vmem:[#allocation9 + $0x1b0] sm:$0xff]
    %v2179 = vld [vmem:[#allocation9 + $0x1b8] sm:$0xff]
    %v2180 = vld [vmem:[#allocation9 + $0x1c0] sm:$0xff]
    %v2181 = vld [vmem:[#allocation9 + $0x1c8] sm:$0xff]
    %v2182 = vld [vmem:[#allocation9 + $0x1d0] sm:$0xff]
    %v2183 = vld [vmem:[#allocation9 + $0x1d8] sm:$0xff]
    %v2184 = vld [vmem:[#allocation9 + $0x1e0] sm:$0xff]
    %v2185 = vld [vmem:[#allocation9 + $0x1e8] sm:$0xff]
    %v2186 = vld [vmem:[#allocation9 + $0x1f0] sm:$0xff]
    %v2187 = vld [vmem:[#allocation9 + $0x1f8] sm:$0xff]
    %s2188 = scalar_lea.vmem [#allocation3], 7
    %v2189 = vld [vmem:[%s2188] ss:$8 sm:$0xf]
    %v2191 = vlaneseq
    %v2192 = vshrl.u32 %v2191, 7
    %v2193 = vsub.s32 0, %v2192
    %v2194 = vrot.slane %v2189, %v2193
    %v2195 = vlaneseq
    %v2196 = vshrl.u32 %v2195, 7
    %v2197 = vsub.s32 1, %v2196
    %v2198 = vrot.slane %v2189, %v2197
    %v2199 = vlaneseq
    %v2200 = vshrl.u32 %v2199, 7
    %v2201 = vsub.s32 2, %v2200
    %v2202 = vrot.slane %v2189, %v2201
    %v2203 = vlaneseq
    %v2204 = vshrl.u32 %v2203, 7
    %v2205 = vsub.s32 3, %v2204
    %v2206 = vrot.slane %v2189, %v2205
    %2211 = vmatprep.subr.mxu0 %v2185
    %2212 = vmatpush1.msra.mxu0 %v2184
    %2213 = vmatprep.subr.mxu0 %v2181
    %2214 = vmatpush1.msra.mxu0 %v2180
    %2215 = vmatprep.subr.mxu0 %v2177
    %2216 = vmatpush1.msra.mxu0 %v2176
    %2217 = vmatprep.subr.mxu0 %v2173
    %2218 = vmatpush1.msra.mxu0 %v2172
    %2219 = vmatprep.subr.mxu0 %v2169
    %2220 = vmatpush1.msra.mxu0 %v2168
    %2221 = vmatprep.subr.mxu0 %v2165
    %2222 = vmatpush1.msra.mxu0 %v2164
    %2223 = vmatprep.subr.mxu0 %v2161
    %2224 = vmatpush1.msra.mxu0 %v2160
    %2225 = vmatprep.subr.mxu0 %v2157
    %2226 = vmatpush1.msra.mxu0 %v2156
    %2227 = vmatprep.subr.mxu0 %v2153
    %2228 = vmatpush1.msra.mxu0 %v2152
    %2229 = vmatprep.subr.mxu0 %v2149
    %2230 = vmatpush1.msra.mxu0 %v2148
    %2231 = vmatprep.subr.mxu0 %v2145
    %2232 = vmatpush1.msra.mxu0 %v2144
    %2233 = vmatprep.subr.mxu0 %v2141
    %2234 = vmatpush1.msra.mxu0 %v2140
    %2235 = vmatprep.subr.mxu0 %v2137
    %2236 = vmatpush1.msra.mxu0 %v2136
    %2237 = vmatprep.subr.mxu0 %v2133
    %2238 = vmatpush1.msra.mxu0 %v2132
    %2239 = vmatprep.subr.mxu0 %v2129
    %2240 = vmatpush1.msra.mxu0 %v2128
    %2241 = vmatprep.subr.mxu0 %v2125
    %2242 = vmatpush1.msra.mxu0 %v2124
    %2243 = vmatprep.subr.mxu0 0.0
    %2244 = vmatpush2.msra.mxu0 0.0
    %2245 = vmatprep.subr.mxu0 0.0
    %2246 = vmatpush2.msra.mxu0 0.0
    %2247 = vmatprep.subr.mxu0 0.0
    %2248 = vmatpush2.msra.mxu0 0.0
    %2249 = vmatprep.subr.mxu0 0.0
    %2250 = vmatpush2.msra.mxu0 0.0
    %2251 = vmatprep.subr.mxu0 0.0
    %2252 = vmatpush2.msra.mxu0 0.0
    %2253 = vmatprep.subr.mxu0 0.0
    %2254 = vmatpush2.msra.mxu0 0.0
    %2255 = vmatprep.subr.mxu0 0.0
    %2256 = vmatpush2.msra.mxu0 0.0
    %2257 = vmatprep.subr.mxu0 0.0
    %2258 = vmatpush2.msra.mxu0 0.0
    %2259 = vmatprep.subr.mxu0 0.0
    %2260 = vmatpush2.msra.mxu0 0.0
    %2261 = vmatprep.subr.mxu0 0.0
    %2262 = vmatpush2.msra.mxu0 0.0
    %2263 = vmatprep.subr.mxu0 0.0
    %2264 = vmatpush2.msra.mxu0 0.0
    %2265 = vmatprep.subr.mxu0 0.0
    %2266 = vmatpush2.msra.mxu0 0.0
    %2267 = vmatprep.subr.mxu0 0.0
    %2268 = vmatpush2.msra.mxu0 0.0
    %2269 = vmatprep.subr.mxu0 0.0
    %2270 = vmatpush2.msra.mxu0 0.0
    %2271 = vmatprep.subr.mxu0 0.0
    %2272 = vmatpush2.msra.mxu0 0.0
    %2273 = vmatprep.subr.mxu0 0.0
    %2274 = vmatpush2.msra.mxu0 0.0
    %2275 = vmatprep.mubr.f32.mxu0 0.0
    %2276 = vmatmul.mubr.f32.gmra.mxu0 %v2116
    %v2277 = vpop.f32.mrf.mxu0
    %v2278 = vadd.f32 %v2194, %v2277
    %v2279 = vpop.f32.mrf.mxu0
    %v2280 = vadd.f32 %v2198, %v2279
    %2281 = vdwg.mxu0
    %2282 = vmatprep.subr.mxu0 %v2187
    %2283 = vmatpush1.msra.mxu0 %v2186
    %2284 = vmatprep.subr.mxu0 %v2183
    %2285 = vmatpush1.msra.mxu0 %v2182
    %2286 = vmatprep.subr.mxu0 %v2179
    %2287 = vmatpush1.msra.mxu0 %v2178
    %2288 = vmatprep.subr.mxu0 %v2175
    %2289 = vmatpush1.msra.mxu0 %v2174
    %2290 = vmatprep.subr.mxu0 %v2171
    %2291 = vmatpush1.msra.mxu0 %v2170
    %2292 = vmatprep.subr.mxu0 %v2167
    %2293 = vmatpush1.msra.mxu0 %v2166
    %2294 = vmatprep.subr.mxu0 %v2163
    %2295 = vmatpush1.msra.mxu0 %v2162
    %2296 = vmatprep.subr.mxu0 %v2159
    %2297 = vmatpush1.msra.mxu0 %v2158
    %2298 = vmatprep.subr.mxu0 %v2155
    %2299 = vmatpush1.msra.mxu0 %v2154
    %2300 = vmatprep.subr.mxu0 %v2151
    %2301 = vmatpush1.msra.mxu0 %v2150
    %2302 = vmatprep.subr.mxu0 %v2147
    %2303 = vmatpush1.msra.mxu0 %v2146
    %2304 = vmatprep.subr.mxu0 %v2143
    %2305 = vmatpush1.msra.mxu0 %v2142
    %2306 = vmatprep.subr.mxu0 %v2139
    %2307 = vmatpush1.msra.mxu0 %v2138
    %2308 = vmatprep.subr.mxu0 %v2135
    %2309 = vmatpush1.msra.mxu0 %v2134
    %2310 = vmatprep.subr.mxu0 %v2131
    %2311 = vmatpush1.msra.mxu0 %v2130
    %2312 = vmatprep.subr.mxu0 %v2127
    %2313 = vmatpush1.msra.mxu0 %v2126
    %2314 = vmatprep.subr.mxu0 0.0
    %2315 = vmatpush2.msra.mxu0 0.0
    %2316 = vmatprep.subr.mxu0 0.0
    %2317 = vmatpush2.msra.mxu0 0.0
    %2318 = vmatprep.subr.mxu0 0.0
    %2319 = vmatpush2.msra.mxu0 0.0
    %2320 = vmatprep.subr.mxu0 0.0
    %2321 = vmatpush2.msra.mxu0 0.0
    %2322 = vmatprep.subr.mxu0 0.0
    %2323 = vmatpush2.msra.mxu0 0.0
    %2324 = vmatprep.subr.mxu0 0.0
    %2325 = vmatpush2.msra.mxu0 0.0
    %2326 = vmatprep.subr.mxu0 0.0
    %2327 = vmatpush2.msra.mxu0 0.0
    %2328 = vmatprep.subr.mxu0 0.0
    %2329 = vmatpush2.msra.mxu0 0.0
    %2330 = vmatprep.subr.mxu0 0.0
    %2331 = vmatpush2.msra.mxu0 0.0
    %2332 = vmatprep.subr.mxu0 0.0
    %2333 = vmatpush2.msra.mxu0 0.0
    %2334 = vmatprep.subr.mxu0 0.0
    %2335 = vmatpush2.msra.mxu0 0.0
    %2336 = vmatprep.subr.mxu0 0.0
    %2337 = vmatpush2.msra.mxu0 0.0
    %2338 = vmatprep.subr.mxu0 0.0
    %2339 = vmatpush2.msra.mxu0 0.0
    %2340 = vmatprep.subr.mxu0 0.0
    %2341 = vmatpush2.msra.mxu0 0.0
    %2342 = vmatprep.subr.mxu0 0.0
    %2343 = vmatpush2.msra.mxu0 0.0
    %2344 = vmatprep.subr.mxu0 0.0
    %2345 = vmatpush2.msra.mxu0 0.0
    %2346 = vmatprep.mubr.f32.mxu0 0.0
    %2347 = vmatmul.mubr.f32.gmra.mxu0 %v2116
    %v2348 = vpop.f32.mrf.mxu0
    %v2349 = vadd.f32 %v2202, %v2348
    %v2350 = vpop.f32.mrf.mxu0
    %v2351 = vadd.f32 %v2206, %v2350
    %2352 = vdwg.mxu0
    %v2353 = vxor.u32 %v2278, 2147483648
    %v2354 = vmul.f32 %v2353, 1.442695
    %v2355 = vpow.pop %v2354
    %v2356 = vadd.f32 %v2355, 1.0
    %v2357 = vrcp.pop %v2356
    %v2358 = vmul.f32 1.0, %v2357
    %v2359 = vxor.u32 %v2280, 2147483648
    %v2360 = vmul.f32 %v2359, 1.442695
    %v2361 = vpow.pop %v2360
    %v2362 = vadd.f32 %v2361, 1.0
    %v2363 = vrcp.pop %v2362
    %v2364 = vmul.f32 1.0, %v2363
    %v2365 = vtanh.pop %v2349
    %v2366 = vxor.u32 %v2351, 2147483648
    %v2367 = vmul.f32 %v2366, 1.442695
    %v2368 = vpow.pop %v2367
    %v2369 = vadd.f32 %v2368, 1.0
    %v2370 = vrcp.pop %v2369
    %v2371 = vmul.f32 1.0, %v2370
    %v2372 = vmul.f32 %v2364, %v2114
    %v2373 = vmul.f32 %v2358, %v2365
    %v2374 = vadd.f32 %v2372, %v2373
    %v2375 = vtanh.pop %v2374
    %v2376 = vmul.f32 %v2371, %v2375
    %v2377 = vxor.u32 %v2376, 2147483648
    %v2378 = vmul.f32 %v2377, 1.442695
    %v2379 = vpow.pop %v2378
    %v2380 = vadd.f32 %v2379, 1.0
    %v2381 = vrcp.pop %v2380
    %v2382 = vmul.f32 1.0, %v2381
    %2383 = vst [vmem:[#allocation2 + $0x7] sm:$0x1] %v2382
    %v2384 = vld [vmem:[#allocation2] sm:$0xff]
    %s2385 = scalar_lea.vmem [#allocation7], 512
    %v2386 = vld [vmem:[%s2385] sm:$0xff]
    %v2387 = vld [vmem:[%s2385 + $0x8] sm:$0xff]
    %v2388 = vld [vmem:[%s2385 + $0x10] sm:$0xff]
    %v2389 = vld [vmem:[%s2385 + $0x18] sm:$0xff]
    %v2390 = vld [vmem:[%s2385 + $0x20] sm:$0xff]
    %v2391 = vld [vmem:[%s2385 + $0x28] sm:$0xff]
    %v2392 = vld [vmem:[%s2385 + $0x30] sm:$0xff]
    %v2393 = vld [vmem:[%s2385 + $0x38] sm:$0xff]
    %v2394 = vld [vmem:[%s2385 + $0x40] sm:$0xff]
    %v2395 = vld [vmem:[%s2385 + $0x48] sm:$0xff]
    %v2396 = vld [vmem:[%s2385 + $0x50] sm:$0xff]
    %v2397 = vld [vmem:[%s2385 + $0x58] sm:$0xff]
    %v2398 = vld [vmem:[%s2385 + $0x60] sm:$0xff]
    %v2399 = vld [vmem:[%s2385 + $0x68] sm:$0xff]
    %v2400 = vld [vmem:[%s2385 + $0x70] sm:$0xff]
    %v2401 = vld [vmem:[%s2385 + $0x78] sm:$0xff]
    %v2402 = vld [vmem:[%s2385 + $0x80] sm:$0xff]
    %v2403 = vld [vmem:[%s2385 + $0x88] sm:$0xff]
    %v2404 = vld [vmem:[%s2385 + $0x90] sm:$0xff]
    %v2405 = vld [vmem:[%s2385 + $0x98] sm:$0xff]
    %v2406 = vld [vmem:[%s2385 + $0xa0] sm:$0xff]
    %v2407 = vld [vmem:[%s2385 + $0xa8] sm:$0xff]
    %v2408 = vld [vmem:[%s2385 + $0xb0] sm:$0xff]
    %v2409 = vld [vmem:[%s2385 + $0xb8] sm:$0xff]
    %v2410 = vld [vmem:[%s2385 + $0xc0] sm:$0xff]
    %v2411 = vld [vmem:[%s2385 + $0xc8] sm:$0xff]
    %v2412 = vld [vmem:[%s2385 + $0xd0] sm:$0xff]
    %v2413 = vld [vmem:[%s2385 + $0xd8] sm:$0xff]
    %v2414 = vld [vmem:[%s2385 + $0xe0] sm:$0xff]
    %v2415 = vld [vmem:[%s2385 + $0xe8] sm:$0xff]
    %v2416 = vld [vmem:[%s2385 + $0xf0] sm:$0xff]
    %v2417 = vld [vmem:[%s2385 + $0xf8] sm:$0xff]
    %v2418 = vld [vmem:[%s2385 + $0x100] sm:$0xff]
    %v2419 = vld [vmem:[%s2385 + $0x108] sm:$0xff]
    %v2420 = vld [vmem:[%s2385 + $0x110] sm:$0xff]
    %v2421 = vld [vmem:[%s2385 + $0x118] sm:$0xff]
    %v2422 = vld [vmem:[%s2385 + $0x120] sm:$0xff]
    %v2423 = vld [vmem:[%s2385 + $0x128] sm:$0xff]
    %v2424 = vld [vmem:[%s2385 + $0x130] sm:$0xff]
    %v2425 = vld [vmem:[%s2385 + $0x138] sm:$0xff]
    %v2426 = vld [vmem:[%s2385 + $0x140] sm:$0xff]
    %v2427 = vld [vmem:[%s2385 + $0x148] sm:$0xff]
    %v2428 = vld [vmem:[%s2385 + $0x150] sm:$0xff]
    %v2429 = vld [vmem:[%s2385 + $0x158] sm:$0xff]
    %v2430 = vld [vmem:[%s2385 + $0x160] sm:$0xff]
    %v2431 = vld [vmem:[%s2385 + $0x168] sm:$0xff]
    %v2432 = vld [vmem:[%s2385 + $0x170] sm:$0xff]
    %v2433 = vld [vmem:[%s2385 + $0x178] sm:$0xff]
    %v2434 = vld [vmem:[%s2385 + $0x180] sm:$0xff]
    %v2435 = vld [vmem:[%s2385 + $0x188] sm:$0xff]
    %v2436 = vld [vmem:[%s2385 + $0x190] sm:$0xff]
    %v2437 = vld [vmem:[%s2385 + $0x198] sm:$0xff]
    %v2438 = vld [vmem:[%s2385 + $0x1a0] sm:$0xff]
    %v2439 = vld [vmem:[%s2385 + $0x1a8] sm:$0xff]
    %v2440 = vld [vmem:[%s2385 + $0x1b0] sm:$0xff]
    %v2441 = vld [vmem:[%s2385 + $0x1b8] sm:$0xff]
    %v2442 = vld [vmem:[%s2385 + $0x1c0] sm:$0xff]
    %v2443 = vld [vmem:[%s2385 + $0x1c8] sm:$0xff]
    %v2444 = vld [vmem:[%s2385 + $0x1d0] sm:$0xff]
    %v2445 = vld [vmem:[%s2385 + $0x1d8] sm:$0xff]
    %v2446 = vld [vmem:[%s2385 + $0x1e0] sm:$0xff]
    %v2447 = vld [vmem:[%s2385 + $0x1e8] sm:$0xff]
    %v2448 = vld [vmem:[%s2385 + $0x1f0] sm:$0xff]
    %v2449 = vld [vmem:[%s2385 + $0x1f8] sm:$0xff]
    %s2450 = scalar_lea.vmem [#allocation10], 4
    %v2451 = vld [vmem:[%s2450] sm:$0xf]
    %v2453 = vlaneseq
    %v2454 = vshrl.u32 %v2453, 7
    %v2455 = vsub.s32 0, %v2454
    %v2456 = vrot.slane %v2451, %v2455
    %v2457 = vlaneseq
    %v2458 = vshrl.u32 %v2457, 7
    %v2459 = vsub.s32 1, %v2458
    %v2460 = vrot.slane %v2451, %v2459
    %v2461 = vlaneseq
    %v2462 = vshrl.u32 %v2461, 7
    %v2463 = vsub.s32 2, %v2462
    %v2464 = vrot.slane %v2451, %v2463
    %v2465 = vlaneseq
    %v2466 = vshrl.u32 %v2465, 7
    %v2467 = vsub.s32 3, %v2466
    %v2468 = vrot.slane %v2451, %v2467
    %2473 = vmatprep.subr.mxu0 %v2447
    %2474 = vmatpush1.msra.mxu0 %v2446
    %2475 = vmatprep.subr.mxu0 %v2443
    %2476 = vmatpush1.msra.mxu0 %v2442
    %2477 = vmatprep.subr.mxu0 %v2439
    %2478 = vmatpush1.msra.mxu0 %v2438
    %2479 = vmatprep.subr.mxu0 %v2435
    %2480 = vmatpush1.msra.mxu0 %v2434
    %2481 = vmatprep.subr.mxu0 %v2431
    %2482 = vmatpush1.msra.mxu0 %v2430
    %2483 = vmatprep.subr.mxu0 %v2427
    %2484 = vmatpush1.msra.mxu0 %v2426
    %2485 = vmatprep.subr.mxu0 %v2423
    %2486 = vmatpush1.msra.mxu0 %v2422
    %2487 = vmatprep.subr.mxu0 %v2419
    %2488 = vmatpush1.msra.mxu0 %v2418
    %2489 = vmatprep.subr.mxu0 %v2415
    %2490 = vmatpush1.msra.mxu0 %v2414
    %2491 = vmatprep.subr.mxu0 %v2411
    %2492 = vmatpush1.msra.mxu0 %v2410
    %2493 = vmatprep.subr.mxu0 %v2407
    %2494 = vmatpush1.msra.mxu0 %v2406
    %2495 = vmatprep.subr.mxu0 %v2403
    %2496 = vmatpush1.msra.mxu0 %v2402
    %2497 = vmatprep.subr.mxu0 %v2399
    %2498 = vmatpush1.msra.mxu0 %v2398
    %2499 = vmatprep.subr.mxu0 %v2395
    %2500 = vmatpush1.msra.mxu0 %v2394
    %2501 = vmatprep.subr.mxu0 %v2391
    %2502 = vmatpush1.msra.mxu0 %v2390
    %2503 = vmatprep.subr.mxu0 %v2387
    %2504 = vmatpush1.msra.mxu0 %v2386
    %2505 = vmatprep.subr.mxu0 0.0
    %2506 = vmatpush2.msra.mxu0 0.0
    %2507 = vmatprep.subr.mxu0 0.0
    %2508 = vmatpush2.msra.mxu0 0.0
    %2509 = vmatprep.subr.mxu0 0.0
    %2510 = vmatpush2.msra.mxu0 0.0
    %2511 = vmatprep.subr.mxu0 0.0
    %2512 = vmatpush2.msra.mxu0 0.0
    %2513 = vmatprep.subr.mxu0 0.0
    %2514 = vmatpush2.msra.mxu0 0.0
    %2515 = vmatprep.subr.mxu0 0.0
    %2516 = vmatpush2.msra.mxu0 0.0
    %2517 = vmatprep.subr.mxu0 0.0
    %2518 = vmatpush2.msra.mxu0 0.0
    %2519 = vmatprep.subr.mxu0 0.0
    %2520 = vmatpush2.msra.mxu0 0.0
    %2521 = vmatprep.subr.mxu0 0.0
    %2522 = vmatpush2.msra.mxu0 0.0
    %2523 = vmatprep.subr.mxu0 0.0
    %2524 = vmatpush2.msra.mxu0 0.0
    %2525 = vmatprep.subr.mxu0 0.0
    %2526 = vmatpush2.msra.mxu0 0.0
    %2527 = vmatprep.subr.mxu0 0.0
    %2528 = vmatpush2.msra.mxu0 0.0
    %2529 = vmatprep.subr.mxu0 0.0
    %2530 = vmatpush2.msra.mxu0 0.0
    %2531 = vmatprep.subr.mxu0 0.0
    %2532 = vmatpush2.msra.mxu0 0.0
    %2533 = vmatprep.subr.mxu0 0.0
    %2534 = vmatpush2.msra.mxu0 0.0
    %2535 = vmatprep.subr.mxu0 0.0
    %2536 = vmatpush2.msra.mxu0 0.0
    %2537 = vmatprep.mubr.f32.mxu0 0.0
    %2538 = vmatmul.mubr.f32.gmra.mxu0 %v2384
    %v2539 = vpop.f32.mrf.mxu0
    %v2540 = vadd.f32 %v2456, %v2539
    %v2541 = vpop.f32.mrf.mxu0
    %v2542 = vadd.f32 %v2460, %v2541
    %2543 = vdwg.mxu0
    %2544 = vmatprep.subr.mxu0 %v2449
    %2545 = vmatpush1.msra.mxu0 %v2448
    %2546 = vmatprep.subr.mxu0 %v2445
    %2547 = vmatpush1.msra.mxu0 %v2444
    %2548 = vmatprep.subr.mxu0 %v2441
    %2549 = vmatpush1.msra.mxu0 %v2440
    %2550 = vmatprep.subr.mxu0 %v2437
    %2551 = vmatpush1.msra.mxu0 %v2436
    %2552 = vmatprep.subr.mxu0 %v2433
    %2553 = vmatpush1.msra.mxu0 %v2432
    %2554 = vmatprep.subr.mxu0 %v2429
    %2555 = vmatpush1.msra.mxu0 %v2428
    %2556 = vmatprep.subr.mxu0 %v2425
    %2557 = vmatpush1.msra.mxu0 %v2424
    %2558 = vmatprep.subr.mxu0 %v2421
    %2559 = vmatpush1.msra.mxu0 %v2420
    %2560 = vmatprep.subr.mxu0 %v2417
    %2561 = vmatpush1.msra.mxu0 %v2416
    %2562 = vmatprep.subr.mxu0 %v2413
    %2563 = vmatpush1.msra.mxu0 %v2412
    %2564 = vmatprep.subr.mxu0 %v2409
    %2565 = vmatpush1.msra.mxu0 %v2408
    %2566 = vmatprep.subr.mxu0 %v2405
    %2567 = vmatpush1.msra.mxu0 %v2404
    %2568 = vmatprep.subr.mxu0 %v2401
    %2569 = vmatpush1.msra.mxu0 %v2400
    %2570 = vmatprep.subr.mxu0 %v2397
    %2571 = vmatpush1.msra.mxu0 %v2396
    %2572 = vmatprep.subr.mxu0 %v2393
    %2573 = vmatpush1.msra.mxu0 %v2392
    %2574 = vmatprep.subr.mxu0 %v2389
    %2575 = vmatpush1.msra.mxu0 %v2388
    %2576 = vmatprep.subr.mxu0 0.0
    %2577 = vmatpush2.msra.mxu0 0.0
    %2578 = vmatprep.subr.mxu0 0.0
    %2579 = vmatpush2.msra.mxu0 0.0
    %2580 = vmatprep.subr.mxu0 0.0
    %2581 = vmatpush2.msra.mxu0 0.0
    %2582 = vmatprep.subr.mxu0 0.0
    %2583 = vmatpush2.msra.mxu0 0.0
    %2584 = vmatprep.subr.mxu0 0.0
    %2585 = vmatpush2.msra.mxu0 0.0
    %2586 = vmatprep.subr.mxu0 0.0
    %2587 = vmatpush2.msra.mxu0 0.0
    %2588 = vmatprep.subr.mxu0 0.0
    %2589 = vmatpush2.msra.mxu0 0.0
    %2590 = vmatprep.subr.mxu0 0.0
    %2591 = vmatpush2.msra.mxu0 0.0
    %2592 = vmatprep.subr.mxu0 0.0
    %2593 = vmatpush2.msra.mxu0 0.0
    %2594 = vmatprep.subr.mxu0 0.0
    %2595 = vmatpush2.msra.mxu0 0.0
    %2596 = vmatprep.subr.mxu0 0.0
    %2597 = vmatpush2.msra.mxu0 0.0
    %2598 = vmatprep.subr.mxu0 0.0
    %2599 = vmatpush2.msra.mxu0 0.0
    %2600 = vmatprep.subr.mxu0 0.0
    %2601 = vmatpush2.msra.mxu0 0.0
    %2602 = vmatprep.subr.mxu0 0.0
    %2603 = vmatpush2.msra.mxu0 0.0
    %2604 = vmatprep.subr.mxu0 0.0
    %2605 = vmatpush2.msra.mxu0 0.0
    %2606 = vmatprep.subr.mxu0 0.0
    %2607 = vmatpush2.msra.mxu0 0.0
    %2608 = vmatprep.mubr.f32.mxu0 0.0
    %2609 = vmatmul.mubr.f32.gmra.mxu0 %v2384
    %v2610 = vpop.f32.mrf.mxu0
    %v2611 = vadd.f32 %v2464, %v2610
    %v2612 = vpop.f32.mrf.mxu0
    %v2613 = vadd.f32 %v2468, %v2612
    %2614 = vdwg.mxu0
    %2615 = vst [vmem:[#allocation3] sm:$0xff] %v2540
    %2616 = vst [vmem:[#allocation3 + $0x8] sm:$0xff] %v2542
    %2617 = vst [vmem:[#allocation3 + $0x10] sm:$0xff] %v2611
    %2618 = vst [vmem:[#allocation3 + $0x18] sm:$0xff] %v2613
    %s2619 = scalar_lea.vmem [#allocation9], 512
    %v2620 = vld [vmem:[%s2619] sm:$0xff]
    %v2621 = vld [vmem:[%s2619 + $0x8] sm:$0xff]
    %v2622 = vld [vmem:[%s2619 + $0x10] sm:$0xff]
    %v2623 = vld [vmem:[%s2619 + $0x18] sm:$0xff]
    %v2624 = vld [vmem:[%s2619 + $0x20] sm:$0xff]
    %v2625 = vld [vmem:[%s2619 + $0x28] sm:$0xff]
    %v2626 = vld [vmem:[%s2619 + $0x30] sm:$0xff]
    %v2627 = vld [vmem:[%s2619 + $0x38] sm:$0xff]
    %v2628 = vld [vmem:[%s2619 + $0x40] sm:$0xff]
    %v2629 = vld [vmem:[%s2619 + $0x48] sm:$0xff]
    %v2630 = vld [vmem:[%s2619 + $0x50] sm:$0xff]
    %v2631 = vld [vmem:[%s2619 + $0x58] sm:$0xff]
    %v2632 = vld [vmem:[%s2619 + $0x60] sm:$0xff]
    %v2633 = vld [vmem:[%s2619 + $0x68] sm:$0xff]
    %v2634 = vld [vmem:[%s2619 + $0x70] sm:$0xff]
    %v2635 = vld [vmem:[%s2619 + $0x78] sm:$0xff]
    %v2636 = vld [vmem:[%s2619 + $0x80] sm:$0xff]
    %v2637 = vld [vmem:[%s2619 + $0x88] sm:$0xff]
    %v2638 = vld [vmem:[%s2619 + $0x90] sm:$0xff]
    %v2639 = vld [vmem:[%s2619 + $0x98] sm:$0xff]
    %v2640 = vld [vmem:[%s2619 + $0xa0] sm:$0xff]
    %v2641 = vld [vmem:[%s2619 + $0xa8] sm:$0xff]
    %v2642 = vld [vmem:[%s2619 + $0xb0] sm:$0xff]
    %v2643 = vld [vmem:[%s2619 + $0xb8] sm:$0xff]
    %v2644 = vld [vmem:[%s2619 + $0xc0] sm:$0xff]
    %v2645 = vld [vmem:[%s2619 + $0xc8] sm:$0xff]
    %v2646 = vld [vmem:[%s2619 + $0xd0] sm:$0xff]
    %v2647 = vld [vmem:[%s2619 + $0xd8] sm:$0xff]
    %v2648 = vld [vmem:[%s2619 + $0xe0] sm:$0xff]
    %v2649 = vld [vmem:[%s2619 + $0xe8] sm:$0xff]
    %v2650 = vld [vmem:[%s2619 + $0xf0] sm:$0xff]
    %v2651 = vld [vmem:[%s2619 + $0xf8] sm:$0xff]
    %v2652 = vld [vmem:[%s2619 + $0x100] sm:$0xff]
    %v2653 = vld [vmem:[%s2619 + $0x108] sm:$0xff]
    %v2654 = vld [vmem:[%s2619 + $0x110] sm:$0xff]
    %v2655 = vld [vmem:[%s2619 + $0x118] sm:$0xff]
    %v2656 = vld [vmem:[%s2619 + $0x120] sm:$0xff]
    %v2657 = vld [vmem:[%s2619 + $0x128] sm:$0xff]
    %v2658 = vld [vmem:[%s2619 + $0x130] sm:$0xff]
    %v2659 = vld [vmem:[%s2619 + $0x138] sm:$0xff]
    %v2660 = vld [vmem:[%s2619 + $0x140] sm:$0xff]
    %v2661 = vld [vmem:[%s2619 + $0x148] sm:$0xff]
    %v2662 = vld [vmem:[%s2619 + $0x150] sm:$0xff]
    %v2663 = vld [vmem:[%s2619 + $0x158] sm:$0xff]
    %v2664 = vld [vmem:[%s2619 + $0x160] sm:$0xff]
    %v2665 = vld [vmem:[%s2619 + $0x168] sm:$0xff]
    %v2666 = vld [vmem:[%s2619 + $0x170] sm:$0xff]
    %v2667 = vld [vmem:[%s2619 + $0x178] sm:$0xff]
    %v2668 = vld [vmem:[%s2619 + $0x180] sm:$0xff]
    %v2669 = vld [vmem:[%s2619 + $0x188] sm:$0xff]
    %v2670 = vld [vmem:[%s2619 + $0x190] sm:$0xff]
    %v2671 = vld [vmem:[%s2619 + $0x198] sm:$0xff]
    %v2672 = vld [vmem:[%s2619 + $0x1a0] sm:$0xff]
    %v2673 = vld [vmem:[%s2619 + $0x1a8] sm:$0xff]
    %v2674 = vld [vmem:[%s2619 + $0x1b0] sm:$0xff]
    %v2675 = vld [vmem:[%s2619 + $0x1b8] sm:$0xff]
    %v2676 = vld [vmem:[%s2619 + $0x1c0] sm:$0xff]
    %v2677 = vld [vmem:[%s2619 + $0x1c8] sm:$0xff]
    %v2678 = vld [vmem:[%s2619 + $0x1d0] sm:$0xff]
    %v2679 = vld [vmem:[%s2619 + $0x1d8] sm:$0xff]
    %v2680 = vld [vmem:[%s2619 + $0x1e0] sm:$0xff]
    %v2681 = vld [vmem:[%s2619 + $0x1e8] sm:$0xff]
    %v2682 = vld [vmem:[%s2619 + $0x1f0] sm:$0xff]
    %v2683 = vld [vmem:[%s2619 + $0x1f8] sm:$0xff]
    %v2684 = vld [vmem:[#allocation3] ss:$8 sm:$0xf]
    %v2686 = vlaneseq
    %v2687 = vshrl.u32 %v2686, 7
    %v2688 = vsub.s32 0, %v2687
    %v2689 = vrot.slane %v2684, %v2688
    %v2690 = vlaneseq
    %v2691 = vshrl.u32 %v2690, 7
    %v2692 = vsub.s32 1, %v2691
    %v2693 = vrot.slane %v2684, %v2692
    %v2694 = vlaneseq
    %v2695 = vshrl.u32 %v2694, 7
    %v2696 = vsub.s32 2, %v2695
    %v2697 = vrot.slane %v2684, %v2696
    %v2698 = vlaneseq
    %v2699 = vshrl.u32 %v2698, 7
    %v2700 = vsub.s32 3, %v2699
    %v2701 = vrot.slane %v2684, %v2700
    %2706 = vmatprep.subr.mxu0 %v2681
    %2707 = vmatpush1.msra.mxu0 %v2680
    %2708 = vmatprep.subr.mxu0 %v2677
    %2709 = vmatpush1.msra.mxu0 %v2676
    %2710 = vmatprep.subr.mxu0 %v2673
    %2711 = vmatpush1.msra.mxu0 %v2672
    %2712 = vmatprep.subr.mxu0 %v2669
    %2713 = vmatpush1.msra.mxu0 %v2668
    %2714 = vmatprep.subr.mxu0 %v2665
    %2715 = vmatpush1.msra.mxu0 %v2664
    %2716 = vmatprep.subr.mxu0 %v2661
    %2717 = vmatpush1.msra.mxu0 %v2660
    %2718 = vmatprep.subr.mxu0 %v2657
    %2719 = vmatpush1.msra.mxu0 %v2656
    %2720 = vmatprep.subr.mxu0 %v2653
    %2721 = vmatpush1.msra.mxu0 %v2652
    %2722 = vmatprep.subr.mxu0 %v2649
    %2723 = vmatpush1.msra.mxu0 %v2648
    %2724 = vmatprep.subr.mxu0 %v2645
    %2725 = vmatpush1.msra.mxu0 %v2644
    %2726 = vmatprep.subr.mxu0 %v2641
    %2727 = vmatpush1.msra.mxu0 %v2640
    %2728 = vmatprep.subr.mxu0 %v2637
    %2729 = vmatpush1.msra.mxu0 %v2636
    %2730 = vmatprep.subr.mxu0 %v2633
    %2731 = vmatpush1.msra.mxu0 %v2632
    %2732 = vmatprep.subr.mxu0 %v2629
    %2733 = vmatpush1.msra.mxu0 %v2628
    %2734 = vmatprep.subr.mxu0 %v2625
    %2735 = vmatpush1.msra.mxu0 %v2624
    %2736 = vmatprep.subr.mxu0 %v2621
    %2737 = vmatpush1.msra.mxu0 %v2620
    %2738 = vmatprep.subr.mxu0 0.0
    %2739 = vmatpush2.msra.mxu0 0.0
    %2740 = vmatprep.subr.mxu0 0.0
    %2741 = vmatpush2.msra.mxu0 0.0
    %2742 = vmatprep.subr.mxu0 0.0
    %2743 = vmatpush2.msra.mxu0 0.0
    %2744 = vmatprep.subr.mxu0 0.0
    %2745 = vmatpush2.msra.mxu0 0.0
    %2746 = vmatprep.subr.mxu0 0.0
    %2747 = vmatpush2.msra.mxu0 0.0
    %2748 = vmatprep.subr.mxu0 0.0
    %2749 = vmatpush2.msra.mxu0 0.0
    %2750 = vmatprep.subr.mxu0 0.0
    %2751 = vmatpush2.msra.mxu0 0.0
    %2752 = vmatprep.subr.mxu0 0.0
    %2753 = vmatpush2.msra.mxu0 0.0
    %2754 = vmatprep.subr.mxu0 0.0
    %2755 = vmatpush2.msra.mxu0 0.0
    %2756 = vmatprep.subr.mxu0 0.0
    %2757 = vmatpush2.msra.mxu0 0.0
    %2758 = vmatprep.subr.mxu0 0.0
    %2759 = vmatpush2.msra.mxu0 0.0
    %2760 = vmatprep.subr.mxu0 0.0
    %2761 = vmatpush2.msra.mxu0 0.0
    %2762 = vmatprep.subr.mxu0 0.0
    %2763 = vmatpush2.msra.mxu0 0.0
    %2764 = vmatprep.subr.mxu0 0.0
    %2765 = vmatpush2.msra.mxu0 0.0
    %2766 = vmatprep.subr.mxu0 0.0
    %2767 = vmatpush2.msra.mxu0 0.0
    %2768 = vmatprep.subr.mxu0 0.0
    %2769 = vmatpush2.msra.mxu0 0.0
    %2770 = vmatprep.mubr.f32.mxu0 0.0
    %2771 = vmatmul.mubr.f32.gmra.mxu0 0.0
    %v2772 = vpop.f32.mrf.mxu0
    %v2773 = vadd.f32 %v2689, %v2772
    %v2774 = vpop.f32.mrf.mxu0
    %v2775 = vadd.f32 %v2693, %v2774
    %2776 = vdwg.mxu0
    %2777 = vmatprep.subr.mxu0 %v2683
    %2778 = vmatpush1.msra.mxu0 %v2682
    %2779 = vmatprep.subr.mxu0 %v2679
    %2780 = vmatpush1.msra.mxu0 %v2678
    %2781 = vmatprep.subr.mxu0 %v2675
    %2782 = vmatpush1.msra.mxu0 %v2674
    %2783 = vmatprep.subr.mxu0 %v2671
    %2784 = vmatpush1.msra.mxu0 %v2670
    %2785 = vmatprep.subr.mxu0 %v2667
    %2786 = vmatpush1.msra.mxu0 %v2666
    %2787 = vmatprep.subr.mxu0 %v2663
    %2788 = vmatpush1.msra.mxu0 %v2662
    %2789 = vmatprep.subr.mxu0 %v2659
    %2790 = vmatpush1.msra.mxu0 %v2658
    %2791 = vmatprep.subr.mxu0 %v2655
    %2792 = vmatpush1.msra.mxu0 %v2654
    %2793 = vmatprep.subr.mxu0 %v2651
    %2794 = vmatpush1.msra.mxu0 %v2650
    %2795 = vmatprep.subr.mxu0 %v2647
    %2796 = vmatpush1.msra.mxu0 %v2646
    %2797 = vmatprep.subr.mxu0 %v2643
    %2798 = vmatpush1.msra.mxu0 %v2642
    %2799 = vmatprep.subr.mxu0 %v2639
    %2800 = vmatpush1.msra.mxu0 %v2638
    %2801 = vmatprep.subr.mxu0 %v2635
    %2802 = vmatpush1.msra.mxu0 %v2634
    %2803 = vmatprep.subr.mxu0 %v2631
    %2804 = vmatpush1.msra.mxu0 %v2630
    %2805 = vmatprep.subr.mxu0 %v2627
    %2806 = vmatpush1.msra.mxu0 %v2626
    %2807 = vmatprep.subr.mxu0 %v2623
    %2808 = vmatpush1.msra.mxu0 %v2622
    %2809 = vmatprep.subr.mxu0 0.0
    %2810 = vmatpush2.msra.mxu0 0.0
    %2811 = vmatprep.subr.mxu0 0.0
    %2812 = vmatpush2.msra.mxu0 0.0
    %2813 = vmatprep.subr.mxu0 0.0
    %2814 = vmatpush2.msra.mxu0 0.0
    %2815 = vmatprep.subr.mxu0 0.0
    %2816 = vmatpush2.msra.mxu0 0.0
    %2817 = vmatprep.subr.mxu0 0.0
    %2818 = vmatpush2.msra.mxu0 0.0
    %2819 = vmatprep.subr.mxu0 0.0
    %2820 = vmatpush2.msra.mxu0 0.0
    %2821 = vmatprep.subr.mxu0 0.0
    %2822 = vmatpush2.msra.mxu0 0.0
    %2823 = vmatprep.subr.mxu0 0.0
    %2824 = vmatpush2.msra.mxu0 0.0
    %2825 = vmatprep.subr.mxu0 0.0
    %2826 = vmatpush2.msra.mxu0 0.0
    %2827 = vmatprep.subr.mxu0 0.0
    %2828 = vmatpush2.msra.mxu0 0.0
    %2829 = vmatprep.subr.mxu0 0.0
    %2830 = vmatpush2.msra.mxu0 0.0
    %2831 = vmatprep.subr.mxu0 0.0
    %2832 = vmatpush2.msra.mxu0 0.0
    %2833 = vmatprep.subr.mxu0 0.0
    %2834 = vmatpush2.msra.mxu0 0.0
    %2835 = vmatprep.subr.mxu0 0.0
    %2836 = vmatpush2.msra.mxu0 0.0
    %2837 = vmatprep.subr.mxu0 0.0
    %2838 = vmatpush2.msra.mxu0 0.0
    %2839 = vmatprep.subr.mxu0 0.0
    %2840 = vmatpush2.msra.mxu0 0.0
    %2841 = vmatprep.mubr.f32.mxu0 0.0
    %2842 = vmatmul.mubr.f32.gmra.mxu0 0.0
    %v2843 = vpop.f32.mrf.mxu0
    %v2844 = vadd.f32 %v2697, %v2843
    %v2845 = vpop.f32.mrf.mxu0
    %v2846 = vadd.f32 %v2701, %v2845
    %2847 = vdwg.mxu0
    %v2848 = vxor.u32 %v2773, 2147483648
    %v2849 = vmul.f32 %v2848, 1.442695
    %v2850 = vpow.pop %v2849
    %v2851 = vadd.f32 %v2850, 1.0
    %v2852 = vrcp.pop %v2851
    %v2853 = vmul.f32 1.0, %v2852
    %v2854 = vxor.u32 %v2775, 2147483648
    %v2855 = vmul.f32 %v2854, 1.442695
    %v2856 = vpow.pop %v2855
    %v2857 = vadd.f32 %v2856, 1.0
    %v2858 = vrcp.pop %v2857
    %v2859 = vmul.f32 1.0, %v2858
    %v2860 = vtanh.pop %v2844
    %v2861 = vxor.u32 %v2846, 2147483648
    %v2862 = vmul.f32 %v2861, 1.442695
    %v2863 = vpow.pop %v2862
    %v2864 = vadd.f32 %v2863, 1.0
    %v2865 = vrcp.pop %v2864
    %v2866 = vmul.f32 1.0, %v2865
    %v2867 = vmul.f32 %v2859, 0.0
    %v2868 = vmul.f32 %v2853, %v2860
    %v2869 = vadd.f32 %v2867, %v2868
    %v2870 = vtanh.pop %v2869
    %v2871 = vmul.f32 %v2866, %v2870
    %v2872 = vld [vmem:[%s628] ss:$8 sm:$0xf]
    %v2874 = vlaneseq
    %v2875 = vshrl.u32 %v2874, 7
    %v2876 = vsub.s32 0, %v2875
    %v2877 = vrot.slane %v2872, %v2876
    %v2878 = vlaneseq
    %v2879 = vshrl.u32 %v2878, 7
    %v2880 = vsub.s32 1, %v2879
    %v2881 = vrot.slane %v2872, %v2880
    %v2882 = vlaneseq
    %v2883 = vshrl.u32 %v2882, 7
    %v2884 = vsub.s32 2, %v2883
    %v2885 = vrot.slane %v2872, %v2884
    %v2886 = vlaneseq
    %v2887 = vshrl.u32 %v2886, 7
    %v2888 = vsub.s32 3, %v2887
    %v2889 = vrot.slane %v2872, %v2888
    %2894 = vmatprep.subr.mxu0 %v2681
    %2895 = vmatpush1.msra.mxu0 %v2680
    %2896 = vmatprep.subr.mxu0 %v2677
    %2897 = vmatpush1.msra.mxu0 %v2676
    %2898 = vmatprep.subr.mxu0 %v2673
    %2899 = vmatpush1.msra.mxu0 %v2672
    %2900 = vmatprep.subr.mxu0 %v2669
    %2901 = vmatpush1.msra.mxu0 %v2668
    %2902 = vmatprep.subr.mxu0 %v2665
    %2903 = vmatpush1.msra.mxu0 %v2664
    %2904 = vmatprep.subr.mxu0 %v2661
    %2905 = vmatpush1.msra.mxu0 %v2660
    %2906 = vmatprep.subr.mxu0 %v2657
    %2907 = vmatpush1.msra.mxu0 %v2656
    %2908 = vmatprep.subr.mxu0 %v2653
    %2909 = vmatpush1.msra.mxu0 %v2652
    %2910 = vmatprep.subr.mxu0 %v2649
    %2911 = vmatpush1.msra.mxu0 %v2648
    %2912 = vmatprep.subr.mxu0 %v2645
    %2913 = vmatpush1.msra.mxu0 %v2644
    %2914 = vmatprep.subr.mxu0 %v2641
    %2915 = vmatpush1.msra.mxu0 %v2640
    %2916 = vmatprep.subr.mxu0 %v2637
    %2917 = vmatpush1.msra.mxu0 %v2636
    %2918 = vmatprep.subr.mxu0 %v2633
    %2919 = vmatpush1.msra.mxu0 %v2632
    %2920 = vmatprep.subr.mxu0 %v2629
    %2921 = vmatpush1.msra.mxu0 %v2628
    %2922 = vmatprep.subr.mxu0 %v2625
    %2923 = vmatpush1.msra.mxu0 %v2624
    %2924 = vmatprep.subr.mxu0 %v2621
    %2925 = vmatpush1.msra.mxu0 %v2620
    %2926 = vmatprep.subr.mxu0 0.0
    %2927 = vmatpush2.msra.mxu0 0.0
    %2928 = vmatprep.subr.mxu0 0.0
    %2929 = vmatpush2.msra.mxu0 0.0
    %2930 = vmatprep.subr.mxu0 0.0
    %2931 = vmatpush2.msra.mxu0 0.0
    %2932 = vmatprep.subr.mxu0 0.0
    %2933 = vmatpush2.msra.mxu0 0.0
    %2934 = vmatprep.subr.mxu0 0.0
    %2935 = vmatpush2.msra.mxu0 0.0
    %2936 = vmatprep.subr.mxu0 0.0
    %2937 = vmatpush2.msra.mxu0 0.0
    %2938 = vmatprep.subr.mxu0 0.0
    %2939 = vmatpush2.msra.mxu0 0.0
    %2940 = vmatprep.subr.mxu0 0.0
    %2941 = vmatpush2.msra.mxu0 0.0
    %2942 = vmatprep.subr.mxu0 0.0
    %2943 = vmatpush2.msra.mxu0 0.0
    %2944 = vmatprep.subr.mxu0 0.0
    %2945 = vmatpush2.msra.mxu0 0.0
    %2946 = vmatprep.subr.mxu0 0.0
    %2947 = vmatpush2.msra.mxu0 0.0
    %2948 = vmatprep.subr.mxu0 0.0
    %2949 = vmatpush2.msra.mxu0 0.0
    %2950 = vmatprep.subr.mxu0 0.0
    %2951 = vmatpush2.msra.mxu0 0.0
    %2952 = vmatprep.subr.mxu0 0.0
    %2953 = vmatpush2.msra.mxu0 0.0
    %2954 = vmatprep.subr.mxu0 0.0
    %2955 = vmatpush2.msra.mxu0 0.0
    %2956 = vmatprep.subr.mxu0 0.0
    %2957 = vmatpush2.msra.mxu0 0.0
    %2958 = vmatprep.mubr.f32.mxu0 0.0
    %2959 = vmatmul.mubr.f32.gmra.mxu0 %v2871
    %v2960 = vpop.f32.mrf.mxu0
    %v2961 = vadd.f32 %v2877, %v2960
    %v2962 = vpop.f32.mrf.mxu0
    %v2963 = vadd.f32 %v2881, %v2962
    %2964 = vdwg.mxu0
    %2965 = vmatprep.subr.mxu0 %v2683
    %2966 = vmatpush1.msra.mxu0 %v2682
    %2967 = vmatprep.subr.mxu0 %v2679
    %2968 = vmatpush1.msra.mxu0 %v2678
    %2969 = vmatprep.subr.mxu0 %v2675
    %2970 = vmatpush1.msra.mxu0 %v2674
    %2971 = vmatprep.subr.mxu0 %v2671
    %2972 = vmatpush1.msra.mxu0 %v2670
    %2973 = vmatprep.subr.mxu0 %v2667
    %2974 = vmatpush1.msra.mxu0 %v2666
    %2975 = vmatprep.subr.mxu0 %v2663
    %2976 = vmatpush1.msra.mxu0 %v2662
    %2977 = vmatprep.subr.mxu0 %v2659
    %2978 = vmatpush1.msra.mxu0 %v2658
    %2979 = vmatprep.subr.mxu0 %v2655
    %2980 = vmatpush1.msra.mxu0 %v2654
    %2981 = vmatprep.subr.mxu0 %v2651
    %2982 = vmatpush1.msra.mxu0 %v2650
    %2983 = vmatprep.subr.mxu0 %v2647
    %2984 = vmatpush1.msra.mxu0 %v2646
    %2985 = vmatprep.subr.mxu0 %v2643
    %2986 = vmatpush1.msra.mxu0 %v2642
    %2987 = vmatprep.subr.mxu0 %v2639
    %2988 = vmatpush1.msra.mxu0 %v2638
    %2989 = vmatprep.subr.mxu0 %v2635
    %2990 = vmatpush1.msra.mxu0 %v2634
    %2991 = vmatprep.subr.mxu0 %v2631
    %2992 = vmatpush1.msra.mxu0 %v2630
    %2993 = vmatprep.subr.mxu0 %v2627
    %2994 = vmatpush1.msra.mxu0 %v2626
    %2995 = vmatprep.subr.mxu0 %v2623
    %2996 = vmatpush1.msra.mxu0 %v2622
    %2997 = vmatprep.subr.mxu0 0.0
    %2998 = vmatpush2.msra.mxu0 0.0
    %2999 = vmatprep.subr.mxu0 0.0
    %3000 = vmatpush2.msra.mxu0 0.0
    %3001 = vmatprep.subr.mxu0 0.0
    %3002 = vmatpush2.msra.mxu0 0.0
    %3003 = vmatprep.subr.mxu0 0.0
    %3004 = vmatpush2.msra.mxu0 0.0
    %3005 = vmatprep.subr.mxu0 0.0
    %3006 = vmatpush2.msra.mxu0 0.0
    %3007 = vmatprep.subr.mxu0 0.0
    %3008 = vmatpush2.msra.mxu0 0.0
    %3009 = vmatprep.subr.mxu0 0.0
    %3010 = vmatpush2.msra.mxu0 0.0
    %3011 = vmatprep.subr.mxu0 0.0
    %3012 = vmatpush2.msra.mxu0 0.0
    %3013 = vmatprep.subr.mxu0 0.0
    %3014 = vmatpush2.msra.mxu0 0.0
    %3015 = vmatprep.subr.mxu0 0.0
    %3016 = vmatpush2.msra.mxu0 0.0
    %3017 = vmatprep.subr.mxu0 0.0
    %3018 = vmatpush2.msra.mxu0 0.0
    %3019 = vmatprep.subr.mxu0 0.0
    %3020 = vmatpush2.msra.mxu0 0.0
    %3021 = vmatprep.subr.mxu0 0.0
    %3022 = vmatpush2.msra.mxu0 0.0
    %3023 = vmatprep.subr.mxu0 0.0
    %3024 = vmatpush2.msra.mxu0 0.0
    %3025 = vmatprep.subr.mxu0 0.0
    %3026 = vmatpush2.msra.mxu0 0.0
    %3027 = vmatprep.subr.mxu0 0.0
    %3028 = vmatpush2.msra.mxu0 0.0
    %3029 = vmatprep.mubr.f32.mxu0 0.0
    %3030 = vmatmul.mubr.f32.gmra.mxu0 %v2871
    %v3031 = vpop.f32.mrf.mxu0
    %v3032 = vadd.f32 %v2885, %v3031
    %v3033 = vpop.f32.mrf.mxu0
    %v3034 = vadd.f32 %v2889, %v3033
    %3035 = vdwg.mxu0
    %v3036 = vxor.u32 %v2961, 2147483648
    %v3037 = vmul.f32 %v3036, 1.442695
    %v3038 = vpow.pop %v3037
    %v3039 = vadd.f32 %v3038, 1.0
    %v3040 = vrcp.pop %v3039
    %v3041 = vmul.f32 1.0, %v3040
    %v3042 = vxor.u32 %v2963, 2147483648
    %v3043 = vmul.f32 %v3042, 1.442695
    %v3044 = vpow.pop %v3043
    %v3045 = vadd.f32 %v3044, 1.0
    %v3046 = vrcp.pop %v3045
    %v3047 = vmul.f32 1.0, %v3046
    %v3048 = vtanh.pop %v3032
    %v3049 = vxor.u32 %v3034, 2147483648
    %v3050 = vmul.f32 %v3049, 1.442695
    %v3051 = vpow.pop %v3050
    %v3052 = vadd.f32 %v3051, 1.0
    %v3053 = vrcp.pop %v3052
    %v3054 = vmul.f32 1.0, %v3053
    %v3055 = vmul.f32 %v3047, %v2869
    %v3056 = vmul.f32 %v3041, %v3048
    %v3057 = vadd.f32 %v3055, %v3056
    %v3058 = vtanh.pop %v3057
    %v3059 = vmul.f32 %v3054, %v3058
    %v3060 = vld [vmem:[%s888] ss:$8 sm:$0xf]
    %v3062 = vlaneseq
    %v3063 = vshrl.u32 %v3062, 7
    %v3064 = vsub.s32 0, %v3063
    %v3065 = vrot.slane %v3060, %v3064
    %v3066 = vlaneseq
    %v3067 = vshrl.u32 %v3066, 7
    %v3068 = vsub.s32 1, %v3067
    %v3069 = vrot.slane %v3060, %v3068
    %v3070 = vlaneseq
    %v3071 = vshrl.u32 %v3070, 7
    %v3072 = vsub.s32 2, %v3071
    %v3073 = vrot.slane %v3060, %v3072
    %v3074 = vlaneseq
    %v3075 = vshrl.u32 %v3074, 7
    %v3076 = vsub.s32 3, %v3075
    %v3077 = vrot.slane %v3060, %v3076
    %3082 = vmatprep.subr.mxu0 %v2681
    %3083 = vmatpush1.msra.mxu0 %v2680
    %3084 = vmatprep.subr.mxu0 %v2677
    %3085 = vmatpush1.msra.mxu0 %v2676
    %3086 = vmatprep.subr.mxu0 %v2673
    %3087 = vmatpush1.msra.mxu0 %v2672
    %3088 = vmatprep.subr.mxu0 %v2669
    %3089 = vmatpush1.msra.mxu0 %v2668
    %3090 = vmatprep.subr.mxu0 %v2665
    %3091 = vmatpush1.msra.mxu0 %v2664
    %3092 = vmatprep.subr.mxu0 %v2661
    %3093 = vmatpush1.msra.mxu0 %v2660
    %3094 = vmatprep.subr.mxu0 %v2657
    %3095 = vmatpush1.msra.mxu0 %v2656
    %3096 = vmatprep.subr.mxu0 %v2653
    %3097 = vmatpush1.msra.mxu0 %v2652
    %3098 = vmatprep.subr.mxu0 %v2649
    %3099 = vmatpush1.msra.mxu0 %v2648
    %3100 = vmatprep.subr.mxu0 %v2645
    %3101 = vmatpush1.msra.mxu0 %v2644
    %3102 = vmatprep.subr.mxu0 %v2641
    %3103 = vmatpush1.msra.mxu0 %v2640
    %3104 = vmatprep.subr.mxu0 %v2637
    %3105 = vmatpush1.msra.mxu0 %v2636
    %3106 = vmatprep.subr.mxu0 %v2633
    %3107 = vmatpush1.msra.mxu0 %v2632
    %3108 = vmatprep.subr.mxu0 %v2629
    %3109 = vmatpush1.msra.mxu0 %v2628
    %3110 = vmatprep.subr.mxu0 %v2625
    %3111 = vmatpush1.msra.mxu0 %v2624
    %3112 = vmatprep.subr.mxu0 %v2621
    %3113 = vmatpush1.msra.mxu0 %v2620
    %3114 = vmatprep.subr.mxu0 0.0
    %3115 = vmatpush2.msra.mxu0 0.0
    %3116 = vmatprep.subr.mxu0 0.0
    %3117 = vmatpush2.msra.mxu0 0.0
    %3118 = vmatprep.subr.mxu0 0.0
    %3119 = vmatpush2.msra.mxu0 0.0
    %3120 = vmatprep.subr.mxu0 0.0
    %3121 = vmatpush2.msra.mxu0 0.0
    %3122 = vmatprep.subr.mxu0 0.0
    %3123 = vmatpush2.msra.mxu0 0.0
    %3124 = vmatprep.subr.mxu0 0.0
    %3125 = vmatpush2.msra.mxu0 0.0
    %3126 = vmatprep.subr.mxu0 0.0
    %3127 = vmatpush2.msra.mxu0 0.0
    %3128 = vmatprep.subr.mxu0 0.0
    %3129 = vmatpush2.msra.mxu0 0.0
    %3130 = vmatprep.subr.mxu0 0.0
    %3131 = vmatpush2.msra.mxu0 0.0
    %3132 = vmatprep.subr.mxu0 0.0
    %3133 = vmatpush2.msra.mxu0 0.0
    %3134 = vmatprep.subr.mxu0 0.0
    %3135 = vmatpush2.msra.mxu0 0.0
    %3136 = vmatprep.subr.mxu0 0.0
    %3137 = vmatpush2.msra.mxu0 0.0
    %3138 = vmatprep.subr.mxu0 0.0
    %3139 = vmatpush2.msra.mxu0 0.0
    %3140 = vmatprep.subr.mxu0 0.0
    %3141 = vmatpush2.msra.mxu0 0.0
    %3142 = vmatprep.subr.mxu0 0.0
    %3143 = vmatpush2.msra.mxu0 0.0
    %3144 = vmatprep.subr.mxu0 0.0
    %3145 = vmatpush2.msra.mxu0 0.0
    %3146 = vmatprep.mubr.f32.mxu0 0.0
    %3147 = vmatmul.mubr.f32.gmra.mxu0 %v3059
    %v3148 = vpop.f32.mrf.mxu0
    %v3149 = vadd.f32 %v3065, %v3148
    %v3150 = vpop.f32.mrf.mxu0
    %v3151 = vadd.f32 %v3069, %v3150
    %3152 = vdwg.mxu0
    %3153 = vmatprep.subr.mxu0 %v2683
    %3154 = vmatpush1.msra.mxu0 %v2682
    %3155 = vmatprep.subr.mxu0 %v2679
    %3156 = vmatpush1.msra.mxu0 %v2678
    %3157 = vmatprep.subr.mxu0 %v2675
    %3158 = vmatpush1.msra.mxu0 %v2674
    %3159 = vmatprep.subr.mxu0 %v2671
    %3160 = vmatpush1.msra.mxu0 %v2670
    %3161 = vmatprep.subr.mxu0 %v2667
    %3162 = vmatpush1.msra.mxu0 %v2666
    %3163 = vmatprep.subr.mxu0 %v2663
    %3164 = vmatpush1.msra.mxu0 %v2662
    %3165 = vmatprep.subr.mxu0 %v2659
    %3166 = vmatpush1.msra.mxu0 %v2658
    %3167 = vmatprep.subr.mxu0 %v2655
    %3168 = vmatpush1.msra.mxu0 %v2654
    %3169 = vmatprep.subr.mxu0 %v2651
    %3170 = vmatpush1.msra.mxu0 %v2650
    %3171 = vmatprep.subr.mxu0 %v2647
    %3172 = vmatpush1.msra.mxu0 %v2646
    %3173 = vmatprep.subr.mxu0 %v2643
    %3174 = vmatpush1.msra.mxu0 %v2642
    %3175 = vmatprep.subr.mxu0 %v2639
    %3176 = vmatpush1.msra.mxu0 %v2638
    %3177 = vmatprep.subr.mxu0 %v2635
    %3178 = vmatpush1.msra.mxu0 %v2634
    %3179 = vmatprep.subr.mxu0 %v2631
    %3180 = vmatpush1.msra.mxu0 %v2630
    %3181 = vmatprep.subr.mxu0 %v2627
    %3182 = vmatpush1.msra.mxu0 %v2626
    %3183 = vmatprep.subr.mxu0 %v2623
    %3184 = vmatpush1.msra.mxu0 %v2622
    %3185 = vmatprep.subr.mxu0 0.0
    %3186 = vmatpush2.msra.mxu0 0.0
    %3187 = vmatprep.subr.mxu0 0.0
    %3188 = vmatpush2.msra.mxu0 0.0
    %3189 = vmatprep.subr.mxu0 0.0
    %3190 = vmatpush2.msra.mxu0 0.0
    %3191 = vmatprep.subr.mxu0 0.0
    %3192 = vmatpush2.msra.mxu0 0.0
    %3193 = vmatprep.subr.mxu0 0.0
    %3194 = vmatpush2.msra.mxu0 0.0
    %3195 = vmatprep.subr.mxu0 0.0
    %3196 = vmatpush2.msra.mxu0 0.0
    %3197 = vmatprep.subr.mxu0 0.0
    %3198 = vmatpush2.msra.mxu0 0.0
    %3199 = vmatprep.subr.mxu0 0.0
    %3200 = vmatpush2.msra.mxu0 0.0
    %3201 = vmatprep.subr.mxu0 0.0
    %3202 = vmatpush2.msra.mxu0 0.0
    %3203 = vmatprep.subr.mxu0 0.0
    %3204 = vmatpush2.msra.mxu0 0.0
    %3205 = vmatprep.subr.mxu0 0.0
    %3206 = vmatpush2.msra.mxu0 0.0
    %3207 = vmatprep.subr.mxu0 0.0
    %3208 = vmatpush2.msra.mxu0 0.0
    %3209 = vmatprep.subr.mxu0 0.0
    %3210 = vmatpush2.msra.mxu0 0.0
    %3211 = vmatprep.subr.mxu0 0.0
    %3212 = vmatpush2.msra.mxu0 0.0
    %3213 = vmatprep.subr.mxu0 0.0
    %3214 = vmatpush2.msra.mxu0 0.0
    %3215 = vmatprep.subr.mxu0 0.0
    %3216 = vmatpush2.msra.mxu0 0.0
    %3217 = vmatprep.mubr.f32.mxu0 0.0
    %3218 = vmatmul.mubr.f32.gmra.mxu0 %v3059
    %v3219 = vpop.f32.mrf.mxu0
    %v3220 = vadd.f32 %v3073, %v3219
    %v3221 = vpop.f32.mrf.mxu0
    %v3222 = vadd.f32 %v3077, %v3221
    %3223 = vdwg.mxu0
    %v3224 = vxor.u32 %v3149, 2147483648
    %v3225 = vmul.f32 %v3224, 1.442695
    %v3226 = vpow.pop %v3225
    %v3227 = vadd.f32 %v3226, 1.0
    %v3228 = vrcp.pop %v3227
    %v3229 = vmul.f32 1.0, %v3228
    %v3230 = vxor.u32 %v3151, 2147483648
    %v3231 = vmul.f32 %v3230, 1.442695
    %v3232 = vpow.pop %v3231
    %v3233 = vadd.f32 %v3232, 1.0
    %v3234 = vrcp.pop %v3233
    %v3235 = vmul.f32 1.0, %v3234
    %v3236 = vtanh.pop %v3220
    %v3237 = vxor.u32 %v3222, 2147483648
    %v3238 = vmul.f32 %v3237, 1.442695
    %v3239 = vpow.pop %v3238
    %v3240 = vadd.f32 %v3239, 1.0
    %v3241 = vrcp.pop %v3240
    %v3242 = vmul.f32 1.0, %v3241
    %v3243 = vmul.f32 %v3235, %v3057
    %v3244 = vmul.f32 %v3229, %v3236
    %v3245 = vadd.f32 %v3243, %v3244
    %v3246 = vtanh.pop %v3245
    %v3247 = vmul.f32 %v3242, %v3246
    %v3248 = vld [vmem:[%s1148] ss:$8 sm:$0xf]
    %v3250 = vlaneseq
    %v3251 = vshrl.u32 %v3250, 7
    %v3252 = vsub.s32 0, %v3251
    %v3253 = vrot.slane %v3248, %v3252
    %v3254 = vlaneseq
    %v3255 = vshrl.u32 %v3254, 7
    %v3256 = vsub.s32 1, %v3255
    %v3257 = vrot.slane %v3248, %v3256
    %v3258 = vlaneseq
    %v3259 = vshrl.u32 %v3258, 7
    %v3260 = vsub.s32 2, %v3259
    %v3261 = vrot.slane %v3248, %v3260
    %v3262 = vlaneseq
    %v3263 = vshrl.u32 %v3262, 7
    %v3264 = vsub.s32 3, %v3263
    %v3265 = vrot.slane %v3248, %v3264
    %3270 = vmatprep.subr.mxu0 %v2681
    %3271 = vmatpush1.msra.mxu0 %v2680
    %3272 = vmatprep.subr.mxu0 %v2677
    %3273 = vmatpush1.msra.mxu0 %v2676
    %3274 = vmatprep.subr.mxu0 %v2673
    %3275 = vmatpush1.msra.mxu0 %v2672
    %3276 = vmatprep.subr.mxu0 %v2669
    %3277 = vmatpush1.msra.mxu0 %v2668
    %3278 = vmatprep.subr.mxu0 %v2665
    %3279 = vmatpush1.msra.mxu0 %v2664
    %3280 = vmatprep.subr.mxu0 %v2661
    %3281 = vmatpush1.msra.mxu0 %v2660
    %3282 = vmatprep.subr.mxu0 %v2657
    %3283 = vmatpush1.msra.mxu0 %v2656
    %3284 = vmatprep.subr.mxu0 %v2653
    %3285 = vmatpush1.msra.mxu0 %v2652
    %3286 = vmatprep.subr.mxu0 %v2649
    %3287 = vmatpush1.msra.mxu0 %v2648
    %3288 = vmatprep.subr.mxu0 %v2645
    %3289 = vmatpush1.msra.mxu0 %v2644
    %3290 = vmatprep.subr.mxu0 %v2641
    %3291 = vmatpush1.msra.mxu0 %v2640
    %3292 = vmatprep.subr.mxu0 %v2637
    %3293 = vmatpush1.msra.mxu0 %v2636
    %3294 = vmatprep.subr.mxu0 %v2633
    %3295 = vmatpush1.msra.mxu0 %v2632
    %3296 = vmatprep.subr.mxu0 %v2629
    %3297 = vmatpush1.msra.mxu0 %v2628
    %3298 = vmatprep.subr.mxu0 %v2625
    %3299 = vmatpush1.msra.mxu0 %v2624
    %3300 = vmatprep.subr.mxu0 %v2621
    %3301 = vmatpush1.msra.mxu0 %v2620
    %3302 = vmatprep.subr.mxu0 0.0
    %3303 = vmatpush2.msra.mxu0 0.0
    %3304 = vmatprep.subr.mxu0 0.0
    %3305 = vmatpush2.msra.mxu0 0.0
    %3306 = vmatprep.subr.mxu0 0.0
    %3307 = vmatpush2.msra.mxu0 0.0
    %3308 = vmatprep.subr.mxu0 0.0
    %3309 = vmatpush2.msra.mxu0 0.0
    %3310 = vmatprep.subr.mxu0 0.0
    %3311 = vmatpush2.msra.mxu0 0.0
    %3312 = vmatprep.subr.mxu0 0.0
    %3313 = vmatpush2.msra.mxu0 0.0
    %3314 = vmatprep.subr.mxu0 0.0
    %3315 = vmatpush2.msra.mxu0 0.0
    %3316 = vmatprep.subr.mxu0 0.0
    %3317 = vmatpush2.msra.mxu0 0.0
    %3318 = vmatprep.subr.mxu0 0.0
    %3319 = vmatpush2.msra.mxu0 0.0
    %3320 = vmatprep.subr.mxu0 0.0
    %3321 = vmatpush2.msra.mxu0 0.0
    %3322 = vmatprep.subr.mxu0 0.0
    %3323 = vmatpush2.msra.mxu0 0.0
    %3324 = vmatprep.subr.mxu0 0.0
    %3325 = vmatpush2.msra.mxu0 0.0
    %3326 = vmatprep.subr.mxu0 0.0
    %3327 = vmatpush2.msra.mxu0 0.0
    %3328 = vmatprep.subr.mxu0 0.0
    %3329 = vmatpush2.msra.mxu0 0.0
    %3330 = vmatprep.subr.mxu0 0.0
    %3331 = vmatpush2.msra.mxu0 0.0
    %3332 = vmatprep.subr.mxu0 0.0
    %3333 = vmatpush2.msra.mxu0 0.0
    %3334 = vmatprep.mubr.f32.mxu0 0.0
    %3335 = vmatmul.mubr.f32.gmra.mxu0 %v3247
    %v3336 = vpop.f32.mrf.mxu0
    %v3337 = vadd.f32 %v3253, %v3336
    %v3338 = vpop.f32.mrf.mxu0
    %v3339 = vadd.f32 %v3257, %v3338
    %3340 = vdwg.mxu0
    %3341 = vmatprep.subr.mxu0 %v2683
    %3342 = vmatpush1.msra.mxu0 %v2682
    %3343 = vmatprep.subr.mxu0 %v2679
    %3344 = vmatpush1.msra.mxu0 %v2678
    %3345 = vmatprep.subr.mxu0 %v2675
    %3346 = vmatpush1.msra.mxu0 %v2674
    %3347 = vmatprep.subr.mxu0 %v2671
    %3348 = vmatpush1.msra.mxu0 %v2670
    %3349 = vmatprep.subr.mxu0 %v2667
    %3350 = vmatpush1.msra.mxu0 %v2666
    %3351 = vmatprep.subr.mxu0 %v2663
    %3352 = vmatpush1.msra.mxu0 %v2662
    %3353 = vmatprep.subr.mxu0 %v2659
    %3354 = vmatpush1.msra.mxu0 %v2658
    %3355 = vmatprep.subr.mxu0 %v2655
    %3356 = vmatpush1.msra.mxu0 %v2654
    %3357 = vmatprep.subr.mxu0 %v2651
    %3358 = vmatpush1.msra.mxu0 %v2650
    %3359 = vmatprep.subr.mxu0 %v2647
    %3360 = vmatpush1.msra.mxu0 %v2646
    %3361 = vmatprep.subr.mxu0 %v2643
    %3362 = vmatpush1.msra.mxu0 %v2642
    %3363 = vmatprep.subr.mxu0 %v2639
    %3364 = vmatpush1.msra.mxu0 %v2638
    %3365 = vmatprep.subr.mxu0 %v2635
    %3366 = vmatpush1.msra.mxu0 %v2634
    %3367 = vmatprep.subr.mxu0 %v2631
    %3368 = vmatpush1.msra.mxu0 %v2630
    %3369 = vmatprep.subr.mxu0 %v2627
    %3370 = vmatpush1.msra.mxu0 %v2626
    %3371 = vmatprep.subr.mxu0 %v2623
    %3372 = vmatpush1.msra.mxu0 %v2622
    %3373 = vmatprep.subr.mxu0 0.0
    %3374 = vmatpush2.msra.mxu0 0.0
    %3375 = vmatprep.subr.mxu0 0.0
    %3376 = vmatpush2.msra.mxu0 0.0
    %3377 = vmatprep.subr.mxu0 0.0
    %3378 = vmatpush2.msra.mxu0 0.0
    %3379 = vmatprep.subr.mxu0 0.0
    %3380 = vmatpush2.msra.mxu0 0.0
    %3381 = vmatprep.subr.mxu0 0.0
    %3382 = vmatpush2.msra.mxu0 0.0
    %3383 = vmatprep.subr.mxu0 0.0
    %3384 = vmatpush2.msra.mxu0 0.0
    %3385 = vmatprep.subr.mxu0 0.0
    %3386 = vmatpush2.msra.mxu0 0.0
    %3387 = vmatprep.subr.mxu0 0.0
    %3388 = vmatpush2.msra.mxu0 0.0
    %3389 = vmatprep.subr.mxu0 0.0
    %3390 = vmatpush2.msra.mxu0 0.0
    %3391 = vmatprep.subr.mxu0 0.0
    %3392 = vmatpush2.msra.mxu0 0.0
    %3393 = vmatprep.subr.mxu0 0.0
    %3394 = vmatpush2.msra.mxu0 0.0
    %3395 = vmatprep.subr.mxu0 0.0
    %3396 = vmatpush2.msra.mxu0 0.0
    %3397 = vmatprep.subr.mxu0 0.0
    %3398 = vmatpush2.msra.mxu0 0.0
    %3399 = vmatprep.subr.mxu0 0.0
    %3400 = vmatpush2.msra.mxu0 0.0
    %3401 = vmatprep.subr.mxu0 0.0
    %3402 = vmatpush2.msra.mxu0 0.0
    %3403 = vmatprep.subr.mxu0 0.0
    %3404 = vmatpush2.msra.mxu0 0.0
    %3405 = vmatprep.mubr.f32.mxu0 0.0
    %3406 = vmatmul.mubr.f32.gmra.mxu0 %v3247
    %v3407 = vpop.f32.mrf.mxu0
    %v3408 = vadd.f32 %v3261, %v3407
    %v3409 = vpop.f32.mrf.mxu0
    %v3410 = vadd.f32 %v3265, %v3409
    %3411 = vdwg.mxu0
    %v3412 = vxor.u32 %v3337, 2147483648
    %v3413 = vmul.f32 %v3412, 1.442695
    %v3414 = vpow.pop %v3413
    %v3415 = vadd.f32 %v3414, 1.0
    %v3416 = vrcp.pop %v3415
    %v3417 = vmul.f32 1.0, %v3416
    %v3418 = vxor.u32 %v3339, 2147483648
    %v3419 = vmul.f32 %v3418, 1.442695
    %v3420 = vpow.pop %v3419
    %v3421 = vadd.f32 %v3420, 1.0
    %v3422 = vrcp.pop %v3421
    %v3423 = vmul.f32 1.0, %v3422
    %v3424 = vtanh.pop %v3408
    %v3425 = vxor.u32 %v3410, 2147483648
    %v3426 = vmul.f32 %v3425, 1.442695
    %v3427 = vpow.pop %v3426
    %v3428 = vadd.f32 %v3427, 1.0
    %v3429 = vrcp.pop %v3428
    %v3430 = vmul.f32 1.0, %v3429
    %v3431 = vmul.f32 %v3423, %v3245
    %v3432 = vmul.f32 %v3417, %v3424
    %v3433 = vadd.f32 %v3431, %v3432
    %v3434 = vtanh.pop %v3433
    %v3435 = vmul.f32 %v3430, %v3434
    %v3436 = vld [vmem:[%s1408] ss:$8 sm:$0xf]
    %v3438 = vlaneseq
    %v3439 = vshrl.u32 %v3438, 7
    %v3440 = vsub.s32 0, %v3439
    %v3441 = vrot.slane %v3436, %v3440
    %v3442 = vlaneseq
    %v3443 = vshrl.u32 %v3442, 7
    %v3444 = vsub.s32 1, %v3443
    %v3445 = vrot.slane %v3436, %v3444
    %v3446 = vlaneseq
    %v3447 = vshrl.u32 %v3446, 7
    %v3448 = vsub.s32 2, %v3447
    %v3449 = vrot.slane %v3436, %v3448
    %v3450 = vlaneseq
    %v3451 = vshrl.u32 %v3450, 7
    %v3452 = vsub.s32 3, %v3451
    %v3453 = vrot.slane %v3436, %v3452
    %3458 = vmatprep.subr.mxu0 %v2681
    %3459 = vmatpush1.msra.mxu0 %v2680
    %3460 = vmatprep.subr.mxu0 %v2677
    %3461 = vmatpush1.msra.mxu0 %v2676
    %3462 = vmatprep.subr.mxu0 %v2673
    %3463 = vmatpush1.msra.mxu0 %v2672
    %3464 = vmatprep.subr.mxu0 %v2669
    %3465 = vmatpush1.msra.mxu0 %v2668
    %3466 = vmatprep.subr.mxu0 %v2665
    %3467 = vmatpush1.msra.mxu0 %v2664
    %3468 = vmatprep.subr.mxu0 %v2661
    %3469 = vmatpush1.msra.mxu0 %v2660
    %3470 = vmatprep.subr.mxu0 %v2657
    %3471 = vmatpush1.msra.mxu0 %v2656
    %3472 = vmatprep.subr.mxu0 %v2653
    %3473 = vmatpush1.msra.mxu0 %v2652
    %3474 = vmatprep.subr.mxu0 %v2649
    %3475 = vmatpush1.msra.mxu0 %v2648
    %3476 = vmatprep.subr.mxu0 %v2645
    %3477 = vmatpush1.msra.mxu0 %v2644
    %3478 = vmatprep.subr.mxu0 %v2641
    %3479 = vmatpush1.msra.mxu0 %v2640
    %3480 = vmatprep.subr.mxu0 %v2637
    %3481 = vmatpush1.msra.mxu0 %v2636
    %3482 = vmatprep.subr.mxu0 %v2633
    %3483 = vmatpush1.msra.mxu0 %v2632
    %3484 = vmatprep.subr.mxu0 %v2629
    %3485 = vmatpush1.msra.mxu0 %v2628
    %3486 = vmatprep.subr.mxu0 %v2625
    %3487 = vmatpush1.msra.mxu0 %v2624
    %3488 = vmatprep.subr.mxu0 %v2621
    %3489 = vmatpush1.msra.mxu0 %v2620
    %3490 = vmatprep.subr.mxu0 0.0
    %3491 = vmatpush2.msra.mxu0 0.0
    %3492 = vmatprep.subr.mxu0 0.0
    %3493 = vmatpush2.msra.mxu0 0.0
    %3494 = vmatprep.subr.mxu0 0.0
    %3495 = vmatpush2.msra.mxu0 0.0
    %3496 = vmatprep.subr.mxu0 0.0
    %3497 = vmatpush2.msra.mxu0 0.0
    %3498 = vmatprep.subr.mxu0 0.0
    %3499 = vmatpush2.msra.mxu0 0.0
    %3500 = vmatprep.subr.mxu0 0.0
    %3501 = vmatpush2.msra.mxu0 0.0
    %3502 = vmatprep.subr.mxu0 0.0
    %3503 = vmatpush2.msra.mxu0 0.0
    %3504 = vmatprep.subr.mxu0 0.0
    %3505 = vmatpush2.msra.mxu0 0.0
    %3506 = vmatprep.subr.mxu0 0.0
    %3507 = vmatpush2.msra.mxu0 0.0
    %3508 = vmatprep.subr.mxu0 0.0
    %3509 = vmatpush2.msra.mxu0 0.0
    %3510 = vmatprep.subr.mxu0 0.0
    %3511 = vmatpush2.msra.mxu0 0.0
    %3512 = vmatprep.subr.mxu0 0.0
    %3513 = vmatpush2.msra.mxu0 0.0
    %3514 = vmatprep.subr.mxu0 0.0
    %3515 = vmatpush2.msra.mxu0 0.0
    %3516 = vmatprep.subr.mxu0 0.0
    %3517 = vmatpush2.msra.mxu0 0.0
    %3518 = vmatprep.subr.mxu0 0.0
    %3519 = vmatpush2.msra.mxu0 0.0
    %3520 = vmatprep.subr.mxu0 0.0
    %3521 = vmatpush2.msra.mxu0 0.0
    %3522 = vmatprep.mubr.f32.mxu0 0.0
    %3523 = vmatmul.mubr.f32.gmra.mxu0 %v3435
    %v3524 = vpop.f32.mrf.mxu0
    %v3525 = vadd.f32 %v3441, %v3524
    %v3526 = vpop.f32.mrf.mxu0
    %v3527 = vadd.f32 %v3445, %v3526
    %3528 = vdwg.mxu0
    %3529 = vmatprep.subr.mxu0 %v2683
    %3530 = vmatpush1.msra.mxu0 %v2682
    %3531 = vmatprep.subr.mxu0 %v2679
    %3532 = vmatpush1.msra.mxu0 %v2678
    %3533 = vmatprep.subr.mxu0 %v2675
    %3534 = vmatpush1.msra.mxu0 %v2674
    %3535 = vmatprep.subr.mxu0 %v2671
    %3536 = vmatpush1.msra.mxu0 %v2670
    %3537 = vmatprep.subr.mxu0 %v2667
    %3538 = vmatpush1.msra.mxu0 %v2666
    %3539 = vmatprep.subr.mxu0 %v2663
    %3540 = vmatpush1.msra.mxu0 %v2662
    %3541 = vmatprep.subr.mxu0 %v2659
    %3542 = vmatpush1.msra.mxu0 %v2658
    %3543 = vmatprep.subr.mxu0 %v2655
    %3544 = vmatpush1.msra.mxu0 %v2654
    %3545 = vmatprep.subr.mxu0 %v2651
    %3546 = vmatpush1.msra.mxu0 %v2650
    %3547 = vmatprep.subr.mxu0 %v2647
    %3548 = vmatpush1.msra.mxu0 %v2646
    %3549 = vmatprep.subr.mxu0 %v2643
    %3550 = vmatpush1.msra.mxu0 %v2642
    %3551 = vmatprep.subr.mxu0 %v2639
    %3552 = vmatpush1.msra.mxu0 %v2638
    %3553 = vmatprep.subr.mxu0 %v2635
    %3554 = vmatpush1.msra.mxu0 %v2634
    %3555 = vmatprep.subr.mxu0 %v2631
    %3556 = vmatpush1.msra.mxu0 %v2630
    %3557 = vmatprep.subr.mxu0 %v2627
    %3558 = vmatpush1.msra.mxu0 %v2626
    %3559 = vmatprep.subr.mxu0 %v2623
    %3560 = vmatpush1.msra.mxu0 %v2622
    %3561 = vmatprep.subr.mxu0 0.0
    %3562 = vmatpush2.msra.mxu0 0.0
    %3563 = vmatprep.subr.mxu0 0.0
    %3564 = vmatpush2.msra.mxu0 0.0
    %3565 = vmatprep.subr.mxu0 0.0
    %3566 = vmatpush2.msra.mxu0 0.0
    %3567 = vmatprep.subr.mxu0 0.0
    %3568 = vmatpush2.msra.mxu0 0.0
    %3569 = vmatprep.subr.mxu0 0.0
    %3570 = vmatpush2.msra.mxu0 0.0
    %3571 = vmatprep.subr.mxu0 0.0
    %3572 = vmatpush2.msra.mxu0 0.0
    %3573 = vmatprep.subr.mxu0 0.0
    %3574 = vmatpush2.msra.mxu0 0.0
    %3575 = vmatprep.subr.mxu0 0.0
    %3576 = vmatpush2.msra.mxu0 0.0
    %3577 = vmatprep.subr.mxu0 0.0
    %3578 = vmatpush2.msra.mxu0 0.0
    %3579 = vmatprep.subr.mxu0 0.0
    %3580 = vmatpush2.msra.mxu0 0.0
    %3581 = vmatprep.subr.mxu0 0.0
    %3582 = vmatpush2.msra.mxu0 0.0
    %3583 = vmatprep.subr.mxu0 0.0
    %3584 = vmatpush2.msra.mxu0 0.0
    %3585 = vmatprep.subr.mxu0 0.0
    %3586 = vmatpush2.msra.mxu0 0.0
    %3587 = vmatprep.subr.mxu0 0.0
    %3588 = vmatpush2.msra.mxu0 0.0
    %3589 = vmatprep.subr.mxu0 0.0
    %3590 = vmatpush2.msra.mxu0 0.0
    %3591 = vmatprep.subr.mxu0 0.0
    %3592 = vmatpush2.msra.mxu0 0.0
    %3593 = vmatprep.mubr.f32.mxu0 0.0
    %3594 = vmatmul.mubr.f32.gmra.mxu0 %v3435
    %v3595 = vpop.f32.mrf.mxu0
    %v3596 = vadd.f32 %v3449, %v3595
    %v3597 = vpop.f32.mrf.mxu0
    %v3598 = vadd.f32 %v3453, %v3597
    %3599 = vdwg.mxu0
    %v3600 = vxor.u32 %v3525, 2147483648
    %v3601 = vmul.f32 %v3600, 1.442695
    %v3602 = vpow.pop %v3601
    %v3603 = vadd.f32 %v3602, 1.0
    %v3604 = vrcp.pop %v3603
    %v3605 = vmul.f32 1.0, %v3604
    %v3606 = vxor.u32 %v3527, 2147483648
    %v3607 = vmul.f32 %v3606, 1.442695
    %v3608 = vpow.pop %v3607
    %v3609 = vadd.f32 %v3608, 1.0
    %v3610 = vrcp.pop %v3609
    %v3611 = vmul.f32 1.0, %v3610
    %v3612 = vtanh.pop %v3596
    %v3613 = vxor.u32 %v3598, 2147483648
    %v3614 = vmul.f32 %v3613, 1.442695
    %v3615 = vpow.pop %v3614
    %v3616 = vadd.f32 %v3615, 1.0
    %v3617 = vrcp.pop %v3616
    %v3618 = vmul.f32 1.0, %v3617
    %v3619 = vmul.f32 %v3611, %v3433
    %v3620 = vmul.f32 %v3605, %v3612
    %v3621 = vadd.f32 %v3619, %v3620
    %v3622 = vtanh.pop %v3621
    %v3623 = vmul.f32 %v3618, %v3622
    %v3624 = vld [vmem:[%s1668] ss:$8 sm:$0xf]
    %v3626 = vlaneseq
    %v3627 = vshrl.u32 %v3626, 7
    %v3628 = vsub.s32 0, %v3627
    %v3629 = vrot.slane %v3624, %v3628
    %v3630 = vlaneseq
    %v3631 = vshrl.u32 %v3630, 7
    %v3632 = vsub.s32 1, %v3631
    %v3633 = vrot.slane %v3624, %v3632
    %v3634 = vlaneseq
    %v3635 = vshrl.u32 %v3634, 7
    %v3636 = vsub.s32 2, %v3635
    %v3637 = vrot.slane %v3624, %v3636
    %v3638 = vlaneseq
    %v3639 = vshrl.u32 %v3638, 7
    %v3640 = vsub.s32 3, %v3639
    %v3641 = vrot.slane %v3624, %v3640
    %3646 = vmatprep.subr.mxu0 %v2681
    %3647 = vmatpush1.msra.mxu0 %v2680
    %3648 = vmatprep.subr.mxu0 %v2677
    %3649 = vmatpush1.msra.mxu0 %v2676
    %3650 = vmatprep.subr.mxu0 %v2673
    %3651 = vmatpush1.msra.mxu0 %v2672
    %3652 = vmatprep.subr.mxu0 %v2669
    %3653 = vmatpush1.msra.mxu0 %v2668
    %3654 = vmatprep.subr.mxu0 %v2665
    %3655 = vmatpush1.msra.mxu0 %v2664
    %3656 = vmatprep.subr.mxu0 %v2661
    %3657 = vmatpush1.msra.mxu0 %v2660
    %3658 = vmatprep.subr.mxu0 %v2657
    %3659 = vmatpush1.msra.mxu0 %v2656
    %3660 = vmatprep.subr.mxu0 %v2653
    %3661 = vmatpush1.msra.mxu0 %v2652
    %3662 = vmatprep.subr.mxu0 %v2649
    %3663 = vmatpush1.msra.mxu0 %v2648
    %3664 = vmatprep.subr.mxu0 %v2645
    %3665 = vmatpush1.msra.mxu0 %v2644
    %3666 = vmatprep.subr.mxu0 %v2641
    %3667 = vmatpush1.msra.mxu0 %v2640
    %3668 = vmatprep.subr.mxu0 %v2637
    %3669 = vmatpush1.msra.mxu0 %v2636
    %3670 = vmatprep.subr.mxu0 %v2633
    %3671 = vmatpush1.msra.mxu0 %v2632
    %3672 = vmatprep.subr.mxu0 %v2629
    %3673 = vmatpush1.msra.mxu0 %v2628
    %3674 = vmatprep.subr.mxu0 %v2625
    %3675 = vmatpush1.msra.mxu0 %v2624
    %3676 = vmatprep.subr.mxu0 %v2621
    %3677 = vmatpush1.msra.mxu0 %v2620
    %3678 = vmatprep.subr.mxu0 0.0
    %3679 = vmatpush2.msra.mxu0 0.0
    %3680 = vmatprep.subr.mxu0 0.0
    %3681 = vmatpush2.msra.mxu0 0.0
    %3682 = vmatprep.subr.mxu0 0.0
    %3683 = vmatpush2.msra.mxu0 0.0
    %3684 = vmatprep.subr.mxu0 0.0
    %3685 = vmatpush2.msra.mxu0 0.0
    %3686 = vmatprep.subr.mxu0 0.0
    %3687 = vmatpush2.msra.mxu0 0.0
    %3688 = vmatprep.subr.mxu0 0.0
    %3689 = vmatpush2.msra.mxu0 0.0
    %3690 = vmatprep.subr.mxu0 0.0
    %3691 = vmatpush2.msra.mxu0 0.0
    %3692 = vmatprep.subr.mxu0 0.0
    %3693 = vmatpush2.msra.mxu0 0.0
    %3694 = vmatprep.subr.mxu0 0.0
    %3695 = vmatpush2.msra.mxu0 0.0
    %3696 = vmatprep.subr.mxu0 0.0
    %3697 = vmatpush2.msra.mxu0 0.0
    %3698 = vmatprep.subr.mxu0 0.0
    %3699 = vmatpush2.msra.mxu0 0.0
    %3700 = vmatprep.subr.mxu0 0.0
    %3701 = vmatpush2.msra.mxu0 0.0
    %3702 = vmatprep.subr.mxu0 0.0
    %3703 = vmatpush2.msra.mxu0 0.0
    %3704 = vmatprep.subr.mxu0 0.0
    %3705 = vmatpush2.msra.mxu0 0.0
    %3706 = vmatprep.subr.mxu0 0.0
    %3707 = vmatpush2.msra.mxu0 0.0
    %3708 = vmatprep.subr.mxu0 0.0
    %3709 = vmatpush2.msra.mxu0 0.0
    %3710 = vmatprep.mubr.f32.mxu0 0.0
    %3711 = vmatmul.mubr.f32.gmra.mxu0 %v3623
    %v3712 = vpop.f32.mrf.mxu0
    %v3713 = vadd.f32 %v3629, %v3712
    %v3714 = vpop.f32.mrf.mxu0
    %v3715 = vadd.f32 %v3633, %v3714
    %3716 = vdwg.mxu0
    %3717 = vmatprep.subr.mxu0 %v2683
    %3718 = vmatpush1.msra.mxu0 %v2682
    %3719 = vmatprep.subr.mxu0 %v2679
    %3720 = vmatpush1.msra.mxu0 %v2678
    %3721 = vmatprep.subr.mxu0 %v2675
    %3722 = vmatpush1.msra.mxu0 %v2674
    %3723 = vmatprep.subr.mxu0 %v2671
    %3724 = vmatpush1.msra.mxu0 %v2670
    %3725 = vmatprep.subr.mxu0 %v2667
    %3726 = vmatpush1.msra.mxu0 %v2666
    %3727 = vmatprep.subr.mxu0 %v2663
    %3728 = vmatpush1.msra.mxu0 %v2662
    %3729 = vmatprep.subr.mxu0 %v2659
    %3730 = vmatpush1.msra.mxu0 %v2658
    %3731 = vmatprep.subr.mxu0 %v2655
    %3732 = vmatpush1.msra.mxu0 %v2654
    %3733 = vmatprep.subr.mxu0 %v2651
    %3734 = vmatpush1.msra.mxu0 %v2650
    %3735 = vmatprep.subr.mxu0 %v2647
    %3736 = vmatpush1.msra.mxu0 %v2646
    %3737 = vmatprep.subr.mxu0 %v2643
    %3738 = vmatpush1.msra.mxu0 %v2642
    %3739 = vmatprep.subr.mxu0 %v2639
    %3740 = vmatpush1.msra.mxu0 %v2638
    %3741 = vmatprep.subr.mxu0 %v2635
    %3742 = vmatpush1.msra.mxu0 %v2634
    %3743 = vmatprep.subr.mxu0 %v2631
    %3744 = vmatpush1.msra.mxu0 %v2630
    %3745 = vmatprep.subr.mxu0 %v2627
    %3746 = vmatpush1.msra.mxu0 %v2626
    %3747 = vmatprep.subr.mxu0 %v2623
    %3748 = vmatpush1.msra.mxu0 %v2622
    %3749 = vmatprep.subr.mxu0 0.0
    %3750 = vmatpush2.msra.mxu0 0.0
    %3751 = vmatprep.subr.mxu0 0.0
    %3752 = vmatpush2.msra.mxu0 0.0
    %3753 = vmatprep.subr.mxu0 0.0
    %3754 = vmatpush2.msra.mxu0 0.0
    %3755 = vmatprep.subr.mxu0 0.0
    %3756 = vmatpush2.msra.mxu0 0.0
    %3757 = vmatprep.subr.mxu0 0.0
    %3758 = vmatpush2.msra.mxu0 0.0
    %3759 = vmatprep.subr.mxu0 0.0
    %3760 = vmatpush2.msra.mxu0 0.0
    %3761 = vmatprep.subr.mxu0 0.0
    %3762 = vmatpush2.msra.mxu0 0.0
    %3763 = vmatprep.subr.mxu0 0.0
    %3764 = vmatpush2.msra.mxu0 0.0
    %3765 = vmatprep.subr.mxu0 0.0
    %3766 = vmatpush2.msra.mxu0 0.0
    %3767 = vmatprep.subr.mxu0 0.0
    %3768 = vmatpush2.msra.mxu0 0.0
    %3769 = vmatprep.subr.mxu0 0.0
    %3770 = vmatpush2.msra.mxu0 0.0
    %3771 = vmatprep.subr.mxu0 0.0
    %3772 = vmatpush2.msra.mxu0 0.0
    %3773 = vmatprep.subr.mxu0 0.0
    %3774 = vmatpush2.msra.mxu0 0.0
    %3775 = vmatprep.subr.mxu0 0.0
    %3776 = vmatpush2.msra.mxu0 0.0
    %3777 = vmatprep.subr.mxu0 0.0
    %3778 = vmatpush2.msra.mxu0 0.0
    %3779 = vmatprep.subr.mxu0 0.0
    %3780 = vmatpush2.msra.mxu0 0.0
    %3781 = vmatprep.mubr.f32.mxu0 0.0
    %3782 = vmatmul.mubr.f32.gmra.mxu0 %v3623
    %v3783 = vpop.f32.mrf.mxu0
    %v3784 = vadd.f32 %v3637, %v3783
    %v3785 = vpop.f32.mrf.mxu0
    %v3786 = vadd.f32 %v3641, %v3785
    %3787 = vdwg.mxu0
    %v3788 = vxor.u32 %v3713, 2147483648
    %v3789 = vmul.f32 %v3788, 1.442695
    %v3790 = vpow.pop %v3789
    %v3791 = vadd.f32 %v3790, 1.0
    %v3792 = vrcp.pop %v3791
    %v3793 = vmul.f32 1.0, %v3792
    %v3794 = vxor.u32 %v3715, 2147483648
    %v3795 = vmul.f32 %v3794, 1.442695
    %v3796 = vpow.pop %v3795
    %v3797 = vadd.f32 %v3796, 1.0
    %v3798 = vrcp.pop %v3797
    %v3799 = vmul.f32 1.0, %v3798
    %v3800 = vtanh.pop %v3784
    %v3801 = vxor.u32 %v3786, 2147483648
    %v3802 = vmul.f32 %v3801, 1.442695
    %v3803 = vpow.pop %v3802
    %v3804 = vadd.f32 %v3803, 1.0
    %v3805 = vrcp.pop %v3804
    %v3806 = vmul.f32 1.0, %v3805
    %v3807 = vmul.f32 %v3799, %v3621
    %v3808 = vmul.f32 %v3793, %v3800
    %v3809 = vadd.f32 %v3807, %v3808
    %v3810 = vtanh.pop %v3809
    %v3811 = vmul.f32 %v3806, %v3810
    %v3812 = vld [vmem:[%s1928] ss:$8 sm:$0xf]
    %v3814 = vlaneseq
    %v3815 = vshrl.u32 %v3814, 7
    %v3816 = vsub.s32 0, %v3815
    %v3817 = vrot.slane %v3812, %v3816
    %v3818 = vlaneseq
    %v3819 = vshrl.u32 %v3818, 7
    %v3820 = vsub.s32 1, %v3819
    %v3821 = vrot.slane %v3812, %v3820
    %v3822 = vlaneseq
    %v3823 = vshrl.u32 %v3822, 7
    %v3824 = vsub.s32 2, %v3823
    %v3825 = vrot.slane %v3812, %v3824
    %v3826 = vlaneseq
    %v3827 = vshrl.u32 %v3826, 7
    %v3828 = vsub.s32 3, %v3827
    %v3829 = vrot.slane %v3812, %v3828
    %3834 = vmatprep.subr.mxu0 %v2681
    %3835 = vmatpush1.msra.mxu0 %v2680
    %3836 = vmatprep.subr.mxu0 %v2677
    %3837 = vmatpush1.msra.mxu0 %v2676
    %3838 = vmatprep.subr.mxu0 %v2673
    %3839 = vmatpush1.msra.mxu0 %v2672
    %3840 = vmatprep.subr.mxu0 %v2669
    %3841 = vmatpush1.msra.mxu0 %v2668
    %3842 = vmatprep.subr.mxu0 %v2665
    %3843 = vmatpush1.msra.mxu0 %v2664
    %3844 = vmatprep.subr.mxu0 %v2661
    %3845 = vmatpush1.msra.mxu0 %v2660
    %3846 = vmatprep.subr.mxu0 %v2657
    %3847 = vmatpush1.msra.mxu0 %v2656
    %3848 = vmatprep.subr.mxu0 %v2653
    %3849 = vmatpush1.msra.mxu0 %v2652
    %3850 = vmatprep.subr.mxu0 %v2649
    %3851 = vmatpush1.msra.mxu0 %v2648
    %3852 = vmatprep.subr.mxu0 %v2645
    %3853 = vmatpush1.msra.mxu0 %v2644
    %3854 = vmatprep.subr.mxu0 %v2641
    %3855 = vmatpush1.msra.mxu0 %v2640
    %3856 = vmatprep.subr.mxu0 %v2637
    %3857 = vmatpush1.msra.mxu0 %v2636
    %3858 = vmatprep.subr.mxu0 %v2633
    %3859 = vmatpush1.msra.mxu0 %v2632
    %3860 = vmatprep.subr.mxu0 %v2629
    %3861 = vmatpush1.msra.mxu0 %v2628
    %3862 = vmatprep.subr.mxu0 %v2625
    %3863 = vmatpush1.msra.mxu0 %v2624
    %3864 = vmatprep.subr.mxu0 %v2621
    %3865 = vmatpush1.msra.mxu0 %v2620
    %3866 = vmatprep.subr.mxu0 0.0
    %3867 = vmatpush2.msra.mxu0 0.0
    %3868 = vmatprep.subr.mxu0 0.0
    %3869 = vmatpush2.msra.mxu0 0.0
    %3870 = vmatprep.subr.mxu0 0.0
    %3871 = vmatpush2.msra.mxu0 0.0
    %3872 = vmatprep.subr.mxu0 0.0
    %3873 = vmatpush2.msra.mxu0 0.0
    %3874 = vmatprep.subr.mxu0 0.0
    %3875 = vmatpush2.msra.mxu0 0.0
    %3876 = vmatprep.subr.mxu0 0.0
    %3877 = vmatpush2.msra.mxu0 0.0
    %3878 = vmatprep.subr.mxu0 0.0
    %3879 = vmatpush2.msra.mxu0 0.0
    %3880 = vmatprep.subr.mxu0 0.0
    %3881 = vmatpush2.msra.mxu0 0.0
    %3882 = vmatprep.subr.mxu0 0.0
    %3883 = vmatpush2.msra.mxu0 0.0
    %3884 = vmatprep.subr.mxu0 0.0
    %3885 = vmatpush2.msra.mxu0 0.0
    %3886 = vmatprep.subr.mxu0 0.0
    %3887 = vmatpush2.msra.mxu0 0.0
    %3888 = vmatprep.subr.mxu0 0.0
    %3889 = vmatpush2.msra.mxu0 0.0
    %3890 = vmatprep.subr.mxu0 0.0
    %3891 = vmatpush2.msra.mxu0 0.0
    %3892 = vmatprep.subr.mxu0 0.0
    %3893 = vmatpush2.msra.mxu0 0.0
    %3894 = vmatprep.subr.mxu0 0.0
    %3895 = vmatpush2.msra.mxu0 0.0
    %3896 = vmatprep.subr.mxu0 0.0
    %3897 = vmatpush2.msra.mxu0 0.0
    %3898 = vmatprep.mubr.f32.mxu0 0.0
    %3899 = vmatmul.mubr.f32.gmra.mxu0 %v3811
    %v3900 = vpop.f32.mrf.mxu0
    %v3901 = vadd.f32 %v3817, %v3900
    %v3902 = vpop.f32.mrf.mxu0
    %v3903 = vadd.f32 %v3821, %v3902
    %3904 = vdwg.mxu0
    %3905 = vmatprep.subr.mxu0 %v2683
    %3906 = vmatpush1.msra.mxu0 %v2682
    %3907 = vmatprep.subr.mxu0 %v2679
    %3908 = vmatpush1.msra.mxu0 %v2678
    %3909 = vmatprep.subr.mxu0 %v2675
    %3910 = vmatpush1.msra.mxu0 %v2674
    %3911 = vmatprep.subr.mxu0 %v2671
    %3912 = vmatpush1.msra.mxu0 %v2670
    %3913 = vmatprep.subr.mxu0 %v2667
    %3914 = vmatpush1.msra.mxu0 %v2666
    %3915 = vmatprep.subr.mxu0 %v2663
    %3916 = vmatpush1.msra.mxu0 %v2662
    %3917 = vmatprep.subr.mxu0 %v2659
    %3918 = vmatpush1.msra.mxu0 %v2658
    %3919 = vmatprep.subr.mxu0 %v2655
    %3920 = vmatpush1.msra.mxu0 %v2654
    %3921 = vmatprep.subr.mxu0 %v2651
    %3922 = vmatpush1.msra.mxu0 %v2650
    %3923 = vmatprep.subr.mxu0 %v2647
    %3924 = vmatpush1.msra.mxu0 %v2646
    %3925 = vmatprep.subr.mxu0 %v2643
    %3926 = vmatpush1.msra.mxu0 %v2642
    %3927 = vmatprep.subr.mxu0 %v2639
    %3928 = vmatpush1.msra.mxu0 %v2638
    %3929 = vmatprep.subr.mxu0 %v2635
    %3930 = vmatpush1.msra.mxu0 %v2634
    %3931 = vmatprep.subr.mxu0 %v2631
    %3932 = vmatpush1.msra.mxu0 %v2630
    %3933 = vmatprep.subr.mxu0 %v2627
    %3934 = vmatpush1.msra.mxu0 %v2626
    %3935 = vmatprep.subr.mxu0 %v2623
    %3936 = vmatpush1.msra.mxu0 %v2622
    %3937 = vmatprep.subr.mxu0 0.0
    %3938 = vmatpush2.msra.mxu0 0.0
    %3939 = vmatprep.subr.mxu0 0.0
    %3940 = vmatpush2.msra.mxu0 0.0
    %3941 = vmatprep.subr.mxu0 0.0
    %3942 = vmatpush2.msra.mxu0 0.0
    %3943 = vmatprep.subr.mxu0 0.0
    %3944 = vmatpush2.msra.mxu0 0.0
    %3945 = vmatprep.subr.mxu0 0.0
    %3946 = vmatpush2.msra.mxu0 0.0
    %3947 = vmatprep.subr.mxu0 0.0
    %3948 = vmatpush2.msra.mxu0 0.0
    %3949 = vmatprep.subr.mxu0 0.0
    %3950 = vmatpush2.msra.mxu0 0.0
    %3951 = vmatprep.subr.mxu0 0.0
    %3952 = vmatpush2.msra.mxu0 0.0
    %3953 = vmatprep.subr.mxu0 0.0
    %3954 = vmatpush2.msra.mxu0 0.0
    %3955 = vmatprep.subr.mxu0 0.0
    %3956 = vmatpush2.msra.mxu0 0.0
    %3957 = vmatprep.subr.mxu0 0.0
    %3958 = vmatpush2.msra.mxu0 0.0
    %3959 = vmatprep.subr.mxu0 0.0
    %3960 = vmatpush2.msra.mxu0 0.0
    %3961 = vmatprep.subr.mxu0 0.0
    %3962 = vmatpush2.msra.mxu0 0.0
    %3963 = vmatprep.subr.mxu0 0.0
    %3964 = vmatpush2.msra.mxu0 0.0
    %3965 = vmatprep.subr.mxu0 0.0
    %3966 = vmatpush2.msra.mxu0 0.0
    %3967 = vmatprep.subr.mxu0 0.0
    %3968 = vmatpush2.msra.mxu0 0.0
    %3969 = vmatprep.mubr.f32.mxu0 0.0
    %3970 = vmatmul.mubr.f32.gmra.mxu0 %v3811
    %v3971 = vpop.f32.mrf.mxu0
    %v3972 = vadd.f32 %v3825, %v3971
    %v3973 = vpop.f32.mrf.mxu0
    %v3974 = vadd.f32 %v3829, %v3973
    %3975 = vdwg.mxu0
    %v3976 = vxor.u32 %v3901, 2147483648
    %v3977 = vmul.f32 %v3976, 1.442695
    %v3978 = vpow.pop %v3977
    %v3979 = vadd.f32 %v3978, 1.0
    %v3980 = vrcp.pop %v3979
    %v3981 = vmul.f32 1.0, %v3980
    %v3982 = vxor.u32 %v3903, 2147483648
    %v3983 = vmul.f32 %v3982, 1.442695
    %v3984 = vpow.pop %v3983
    %v3985 = vadd.f32 %v3984, 1.0
    %v3986 = vrcp.pop %v3985
    %v3987 = vmul.f32 1.0, %v3986
    %v3988 = vtanh.pop %v3972
    %v3989 = vxor.u32 %v3974, 2147483648
    %v3990 = vmul.f32 %v3989, 1.442695
    %v3991 = vpow.pop %v3990
    %v3992 = vadd.f32 %v3991, 1.0
    %v3993 = vrcp.pop %v3992
    %v3994 = vmul.f32 1.0, %v3993
    %v3995 = vmul.f32 %v3987, %v3809
    %v3996 = vmul.f32 %v3981, %v3988
    %v3997 = vadd.f32 %v3995, %v3996
    %v3998 = vtanh.pop %v3997
    %v3999 = vmul.f32 %v3994, %v3998
    %v4000 = vld [vmem:[%s2188] ss:$8 sm:$0xf]
    %v4002 = vlaneseq
    %v4003 = vshrl.u32 %v4002, 7
    %v4004 = vsub.s32 0, %v4003
    %v4005 = vrot.slane %v4000, %v4004
    %v4006 = vlaneseq
    %v4007 = vshrl.u32 %v4006, 7
    %v4008 = vsub.s32 1, %v4007
    %v4009 = vrot.slane %v4000, %v4008
    %v4010 = vlaneseq
    %v4011 = vshrl.u32 %v4010, 7
    %v4012 = vsub.s32 2, %v4011
    %v4013 = vrot.slane %v4000, %v4012
    %v4014 = vlaneseq
    %v4015 = vshrl.u32 %v4014, 7
    %v4016 = vsub.s32 3, %v4015
    %v4017 = vrot.slane %v4000, %v4016
    %4022 = vmatprep.subr.mxu0 %v2681
    %4023 = vmatpush1.msra.mxu0 %v2680
    %4024 = vmatprep.subr.mxu0 %v2677
    %4025 = vmatpush1.msra.mxu0 %v2676
    %4026 = vmatprep.subr.mxu0 %v2673
    %4027 = vmatpush1.msra.mxu0 %v2672
    %4028 = vmatprep.subr.mxu0 %v2669
    %4029 = vmatpush1.msra.mxu0 %v2668
    %4030 = vmatprep.subr.mxu0 %v2665
    %4031 = vmatpush1.msra.mxu0 %v2664
    %4032 = vmatprep.subr.mxu0 %v2661
    %4033 = vmatpush1.msra.mxu0 %v2660
    %4034 = vmatprep.subr.mxu0 %v2657
    %4035 = vmatpush1.msra.mxu0 %v2656
    %4036 = vmatprep.subr.mxu0 %v2653
    %4037 = vmatpush1.msra.mxu0 %v2652
    %4038 = vmatprep.subr.mxu0 %v2649
    %4039 = vmatpush1.msra.mxu0 %v2648
    %4040 = vmatprep.subr.mxu0 %v2645
    %4041 = vmatpush1.msra.mxu0 %v2644
    %4042 = vmatprep.subr.mxu0 %v2641
    %4043 = vmatpush1.msra.mxu0 %v2640
    %4044 = vmatprep.subr.mxu0 %v2637
    %4045 = vmatpush1.msra.mxu0 %v2636
    %4046 = vmatprep.subr.mxu0 %v2633
    %4047 = vmatpush1.msra.mxu0 %v2632
    %4048 = vmatprep.subr.mxu0 %v2629
    %4049 = vmatpush1.msra.mxu0 %v2628
    %4050 = vmatprep.subr.mxu0 %v2625
    %4051 = vmatpush1.msra.mxu0 %v2624
    %4052 = vmatprep.subr.mxu0 %v2621
    %4053 = vmatpush1.msra.mxu0 %v2620
    %4054 = vmatprep.subr.mxu0 0.0
    %4055 = vmatpush2.msra.mxu0 0.0
    %4056 = vmatprep.subr.mxu0 0.0
    %4057 = vmatpush2.msra.mxu0 0.0
    %4058 = vmatprep.subr.mxu0 0.0
    %4059 = vmatpush2.msra.mxu0 0.0
    %4060 = vmatprep.subr.mxu0 0.0
    %4061 = vmatpush2.msra.mxu0 0.0
    %4062 = vmatprep.subr.mxu0 0.0
    %4063 = vmatpush2.msra.mxu0 0.0
    %4064 = vmatprep.subr.mxu0 0.0
    %4065 = vmatpush2.msra.mxu0 0.0
    %4066 = vmatprep.subr.mxu0 0.0
    %4067 = vmatpush2.msra.mxu0 0.0
    %4068 = vmatprep.subr.mxu0 0.0
    %4069 = vmatpush2.msra.mxu0 0.0
    %4070 = vmatprep.subr.mxu0 0.0
    %4071 = vmatpush2.msra.mxu0 0.0
    %4072 = vmatprep.subr.mxu0 0.0
    %4073 = vmatpush2.msra.mxu0 0.0
    %4074 = vmatprep.subr.mxu0 0.0
    %4075 = vmatpush2.msra.mxu0 0.0
    %4076 = vmatprep.subr.mxu0 0.0
    %4077 = vmatpush2.msra.mxu0 0.0
    %4078 = vmatprep.subr.mxu0 0.0
    %4079 = vmatpush2.msra.mxu0 0.0
    %4080 = vmatprep.subr.mxu0 0.0
    %4081 = vmatpush2.msra.mxu0 0.0
    %4082 = vmatprep.subr.mxu0 0.0
    %4083 = vmatpush2.msra.mxu0 0.0
    %4084 = vmatprep.subr.mxu0 0.0
    %4085 = vmatpush2.msra.mxu0 0.0
    %4086 = vmatprep.mubr.f32.mxu0 0.0
    %4087 = vmatmul.mubr.f32.gmra.mxu0 %v3999
    %v4088 = vpop.f32.mrf.mxu0
    %v4089 = vadd.f32 %v4005, %v4088
    %v4090 = vpop.f32.mrf.mxu0
    %v4091 = vadd.f32 %v4009, %v4090
    %4092 = vdwg.mxu0
    %4093 = vmatprep.subr.mxu0 %v2683
    %4094 = vmatpush1.msra.mxu0 %v2682
    %4095 = vmatprep.subr.mxu0 %v2679
    %4096 = vmatpush1.msra.mxu0 %v2678
    %4097 = vmatprep.subr.mxu0 %v2675
    %4098 = vmatpush1.msra.mxu0 %v2674
    %4099 = vmatprep.subr.mxu0 %v2671
    %4100 = vmatpush1.msra.mxu0 %v2670
    %4101 = vmatprep.subr.mxu0 %v2667
    %4102 = vmatpush1.msra.mxu0 %v2666
    %4103 = vmatprep.subr.mxu0 %v2663
    %4104 = vmatpush1.msra.mxu0 %v2662
    %4105 = vmatprep.subr.mxu0 %v2659
    %4106 = vmatpush1.msra.mxu0 %v2658
    %4107 = vmatprep.subr.mxu0 %v2655
    %4108 = vmatpush1.msra.mxu0 %v2654
    %4109 = vmatprep.subr.mxu0 %v2651
    %4110 = vmatpush1.msra.mxu0 %v2650
    %4111 = vmatprep.subr.mxu0 %v2647
    %4112 = vmatpush1.msra.mxu0 %v2646
    %4113 = vmatprep.subr.mxu0 %v2643
    %4114 = vmatpush1.msra.mxu0 %v2642
    %4115 = vmatprep.subr.mxu0 %v2639
    %4116 = vmatpush1.msra.mxu0 %v2638
    %4117 = vmatprep.subr.mxu0 %v2635
    %4118 = vmatpush1.msra.mxu0 %v2634
    %4119 = vmatprep.subr.mxu0 %v2631
    %4120 = vmatpush1.msra.mxu0 %v2630
    %4121 = vmatprep.subr.mxu0 %v2627
    %4122 = vmatpush1.msra.mxu0 %v2626
    %4123 = vmatprep.subr.mxu0 %v2623
    %4124 = vmatpush1.msra.mxu0 %v2622
    %4125 = vmatprep.subr.mxu0 0.0
    %4126 = vmatpush2.msra.mxu0 0.0
    %4127 = vmatprep.subr.mxu0 0.0
    %4128 = vmatpush2.msra.mxu0 0.0
    %4129 = vmatprep.subr.mxu0 0.0
    %4130 = vmatpush2.msra.mxu0 0.0
    %4131 = vmatprep.subr.mxu0 0.0
    %4132 = vmatpush2.msra.mxu0 0.0
    %4133 = vmatprep.subr.mxu0 0.0
    %4134 = vmatpush2.msra.mxu0 0.0
    %4135 = vmatprep.subr.mxu0 0.0
    %4136 = vmatpush2.msra.mxu0 0.0
    %4137 = vmatprep.subr.mxu0 0.0
    %4138 = vmatpush2.msra.mxu0 0.0
    %4139 = vmatprep.subr.mxu0 0.0
    %4140 = vmatpush2.msra.mxu0 0.0
    %4141 = vmatprep.subr.mxu0 0.0
    %4142 = vmatpush2.msra.mxu0 0.0
    %4143 = vmatprep.subr.mxu0 0.0
    %4144 = vmatpush2.msra.mxu0 0.0
    %4145 = vmatprep.subr.mxu0 0.0
    %4146 = vmatpush2.msra.mxu0 0.0
    %4147 = vmatprep.subr.mxu0 0.0
    %4148 = vmatpush2.msra.mxu0 0.0
    %4149 = vmatprep.subr.mxu0 0.0
    %4150 = vmatpush2.msra.mxu0 0.0
    %4151 = vmatprep.subr.mxu0 0.0
    %4152 = vmatpush2.msra.mxu0 0.0
    %4153 = vmatprep.subr.mxu0 0.0
    %4154 = vmatpush2.msra.mxu0 0.0
    %4155 = vmatprep.subr.mxu0 0.0
    %4156 = vmatpush2.msra.mxu0 0.0
    %4157 = vmatprep.mubr.f32.mxu0 0.0
    %4158 = vmatmul.mubr.f32.gmra.mxu0 %v3999
    %v4159 = vpop.f32.mrf.mxu0
    %v4160 = vadd.f32 %v4013, %v4159
    %v4161 = vpop.f32.mrf.mxu0
    %v4162 = vadd.f32 %v4017, %v4161
    %4163 = vdwg.mxu0
    %v4164 = vxor.u32 %v4089, 2147483648
    %v4165 = vmul.f32 %v4164, 1.442695
    %v4166 = vpow.pop %v4165
    %v4167 = vadd.f32 %v4166, 1.0
    %v4168 = vrcp.pop %v4167
    %v4169 = vmul.f32 1.0, %v4168
    %v4170 = vxor.u32 %v4091, 2147483648
    %v4171 = vmul.f32 %v4170, 1.442695
    %v4172 = vpow.pop %v4171
    %v4173 = vadd.f32 %v4172, 1.0
    %v4174 = vrcp.pop %v4173
    %v4175 = vmul.f32 1.0, %v4174
    %v4176 = vtanh.pop %v4160
    %v4177 = vxor.u32 %v4162, 2147483648
    %v4178 = vmul.f32 %v4177, 1.442695
    %v4179 = vpow.pop %v4178
    %v4180 = vadd.f32 %v4179, 1.0
    %v4181 = vrcp.pop %v4180
    %v4182 = vmul.f32 1.0, %v4181
    %v4183 = vmul.f32 %v4175, %v3997
    %v4184 = vmul.f32 %v4169, %v4176
    %v4185 = vadd.f32 %v4183, %v4184
    %v4186 = vtanh.pop %v4185
    %v4187 = vmul.f32 %v4182, %v4186
    %v4188 = vtanh.pop %v4187
    %4189 = vst [vmem:[#allocation12] sm:$0x1] %v4188
    // Predicated region
    $region34: #{tpu_custom_call.1} parent=1 // pred_check
      _
    $region35: #{tpu_custom_call.1} parent=1 // pred_check_branch
      %4191 = sbr.rel (0) target = $region37
    $region36: #{tpu_custom_call.1} parent=1 // pred_region
      %s4193 = ssub.s32 16, 16
      %4194 = vsyncadd [#allocation6], %s4193
      %s4196 = sshll.u32 [#allocation12], 4
      %s4197 = int_to_ptr.vmem [resolvable:$true] %s4196
      %4199 = dma.vmem_to_hbm [thread:$0]  %s4197, 16, %s4, [#allocation6]
    $region37: #{tpu_custom_call.1} parent=1 // pred_fallthru
      _
    // Predicated region
    $region38: #{tpu_custom_call.1} parent=1 // pred_check
      _
    $region39: #{tpu_custom_call.1} parent=1 // pred_check_branch
      %4201 = sbr.rel (0) target = $region41
    $region40: #{tpu_custom_call.1} parent=1 // pred_region
      %4202 = dma.done [#allocation6], 16
    $region41: #{tpu_custom_call.1} parent=1 // pred_fallthru
      _
    %4203 = vsyncpa [#allocation5], 1
    %4204 = vsyncpa [#allocation8], 1
    %4205 = vsyncpa [#allocation11], 1
    %4206 = vsyncpa [#allocation6], 1

</llo_original>
